<compile_context>
chip_gen: v7x
topology: tpu7x:2x2x1
jax: 0.10.0
libtpu: 0.0.40
codegen_flags: <defaults>
</compile_context>

<pallas_src>
import functools

import jax
import jax.numpy as jnp
import numpy as np
from jax import lax
from jax.experimental import pallas as pl
from jax.experimental.pallas import tpu as pltpu

K = 4        # kernel_size
STRIDE = 2   # stride
PAD = 1      # padding
BN_EPS = 1e-5


def _round_up(x, m):
    return (x + m - 1) // m * m


def _vmem_cap_bytes():
    # 75% of per-core VMEM; conservative fallback = v7x's 64 MiB.
    try:
        cap = int(pltpu.get_tpu_info().vmem_capacity_bytes)
    except Exception:
        cap = 64 << 20
    return int(0.75 * cap)


# ---------------------------------------------------------------------------
# Pallas kernels
# ---------------------------------------------------------------------------
def _conv_bn_stats_kernel(x_ref, w_ref, b_ref, o_ref, ps_ref, pss_ref):
    # x_ref : (H+2, W+2, Cin)   one zero-padded image (MXU dtype)
    # w_ref : (4, 4, Cin, Cout) per-parity / per-tap weight matrices
    # b_ref : (1, Cout) f32
    # o_ref : (H, 2, W, 2*Cout) interleaved output (store dtype)
    # ps/pss: (1, Cout) f32     per-image pre-bias sum / sum-of-squares
    h, _, w, two_cout = o_ref.shape
    cout = two_cout // 2
    s_tot = jnp.zeros((1, cout), jnp.float32)
    ss_tot = jnp.zeros((1, cout), jnp.float32)
    for ph in (0, 1):
        halves = []
        for pw in (0, 1):
            p = 2 * ph + pw
            acc = jnp.zeros((h * w, cout), jnp.float32)
            for dh in (0, 1):
                for dw in (0, 1):
                    xs = x_ref[pl.ds(ph + dh, h), pl.ds(pw + dw, w), :]
                    acc = acc + jnp.dot(xs.reshape(h * w, xs.shape[-1]),
                                        w_ref[p, 2 * dh + dw],
                                        preferred_element_type=jnp.float32)
            # BN statistics accumulated pre-bias in f32 (less cancellation).
            s_tot = s_tot + jnp.sum(acc, axis=0, keepdims=True)
            ss_tot = ss_tot + jnp.sum(acc * acc, axis=0, keepdims=True)
            halves.append(acc + b_ref[...])
        row = jnp.concatenate(halves, axis=-1)                     # (h*w, 2*Cout)
        o_ref[:, ph, :, :] = row.reshape(h, w, two_cout).astype(o_ref.dtype)
    ps_ref[...] = s_tot
    pss_ref[...] = ss_tot


def _conv_tanh_kernel(x_ref, w_ref, b_ref, o_ref):
    # Final layer: ConvTranspose2d + Tanh (no BatchNorm).
    # TODO(synk): for very small Cout (e.g. 1/3 RGB channels) the output lane
    # width is < 128; a transposed (Cout-on-sublane) output tile would be
    # lane-denser for the store-bound tail.
    h, _, w, two_cout = o_ref.shape
    cout = two_cout // 2
    for ph in (0, 1):
        halves = []
        for pw in (0, 1):
            p = 2 * ph + pw
            acc = jnp.zeros((h * w, cout), jnp.float32)
            for dh in (0, 1):
                for dw in (0, 1):
                    xs = x_ref[pl.ds(ph + dh, h), pl.ds(pw + dw, w), :]
                    acc = acc + jnp.dot(xs.reshape(h * w, xs.shape[-1]),
                                        w_ref[p, 2 * dh + dw],
                                        preferred_element_type=jnp.float32)
            halves.append(jnp.tanh(acc + b_ref[...]))
        row = jnp.concatenate(halves, axis=-1)
        o_ref[:, ph, :, :] = row.reshape(h, w, two_cout).astype(o_ref.dtype)


def _bn_relu_kernel(y_ref, sc_ref, sh_ref, o_ref):
    # y * scale + shift, then ReLU (math in f32, store in the activation dtype).
    y = y_ref[...].astype(jnp.float32)
    o_ref[...] = jnp.maximum(y * sc_ref[...] + sh_ref[...], 0.0).astype(o_ref.dtype)


# ---------------------------------------------------------------------------
# Weight rearrangement (tiny tensor, plain JAX):
#   out[2i+ph, 2j+pw] = sum_{dh,dw} xpad[i+ph+dh, j+pw+dw] * w[:, :, kh, kw]
#   with kh = 3 - ph - 2*dh, kw = 3 - pw - 2*dw (derived from oh = 2*ih-1+kh).
# ---------------------------------------------------------------------------
def _build_tap_weights(weight, dtype):
    """(Cin, Cout, 4, 4) -> (4 parities, 4 taps, Cin, Cout)."""
    w = weight.astype(jnp.float32)
    mats = []
    for ph in (0, 1):
        for pw in (0, 1):
            taps = [w[:, :, 3 - ph - 2 * dh, 3 - pw - 2 * dw]
                    for dh in (0, 1) for dw in (0, 1)]        # each (Cin, Cout)
            mats.append(jnp.stack(taps, axis=0))              # (4, Cin, Cout)
    return jnp.stack(mats, axis=0).astype(dtype)              # (4, 4, Cin, Cout)


def generator_block_nhwc(x_nhwc, weight, bias, gamma, beta, *,
                         final_layer=False, mxu_dtype=jnp.bfloat16):
    """GeneratorBlock forward, NHWC in -> NHWC out (chaining entry point)."""
    n, h, w, cin = x_nhwc.shape
    cout = weight.shape[1]
    store_dtype = (jnp.float32 if jnp.dtype(mxu_dtype) == jnp.dtype(jnp.float32)
                   else jnp.bfloat16)

    # Cast FIRST, then pad: the only materialized conv input is a zero-padded
    # (N, H+2, W+2, Cin) copy in the MXU dtype.
    x_pad = jnp.pad(x_nhwc.astype(mxu_dtype), ((0, 0), (1, 1), (1, 1), (0, 0)))
    hp2, wp2 = h + 2, w + 2

    w_taps = _build_tap_weights(weight, mxu_dtype)            # (4, 4, Cin, Cout)
    b_row = bias.reshape(1, cout).astype(jnp.float32)

    cap = _vmem_cap_bytes()
    itm = jnp.dtype(mxu_dtype).itemsize
    sitm = jnp.dtype(store_dtype).itemsize
    x_blk = hp2 * wp2 * cin * itm
    w_blk = 16 * cin * cout * itm
    o_blk = 4 * h * w * cout * sitm
    temps = 10 * h * w * max(cin, cout) * 4
    conv_limit = int(min(max(2 * (x_blk + w_blk + o_blk) + temps + (4 << 20),
                             32 << 20), cap))
    conv_params = pltpu.CompilerParams(
        dimension_semantics=("parallel",), vmem_limit_bytes=conv_limit)

    in_specs = [
        pl.BlockSpec((None, hp2, wp2, cin), lambda i: (i, 0, 0, 0)),   # x_pad
        pl.BlockSpec((4, 4, cin, cout), lambda i: (0, 0, 0, 0)),       # weights
        pl.BlockSpec((1, cout), lambda i: (0, 0)),                     # bias
    ]
    out_spec_y = pl.BlockSpec((None, h, 2, w, 2 * cout),
                              lambda i: (i, 0, 0, 0, 0))

    if final_layer:
        y = pl.pallas_call(
            _conv_tanh_kernel,
            out_shape=jax.ShapeDtypeStruct((n, h, 2, w, 2 * cout), store_dtype),
            grid=(n,),
            in_specs=in_specs,
            out_specs=out_spec_y,
            compiler_params=conv_params,
        )(x_pad, w_taps, b_row)
        return y.reshape(n, 2 * h, 2 * w, cout)      # free reshape (contiguous)

    y, psum, psumsq = pl.pallas_call(
        _conv_bn_stats_kernel,
        out_shape=(
            jax.ShapeDtypeStruct((n, h, 2, w, 2 * cout), store_dtype),
            jax.ShapeDtypeStruct((n, 1, cout), jnp.float32),
            jax.ShapeDtypeStruct((n, 1, cout), jnp.float32),
        ),
        grid=(n,),
        in_specs=in_specs,
        out_specs=(
            out_spec_y,
            pl.BlockSpec((None, 1, cout), lambda i: (i, 0, 0)),
            pl.BlockSpec((None, 1, cout), lambda i: (i, 0, 0)),
        ),
        compiler_params=conv_params,
    )(x_pad, w_taps, b_row)

    # Finalize BatchNorm batch statistics (training mode, biased variance) from
    # the per-image f32 pre-bias partial sums.
    # TODO(synk): running_mean/running_var (PyTorch BN buffers) are not updated;
    # the forward output does not need them.
    cnt = float(4 * n * h * w)                       # = N * Hout * Wout
    bias_f = bias.astype(jnp.float32)
    mean_nb = jnp.sum(psum[:, 0, :], axis=0) / cnt
    var = jnp.maximum(jnp.sum(psumsq[:, 0, :], axis=0) / cnt - mean_nb * mean_nb, 0.0)
    mean = mean_nb + bias_f
    scale = gamma.astype(jnp.float32) * lax.rsqrt(var + BN_EPS)
    shift = beta.astype(jnp.float32) - mean * scale
    scale2 = jnp.concatenate([scale, scale]).reshape(1, 2 * cout)
    shift2 = jnp.concatenate([shift, shift]).reshape(1, 2 * cout)

    # Tiled, in-place normalize + affine + ReLU over the (free) 2-D view.
    m2 = n * 2 * h * w
    y2 = y.reshape(m2, 2 * cout)
    tm2 = int(min(2048, m2)) if m2 % 8 == 0 else int(m2)
    bn_limit = int(min(max(8 * tm2 * 2 * cout * 4 + (4 << 20), 32 << 20), cap))
    y2 = pl.pallas_call(
        _bn_relu_kernel,
        out_shape=jax.ShapeDtypeStruct((m2, 2 * cout), store_dtype),
        grid=(pl.cdiv(m2, tm2),),
        in_specs=[
            pl.BlockSpec((tm2, 2 * cout), lambda i: (i, 0)),
            pl.BlockSpec((1, 2 * cout), lambda i: (0, 0)),
            pl.BlockSpec((1, 2 * cout), lambda i: (0, 0)),
        ],
        out_specs=pl.BlockSpec((tm2, 2 * cout), lambda i: (i, 0)),
        input_output_aliases={0: 0},                 # normalize in place
        compiler_params=pltpu.CompilerParams(
            dimension_semantics=("parallel",), vmem_limit_bytes=bn_limit),
    )(y2, scale2, shift2)
    return y2.reshape(n, 2 * h, 2 * w, cout)


@functools.partial(jax.jit, static_argnames=("final_layer", "mxu_dtype"))
def generator_block(x_nchw, weight, bias, gamma, beta, *,
                    final_layer=False, mxu_dtype=jnp.bfloat16):
    """PyTorch-layout wrapper: (N, Cin, H, W) -> (N, Cout, 2H, 2W), f32.

    NCHW <-> NHWC conversion happens only at the module boundary; chain blocks
    through generator_block_nhwc to avoid per-block transposes."""
    x_nhwc = jnp.transpose(x_nchw, (0, 2, 3, 1))
    y = generator_block_nhwc(x_nhwc, weight, bias, gamma, beta,
                             final_layer=final_layer, mxu_dtype=mxu_dtype)
    return jnp.transpose(y, (0, 3, 1, 2)).astype(jnp.float32)


# ---------------------------------------------------------------------------
# Pure-JAX reference (for correctness check)
# ---------------------------------------------------------------------------
def reference(x_nchw, weight, bias, gamma, beta, final_layer=False):
    pad = K - 1 - PAD
    rhs = jnp.transpose(jnp.flip(weight, (2, 3)), (1, 0, 2, 3))   # (Cout, Cin, K, K)
    conv = lax.conv_general_dilated(
        x_nchw, rhs, window_strides=(1, 1),
        padding=[(pad, pad), (pad, pad)], lhs_dilation=(STRIDE, STRIDE),
        dimension_numbers=("NCHW", "OIHW", "NCHW"))
    conv = conv + bias.reshape(1, -1, 1, 1)
    if final_layer:
        return jnp.tanh(conv)
    mean = jnp.mean(conv, axis=(0, 2, 3), keepdims=True)
    var = jnp.mean((conv - mean) ** 2, axis=(0, 2, 3), keepdims=True)
    y = (conv - mean) * lax.rsqrt(var + BN_EPS)
    y = y * gamma.reshape(1, -1, 1, 1) + beta.reshape(1, -1, 1, 1)
    return jnp.maximum(y, 0.0)


if __name__ == "__main__":
    key = jax.random.PRNGKey(0)
    kx, kw, kb, kg, kbe = jax.random.split(key, 5)

    N, Cin, H, W, Cout = 2, 8, 8, 8, 16            # output: (2, 16, 16, 16) NCHW
    x = jax.random.normal(kx, (N, Cin, H, W), jnp.float32)

    fan = Cin * K * K
    weight = jax.random.uniform(kw, (Cin, Cout, K, K), jnp.float32, -1.0, 1.0) / jnp.sqrt(fan)
    bias = jax.random.uniform(kb, (Cout,), jnp.float32, -1.0, 1.0) / jnp.sqrt(fan)
    gamma = 1.0 + 0.1 * jax.random.normal(kg, (Cout,), jnp.float32)
    beta = 0.1 * jax.random.normal(kbe, (Cout,), jnp.float32)

    # 1) structural checks: f32 MXU operands + f32 storage vs f32 reference.
    out32 = jax.block_until_ready(
        generator_block(x, weight, bias, gamma, beta,
                        final_layer=False, mxu_dtype=jnp.float32))
    ref32 = reference(x, weight, bias, gamma, beta, final_layer=False)
    assert out32.shape == (N, Cout, 2 * H, 2 * W)
    np.testing.assert_allclose(np.asarray(out32), np.asarray(ref32),
                               rtol=1e-4, atol=1e-4)

    out32f = jax.block_until_ready(
        generator_block(x, weight, bias, gamma, beta,
                        final_layer=True, mxu_dtype=jnp.float32))
    ref32f = reference(x, weight, bias, gamma, beta, final_layer=True)
    np.testing.assert_allclose(np.asarray(out32f), np.asarray(ref32f),
                               rtol=1e-4, atol=1e-4)

    # 2) default fast path: bf16 MXU operands + bf16 activation storage, checked
    #    against a reference fed the same bf16-quantized activations/weights.
    xq = x.astype(jnp.bfloat16).astype(jnp.float32)
    wq = weight.astype(jnp.bfloat16).astype(jnp.float32)
    out_bf = jax.block_until_ready(
        generator_block(x, weight, bias, gamma, beta, final_layer=False))
    ref_bf = reference(xq, wq, bias, gamma, beta, final_layer=False)
    np.testing.assert_allclose(np.asarray(out_bf), np.asarray(ref_bf),
                               rtol=5e-2, atol=5e-2)

    # 3) final block: ConvTranspose2d + Tanh (bf16 fast path).
    out_f = jax.block_until_ready(
        generator_block(x, weight, bias, gamma, beta, final_layer=True))
    ref_f = reference(xq, wq, bias, gamma, beta, final_layer=True)
    np.testing.assert_allclose(np.asarray(out_f), np.asarray(ref_f),
                               rtol=5e-2, atol=5e-2)

    print("KERNEL_OK")
</pallas_src>

<mosaic_0001>
module attributes {stable_mosaic.version = 11 : i64} {
  func.func @_conv_bn_stats_kernel(%arg0: i32, %arg1: memref<1x10x10x8xf32, #tpu.memory_space<vmem>>, %arg2: memref<4x4x8x16xf32, #tpu.memory_space<vmem>>, %arg3: memref<1x16xf32, #tpu.memory_space<vmem>>, %arg4: memref<1x8x2x8x32xf32, #tpu.memory_space<vmem>>, %arg5: memref<1x1x16xf32, #tpu.memory_space<vmem>>, %arg6: memref<1x1x16xf32, #tpu.memory_space<vmem>>) attributes {dimension_semantics = [#tpu.dimension_semantics<parallel>], iteration_bounds = array<i64: 2>, scalar_prefetch = 0 : i64, scratch_operands = 0 : i64, tpu.core_type = #tpu.core_type<tc>, window_params = [{transform_indices = @transform_0, window_bounds = array<i64: 1, 10, 10, 8>}, {pipeline_mode = #tpu.pipeline_mode<synchronous>, transform_indices = @transform_1, window_bounds = array<i64: 4, 4, 8, 16>}, {pipeline_mode = #tpu.pipeline_mode<synchronous>, transform_indices = @transform_2, window_bounds = array<i64: 1, 16>}, {transform_indices = @transform_3, window_bounds = array<i64: 1, 8, 2, 8, 32>}, {transform_indices = @transform_4, window_bounds = array<i64: 1, 1, 16>}, {transform_indices = @transform_5, window_bounds = array<i64: 1, 1, 16>}]} {
    %cst = arith.constant 0.000000e+00 : f32
    %0 = vector.broadcast %cst : f32 to vector<1x16xf32>
    %cst_0 = arith.constant 0.000000e+00 : f32
    %1 = vector.broadcast %cst_0 : f32 to vector<1x16xf32>
    %cst_1 = arith.constant 0.000000e+00 : f32
    %2 = vector.broadcast %cst_1 : f32 to vector<64x16xf32>
    %c0 = arith.constant 0 : index
    %c0_2 = arith.constant 0 : index
    %c0_3 = arith.constant 0 : index
    %c0_4 = arith.constant 0 : index
    %3 = vector.load %arg1[%c0, %c0_2, %c0_3, %c0_4] : memref<1x10x10x8xf32, #tpu.memory_space<vmem>>, vector<1x8x8x8xf32>
    %4 = vector.shape_cast %3 : vector<1x8x8x8xf32> to vector<8x8x8xf32>
    %5 = vector.shape_cast %4 : vector<8x8x8xf32> to vector<64x8xf32>
    %c0_5 = arith.constant 0 : index
    %c0_6 = arith.constant 0 : index
    %c0_7 = arith.constant 0 : index
    %c0_8 = arith.constant 0 : index
    %6 = vector.load %arg2[%c0_5, %c0_6, %c0_7, %c0_8] : memref<4x4x8x16xf32, #tpu.memory_space<vmem>>, vector<1x1x8x16xf32>
    %7 = vector.shape_cast %6 : vector<1x1x8x16xf32> to vector<8x16xf32>
    %cst_9 = arith.constant dense<0.000000e+00> : vector<64x16xf32>
    %8 = tpu.matmul %5, %7, %cst_9 {dimension_numbers = #tpu.dot_dimension_numbers<[1], [0], [0], [1], [0, 0, 1, 1], [], []>} : vector<64x8xf32>, vector<8x16xf32>, vector<64x16xf32> -> vector<64x16xf32>
    %9 = arith.addf %2, %8 : vector<64x16xf32>
    %c0_10 = arith.constant 0 : index
    %c0_11 = arith.constant 0 : index
    %c1 = arith.constant 1 : index
    %c0_12 = arith.constant 0 : index
    %10 = vector.load %arg1[%c0_10, %c0_11, %c1, %c0_12] : memref<1x10x10x8xf32, #tpu.memory_space<vmem>>, vector<1x8x8x8xf32>
    %11 = vector.shape_cast %10 : vector<1x8x8x8xf32> to vector<8x8x8xf32>
    %12 = vector.shape_cast %11 : vector<8x8x8xf32> to vector<64x8xf32>
    %c0_13 = arith.constant 0 : index
    %c1_14 = arith.constant 1 : index
    %c0_15 = arith.constant 0 : index
    %c0_16 = arith.constant 0 : index
    %13 = vector.load %arg2[%c0_13, %c1_14, %c0_15, %c0_16] : memref<4x4x8x16xf32, #tpu.memory_space<vmem>>, vector<1x1x8x16xf32>
    %14 = vector.shape_cast %13 : vector<1x1x8x16xf32> to vector<8x16xf32>
    %cst_17 = arith.constant dense<0.000000e+00> : vector<64x16xf32>
    %15 = tpu.matmul %12, %14, %cst_17 {dimension_numbers = #tpu.dot_dimension_numbers<[1], [0], [0], [1], [0, 0, 1, 1], [], []>} : vector<64x8xf32>, vector<8x16xf32>, vector<64x16xf32> -> vector<64x16xf32>
    %16 = arith.addf %9, %15 : vector<64x16xf32>
    %c0_18 = arith.constant 0 : index
    %c1_19 = arith.constant 1 : index
    %c0_20 = arith.constant 0 : index
    %c0_21 = arith.constant 0 : index
    %17 = vector.load %arg1[%c0_18, %c1_19, %c0_20, %c0_21] : memref<1x10x10x8xf32, #tpu.memory_space<vmem>>, vector<1x8x8x8xf32>
    %18 = vector.shape_cast %17 : vector<1x8x8x8xf32> to vector<8x8x8xf32>
    %19 = vector.shape_cast %18 : vector<8x8x8xf32> to vector<64x8xf32>
    %c0_22 = arith.constant 0 : index
    %c2 = arith.constant 2 : index
    %c0_23 = arith.constant 0 : index
    %c0_24 = arith.constant 0 : index
    %20 = vector.load %arg2[%c0_22, %c2, %c0_23, %c0_24] : memref<4x4x8x16xf32, #tpu.memory_space<vmem>>, vector<1x1x8x16xf32>
    %21 = vector.shape_cast %20 : vector<1x1x8x16xf32> to vector<8x16xf32>
    %cst_25 = arith.constant dense<0.000000e+00> : vector<64x16xf32>
    %22 = tpu.matmul %19, %21, %cst_25 {dimension_numbers = #tpu.dot_dimension_numbers<[1], [0], [0], [1], [0, 0, 1, 1], [], []>} : vector<64x8xf32>, vector<8x16xf32>, vector<64x16xf32> -> vector<64x16xf32>
    %23 = arith.addf %16, %22 : vector<64x16xf32>
    %c0_26 = arith.constant 0 : index
    %c1_27 = arith.constant 1 : index
    %c1_28 = arith.constant 1 : index
    %c0_29 = arith.constant 0 : index
    %24 = vector.load %arg1[%c0_26, %c1_27, %c1_28, %c0_29] : memref<1x10x10x8xf32, #tpu.memory_space<vmem>>, vector<1x8x8x8xf32>
    %25 = vector.shape_cast %24 : vector<1x8x8x8xf32> to vector<8x8x8xf32>
    %26 = vector.shape_cast %25 : vector<8x8x8xf32> to vector<64x8xf32>
    %c0_30 = arith.constant 0 : index
    %c3 = arith.constant 3 : index
    %c0_31 = arith.constant 0 : index
    %c0_32 = arith.constant 0 : index
    %27 = vector.load %arg2[%c0_30, %c3, %c0_31, %c0_32] : memref<4x4x8x16xf32, #tpu.memory_space<vmem>>, vector<1x1x8x16xf32>
    %28 = vector.shape_cast %27 : vector<1x1x8x16xf32> to vector<8x16xf32>
    %cst_33 = arith.constant dense<0.000000e+00> : vector<64x16xf32>
    %29 = tpu.matmul %26, %28, %cst_33 {dimension_numbers = #tpu.dot_dimension_numbers<[1], [0], [0], [1], [0, 0, 1, 1], [], []>} : vector<64x8xf32>, vector<8x16xf32>, vector<64x16xf32> -> vector<64x16xf32>
    %30 = arith.addf %23, %29 : vector<64x16xf32>
    %cst_34 = arith.constant dense<0.000000e+00> : vector<16xf32>
    %31 = vector.multi_reduction <add>, %30, %cst_34 [0] : vector<64x16xf32> to vector<16xf32>
    %32 = vector.shape_cast %31 : vector<16xf32> to vector<1x16xf32>
    %33 = arith.addf %0, %32 : vector<1x16xf32>
    %34 = arith.mulf %30, %30 : vector<64x16xf32>
    %cst_35 = arith.constant dense<0.000000e+00> : vector<16xf32>
    %35 = vector.multi_reduction <add>, %34, %cst_35 [0] : vector<64x16xf32> to vector<16xf32>
    %36 = vector.shape_cast %35 : vector<16xf32> to vector<1x16xf32>
    %37 = arith.addf %1, %36 : vector<1x16xf32>
    %c0_36 = arith.constant 0 : index
    %c0_37 = arith.constant 0 : index
    %38 = vector.load %arg3[%c0_36, %c0_37] : memref<1x16xf32, #tpu.memory_space<vmem>>, vector<1x16xf32>
    %39 = vector.broadcast %38 : vector<1x16xf32> to vector<64x16xf32>
    %40 = arith.addf %30, %39 : vector<64x16xf32>
    %cst_38 = arith.constant 0.000000e+00 : f32
    %41 = vector.broadcast %cst_38 : f32 to vector<64x16xf32>
    %c0_39 = arith.constant 0 : index
    %c0_40 = arith.constant 0 : index
    %c1_41 = arith.constant 1 : index
    %c0_42 = arith.constant 0 : index
    %42 = vector.load %arg1[%c0_39, %c0_40, %c1_41, %c0_42] : memref<1x10x10x8xf32, #tpu.memory_space<vmem>>, vector<1x8x8x8xf32>
    %43 = vector.shape_cast %42 : vector<1x8x8x8xf32> to vector<8x8x8xf32>
    %44 = vector.shape_cast %43 : vector<8x8x8xf32> to vector<64x8xf32>
    %c1_43 = arith.constant 1 : index
    %c0_44 = arith.constant 0 : index
    %c0_45 = arith.constant 0 : index
    %c0_46 = arith.constant 0 : index
    %45 = vector.load %arg2[%c1_43, %c0_44, %c0_45, %c0_46] : memref<4x4x8x16xf32, #tpu.memory_space<vmem>>, vector<1x1x8x16xf32>
    %46 = vector.shape_cast %45 : vector<1x1x8x16xf32> to vector<8x16xf32>
    %cst_47 = arith.constant dense<0.000000e+00> : vector<64x16xf32>
    %47 = tpu.matmul %44, %46, %cst_47 {dimension_numbers = #tpu.dot_dimension_numbers<[1], [0], [0], [1], [0, 0, 1, 1], [], []>} : vector<64x8xf32>, vector<8x16xf32>, vector<64x16xf32> -> vector<64x16xf32>
    %48 = arith.addf %41, %47 : vector<64x16xf32>
    %c0_48 = arith.constant 0 : index
    %c0_49 = arith.constant 0 : index
    %c2_50 = arith.constant 2 : index
    %c0_51 = arith.constant 0 : index
    %49 = vector.load %arg1[%c0_48, %c0_49, %c2_50, %c0_51] : memref<1x10x10x8xf32, #tpu.memory_space<vmem>>, vector<1x8x8x8xf32>
    %50 = vector.shape_cast %49 : vector<1x8x8x8xf32> to vector<8x8x8xf32>
    %51 = vector.shape_cast %50 : vector<8x8x8xf32> to vector<64x8xf32>
    %c1_52 = arith.constant 1 : index
    %c1_53 = arith.constant 1 : index
    %c0_54 = arith.constant 0 : index
    %c0_55 = arith.constant 0 : index
    %52 = vector.load %arg2[%c1_52, %c1_53, %c0_54, %c0_55] : memref<4x4x8x16xf32, #tpu.memory_space<vmem>>, vector<1x1x8x16xf32>
    %53 = vector.shape_cast %52 : vector<1x1x8x16xf32> to vector<8x16xf32>
    %cst_56 = arith.constant dense<0.000000e+00> : vector<64x16xf32>
    %54 = tpu.matmul %51, %53, %cst_56 {dimension_numbers = #tpu.dot_dimension_numbers<[1], [0], [0], [1], [0, 0, 1, 1], [], []>} : vector<64x8xf32>, vector<8x16xf32>, vector<64x16xf32> -> vector<64x16xf32>
    %55 = arith.addf %48, %54 : vector<64x16xf32>
    %c0_57 = arith.constant 0 : index
    %c1_58 = arith.constant 1 : index
    %c1_59 = arith.constant 1 : index
    %c0_60 = arith.constant 0 : index
    %56 = vector.load %arg1[%c0_57, %c1_58, %c1_59, %c0_60] : memref<1x10x10x8xf32, #tpu.memory_space<vmem>>, vector<1x8x8x8xf32>
    %57 = vector.shape_cast %56 : vector<1x8x8x8xf32> to vector<8x8x8xf32>
    %58 = vector.shape_cast %57 : vector<8x8x8xf32> to vector<64x8xf32>
    %c1_61 = arith.constant 1 : index
    %c2_62 = arith.constant 2 : index
    %c0_63 = arith.constant 0 : index
    %c0_64 = arith.constant 0 : index
    %59 = vector.load %arg2[%c1_61, %c2_62, %c0_63, %c0_64] : memref<4x4x8x16xf32, #tpu.memory_space<vmem>>, vector<1x1x8x16xf32>
    %60 = vector.shape_cast %59 : vector<1x1x8x16xf32> to vector<8x16xf32>
    %cst_65 = arith.constant dense<0.000000e+00> : vector<64x16xf32>
    %61 = tpu.matmul %58, %60, %cst_65 {dimension_numbers = #tpu.dot_dimension_numbers<[1], [0], [0], [1], [0, 0, 1, 1], [], []>} : vector<64x8xf32>, vector<8x16xf32>, vector<64x16xf32> -> vector<64x16xf32>
    %62 = arith.addf %55, %61 : vector<64x16xf32>
    %c0_66 = arith.constant 0 : index
    %c1_67 = arith.constant 1 : index
    %c2_68 = arith.constant 2 : index
    %c0_69 = arith.constant 0 : index
    %63 = vector.load %arg1[%c0_66, %c1_67, %c2_68, %c0_69] : memref<1x10x10x8xf32, #tpu.memory_space<vmem>>, vector<1x8x8x8xf32>
    %64 = vector.shape_cast %63 : vector<1x8x8x8xf32> to vector<8x8x8xf32>
    %65 = vector.shape_cast %64 : vector<8x8x8xf32> to vector<64x8xf32>
    %c1_70 = arith.constant 1 : index
    %c3_71 = arith.constant 3 : index
    %c0_72 = arith.constant 0 : index
    %c0_73 = arith.constant 0 : index
    %66 = vector.load %arg2[%c1_70, %c3_71, %c0_72, %c0_73] : memref<4x4x8x16xf32, #tpu.memory_space<vmem>>, vector<1x1x8x16xf32>
    %67 = vector.shape_cast %66 : vector<1x1x8x16xf32> to vector<8x16xf32>
    %cst_74 = arith.constant dense<0.000000e+00> : vector<64x16xf32>
    %68 = tpu.matmul %65, %67, %cst_74 {dimension_numbers = #tpu.dot_dimension_numbers<[1], [0], [0], [1], [0, 0, 1, 1], [], []>} : vector<64x8xf32>, vector<8x16xf32>, vector<64x16xf32> -> vector<64x16xf32>
    %69 = arith.addf %62, %68 : vector<64x16xf32>
    %cst_75 = arith.constant dense<0.000000e+00> : vector<16xf32>
    %70 = vector.multi_reduction <add>, %69, %cst_75 [0] : vector<64x16xf32> to vector<16xf32>
    %71 = vector.shape_cast %70 : vector<16xf32> to vector<1x16xf32>
    %72 = arith.addf %33, %71 : vector<1x16xf32>
    %73 = arith.mulf %69, %69 : vector<64x16xf32>
    %cst_76 = arith.constant dense<0.000000e+00> : vector<16xf32>
    %74 = vector.multi_reduction <add>, %73, %cst_76 [0] : vector<64x16xf32> to vector<16xf32>
    %75 = vector.shape_cast %74 : vector<16xf32> to vector<1x16xf32>
    %76 = arith.addf %37, %75 : vector<1x16xf32>
    %c0_77 = arith.constant 0 : index
    %c0_78 = arith.constant 0 : index
    %77 = vector.load %arg3[%c0_77, %c0_78] : memref<1x16xf32, #tpu.memory_space<vmem>>, vector<1x16xf32>
    %78 = vector.broadcast %77 : vector<1x16xf32> to vector<64x16xf32>
    %79 = arith.addf %69, %78 : vector<64x16xf32>
    %80 = tpu.concatenate %40, %79 in 1 : vector<64x16xf32>, vector<64x16xf32> -> vector<64x32xf32>
    %81 = vector.shape_cast %80 : vector<64x32xf32> to vector<8x8x32xf32>
    %c0_79 = arith.constant 0 : index
    %c0_80 = arith.constant 0 : index
    %c0_81 = arith.constant 0 : index
    %c0_82 = arith.constant 0 : index
    %c0_83 = arith.constant 0 : index
    %82 = vector.load %arg4[%c0_79, %c0_80, %c0_81, %c0_82, %c0_83] : memref<1x8x2x8x32xf32, #tpu.memory_space<vmem>>, vector<1x8x1x8x32xf32>
    %83 = vector.shape_cast %82 : vector<1x8x1x8x32xf32> to vector<8x8x32xf32>
    %84 = vector.shape_cast %81 : vector<8x8x32xf32> to vector<1x8x1x8x32xf32>
    tpu.vector_store %arg4[%c0_79, %c0_80, %c0_81, %c0_82, %c0_83], %84 {strides = array<i32>} : memref<1x8x2x8x32xf32, #tpu.memory_space<vmem>>, vector<1x8x1x8x32xf32>,
    %cst_84 = arith.constant 0.000000e+00 : f32
    %85 = vector.broadcast %cst_84 : f32 to vector<64x16xf32>
    %c0_85 = arith.constant 0 : index
    %c1_86 = arith.constant 1 : index
    %c0_87 = arith.constant 0 : index
    %c0_88 = arith.constant 0 : index
    %86 = vector.load %arg1[%c0_85, %c1_86, %c0_87, %c0_88] : memref<1x10x10x8xf32, #tpu.memory_space<vmem>>, vector<1x8x8x8xf32>
    %87 = vector.shape_cast %86 : vector<1x8x8x8xf32> to vector<8x8x8xf32>
    %88 = vector.shape_cast %87 : vector<8x8x8xf32> to vector<64x8xf32>
    %c2_89 = arith.constant 2 : index
    %c0_90 = arith.constant 0 : index
    %c0_91 = arith.constant 0 : index
    %c0_92 = arith.constant 0 : index
    %89 = vector.load %arg2[%c2_89, %c0_90, %c0_91, %c0_92] : memref<4x4x8x16xf32, #tpu.memory_space<vmem>>, vector<1x1x8x16xf32>
    %90 = vector.shape_cast %89 : vector<1x1x8x16xf32> to vector<8x16xf32>
    %cst_93 = arith.constant dense<0.000000e+00> : vector<64x16xf32>
    %91 = tpu.matmul %88, %90, %cst_93 {dimension_numbers = #tpu.dot_dimension_numbers<[1], [0], [0], [1], [0, 0, 1, 1], [], []>} : vector<64x8xf32>, vector<8x16xf32>, vector<64x16xf32> -> vector<64x16xf32>
    %92 = arith.addf %85, %91 : vector<64x16xf32>
    %c0_94 = arith.constant 0 : index
    %c1_95 = arith.constant 1 : index
    %c1_96 = arith.constant 1 : index
    %c0_97 = arith.constant 0 : index
    %93 = vector.load %arg1[%c0_94, %c1_95, %c1_96, %c0_97] : memref<1x10x10x8xf32, #tpu.memory_space<vmem>>, vector<1x8x8x8xf32>
    %94 = vector.shape_cast %93 : vector<1x8x8x8xf32> to vector<8x8x8xf32>
    %95 = vector.shape_cast %94 : vector<8x8x8xf32> to vector<64x8xf32>
    %c2_98 = arith.constant 2 : index
    %c1_99 = arith.constant 1 : index
    %c0_100 = arith.constant 0 : index
    %c0_101 = arith.constant 0 : index
    %96 = vector.load %arg2[%c2_98, %c1_99, %c0_100, %c0_101] : memref<4x4x8x16xf32, #tpu.memory_space<vmem>>, vector<1x1x8x16xf32>
    %97 = vector.shape_cast %96 : vector<1x1x8x16xf32> to vector<8x16xf32>
    %cst_102 = arith.constant dense<0.000000e+00> : vector<64x16xf32>
    %98 = tpu.matmul %95, %97, %cst_102 {dimension_numbers = #tpu.dot_dimension_numbers<[1], [0], [0], [1], [0, 0, 1, 1], [], []>} : vector<64x8xf32>, vector<8x16xf32>, vector<64x16xf32> -> vector<64x16xf32>
    %99 = arith.addf %92, %98 : vector<64x16xf32>
    %c0_103 = arith.constant 0 : index
    %c2_104 = arith.constant 2 : index
    %c0_105 = arith.constant 0 : index
    %c0_106 = arith.constant 0 : index
    %100 = vector.load %arg1[%c0_103, %c2_104, %c0_105, %c0_106] : memref<1x10x10x8xf32, #tpu.memory_space<vmem>>, vector<1x8x8x8xf32>
    %101 = vector.shape_cast %100 : vector<1x8x8x8xf32> to vector<8x8x8xf32>
    %102 = vector.shape_cast %101 : vector<8x8x8xf32> to vector<64x8xf32>
    %c2_107 = arith.constant 2 : index
    %c2_108 = arith.constant 2 : index
    %c0_109 = arith.constant 0 : index
    %c0_110 = arith.constant 0 : index
    %103 = vector.load %arg2[%c2_107, %c2_108, %c0_109, %c0_110] : memref<4x4x8x16xf32, #tpu.memory_space<vmem>>, vector<1x1x8x16xf32>
    %104 = vector.shape_cast %103 : vector<1x1x8x16xf32> to vector<8x16xf32>
    %cst_111 = arith.constant dense<0.000000e+00> : vector<64x16xf32>
    %105 = tpu.matmul %102, %104, %cst_111 {dimension_numbers = #tpu.dot_dimension_numbers<[1], [0], [0], [1], [0, 0, 1, 1], [], []>} : vector<64x8xf32>, vector<8x16xf32>, vector<64x16xf32> -> vector<64x16xf32>
    %106 = arith.addf %99, %105 : vector<64x16xf32>
    %c0_112 = arith.constant 0 : index
    %c2_113 = arith.constant 2 : index
    %c1_114 = arith.constant 1 : index
    %c0_115 = arith.constant 0 : index
    %107 = vector.load %arg1[%c0_112, %c2_113, %c1_114, %c0_115] : memref<1x10x10x8xf32, #tpu.memory_space<vmem>>, vector<1x8x8x8xf32>
    %108 = vector.shape_cast %107 : vector<1x8x8x8xf32> to vector<8x8x8xf32>
    %109 = vector.shape_cast %108 : vector<8x8x8xf32> to vector<64x8xf32>
    %c2_116 = arith.constant 2 : index
    %c3_117 = arith.constant 3 : index
    %c0_118 = arith.constant 0 : index
    %c0_119 = arith.constant 0 : index
    %110 = vector.load %arg2[%c2_116, %c3_117, %c0_118, %c0_119] : memref<4x4x8x16xf32, #tpu.memory_space<vmem>>, vector<1x1x8x16xf32>
    %111 = vector.shape_cast %110 : vector<1x1x8x16xf32> to vector<8x16xf32>
    %cst_120 = arith.constant dense<0.000000e+00> : vector<64x16xf32>
    %112 = tpu.matmul %109, %111, %cst_120 {dimension_numbers = #tpu.dot_dimension_numbers<[1], [0], [0], [1], [0, 0, 1, 1], [], []>} : vector<64x8xf32>, vector<8x16xf32>, vector<64x16xf32> -> vector<64x16xf32>
    %113 = arith.addf %106, %112 : vector<64x16xf32>
    %cst_121 = arith.constant dense<0.000000e+00> : vector<16xf32>
    %114 = vector.multi_reduction <add>, %113, %cst_121 [0] : vector<64x16xf32> to vector<16xf32>
    %115 = vector.shape_cast %114 : vector<16xf32> to vector<1x16xf32>
    %116 = arith.addf %72, %115 : vector<1x16xf32>
    %117 = arith.mulf %113, %113 : vector<64x16xf32>
    %cst_122 = arith.constant dense<0.000000e+00> : vector<16xf32>
    %118 = vector.multi_reduction <add>, %117, %cst_122 [0] : vector<64x16xf32> to vector<16xf32>
    %119 = vector.shape_cast %118 : vector<16xf32> to vector<1x16xf32>
    %120 = arith.addf %76, %119 : vector<1x16xf32>
    %c0_123 = arith.constant 0 : index
    %c0_124 = arith.constant 0 : index
    %121 = vector.load %arg3[%c0_123, %c0_124] : memref<1x16xf32, #tpu.memory_space<vmem>>, vector<1x16xf32>
    %122 = vector.broadcast %121 : vector<1x16xf32> to vector<64x16xf32>
    %123 = arith.addf %113, %122 : vector<64x16xf32>
    %cst_125 = arith.constant 0.000000e+00 : f32
    %124 = vector.broadcast %cst_125 : f32 to vector<64x16xf32>
    %c0_126 = arith.constant 0 : index
    %c1_127 = arith.constant 1 : index
    %c1_128 = arith.constant 1 : index
    %c0_129 = arith.constant 0 : index
    %125 = vector.load %arg1[%c0_126, %c1_127, %c1_128, %c0_129] : memref<1x10x10x8xf32, #tpu.memory_space<vmem>>, vector<1x8x8x8xf32>
    %126 = vector.shape_cast %125 : vector<1x8x8x8xf32> to vector<8x8x8xf32>
    %127 = vector.shape_cast %126 : vector<8x8x8xf32> to vector<64x8xf32>
    %c3_130 = arith.constant 3 : index
    %c0_131 = arith.constant 0 : index
    %c0_132 = arith.constant 0 : index
    %c0_133 = arith.constant 0 : index
    %128 = vector.load %arg2[%c3_130, %c0_131, %c0_132, %c0_133] : memref<4x4x8x16xf32, #tpu.memory_space<vmem>>, vector<1x1x8x16xf32>
    %129 = vector.shape_cast %128 : vector<1x1x8x16xf32> to vector<8x16xf32>
    %cst_134 = arith.constant dense<0.000000e+00> : vector<64x16xf32>
    %130 = tpu.matmul %127, %129, %cst_134 {dimension_numbers = #tpu.dot_dimension_numbers<[1], [0], [0], [1], [0, 0, 1, 1], [], []>} : vector<64x8xf32>, vector<8x16xf32>, vector<64x16xf32> -> vector<64x16xf32>
    %131 = arith.addf %124, %130 : vector<64x16xf32>
    %c0_135 = arith.constant 0 : index
    %c1_136 = arith.constant 1 : index
    %c2_137 = arith.constant 2 : index
    %c0_138 = arith.constant 0 : index
    %132 = vector.load %arg1[%c0_135, %c1_136, %c2_137, %c0_138] : memref<1x10x10x8xf32, #tpu.memory_space<vmem>>, vector<1x8x8x8xf32>
    %133 = vector.shape_cast %132 : vector<1x8x8x8xf32> to vector<8x8x8xf32>
    %134 = vector.shape_cast %133 : vector<8x8x8xf32> to vector<64x8xf32>
    %c3_139 = arith.constant 3 : index
    %c1_140 = arith.constant 1 : index
    %c0_141 = arith.constant 0 : index
    %c0_142 = arith.constant 0 : index
    %135 = vector.load %arg2[%c3_139, %c1_140, %c0_141, %c0_142] : memref<4x4x8x16xf32, #tpu.memory_space<vmem>>, vector<1x1x8x16xf32>
    %136 = vector.shape_cast %135 : vector<1x1x8x16xf32> to vector<8x16xf32>
    %cst_143 = arith.constant dense<0.000000e+00> : vector<64x16xf32>
    %137 = tpu.matmul %134, %136, %cst_143 {dimension_numbers = #tpu.dot_dimension_numbers<[1], [0], [0], [1], [0, 0, 1, 1], [], []>} : vector<64x8xf32>, vector<8x16xf32>, vector<64x16xf32> -> vector<64x16xf32>
    %138 = arith.addf %131, %137 : vector<64x16xf32>
    %c0_144 = arith.constant 0 : index
    %c2_145 = arith.constant 2 : index
    %c1_146 = arith.constant 1 : index
    %c0_147 = arith.constant 0 : index
    %139 = vector.load %arg1[%c0_144, %c2_145, %c1_146, %c0_147] : memref<1x10x10x8xf32, #tpu.memory_space<vmem>>, vector<1x8x8x8xf32>
    %140 = vector.shape_cast %139 : vector<1x8x8x8xf32> to vector<8x8x8xf32>
    %141 = vector.shape_cast %140 : vector<8x8x8xf32> to vector<64x8xf32>
    %c3_148 = arith.constant 3 : index
    %c2_149 = arith.constant 2 : index
    %c0_150 = arith.constant 0 : index
    %c0_151 = arith.constant 0 : index
    %142 = vector.load %arg2[%c3_148, %c2_149, %c0_150, %c0_151] : memref<4x4x8x16xf32, #tpu.memory_space<vmem>>, vector<1x1x8x16xf32>
    %143 = vector.shape_cast %142 : vector<1x1x8x16xf32> to vector<8x16xf32>
    %cst_152 = arith.constant dense<0.000000e+00> : vector<64x16xf32>
    %144 = tpu.matmul %141, %143, %cst_152 {dimension_numbers = #tpu.dot_dimension_numbers<[1], [0], [0], [1], [0, 0, 1, 1], [], []>} : vector<64x8xf32>, vector<8x16xf32>, vector<64x16xf32> -> vector<64x16xf32>
    %145 = arith.addf %138, %144 : vector<64x16xf32>
    %c0_153 = arith.constant 0 : index
    %c2_154 = arith.constant 2 : index
    %c2_155 = arith.constant 2 : index
    %c0_156 = arith.constant 0 : index
    %146 = vector.load %arg1[%c0_153, %c2_154, %c2_155, %c0_156] : memref<1x10x10x8xf32, #tpu.memory_space<vmem>>, vector<1x8x8x8xf32>
    %147 = vector.shape_cast %146 : vector<1x8x8x8xf32> to vector<8x8x8xf32>
    %148 = vector.shape_cast %147 : vector<8x8x8xf32> to vector<64x8xf32>
    %c3_157 = arith.constant 3 : index
    %c3_158 = arith.constant 3 : index
    %c0_159 = arith.constant 0 : index
    %c0_160 = arith.constant 0 : index
    %149 = vector.load %arg2[%c3_157, %c3_158, %c0_159, %c0_160] : memref<4x4x8x16xf32, #tpu.memory_space<vmem>>, vector<1x1x8x16xf32>
    %150 = vector.shape_cast %149 : vector<1x1x8x16xf32> to vector<8x16xf32>
    %cst_161 = arith.constant dense<0.000000e+00> : vector<64x16xf32>
    %151 = tpu.matmul %148, %150, %cst_161 {dimension_numbers = #tpu.dot_dimension_numbers<[1], [0], [0], [1], [0, 0, 1, 1], [], []>} : vector<64x8xf32>, vector<8x16xf32>, vector<64x16xf32> -> vector<64x16xf32>
    %152 = arith.addf %145, %151 : vector<64x16xf32>
    %cst_162 = arith.constant dense<0.000000e+00> : vector<16xf32>
    %153 = vector.multi_reduction <add>, %152, %cst_162 [0] : vector<64x16xf32> to vector<16xf32>
    %154 = vector.shape_cast %153 : vector<16xf32> to vector<1x16xf32>
    %155 = arith.addf %116, %154 : vector<1x16xf32>
    %156 = arith.mulf %152, %152 : vector<64x16xf32>
    %cst_163 = arith.constant dense<0.000000e+00> : vector<16xf32>
    %157 = vector.multi_reduction <add>, %156, %cst_163 [0] : vector<64x16xf32> to vector<16xf32>
    %158 = vector.shape_cast %157 : vector<16xf32> to vector<1x16xf32>
    %159 = arith.addf %120, %158 : vector<1x16xf32>
    %c0_164 = arith.constant 0 : index
    %c0_165 = arith.constant 0 : index
    %160 = vector.load %arg3[%c0_164, %c0_165] : memref<1x16xf32, #tpu.memory_space<vmem>>, vector<1x16xf32>
    %161 = vector.broadcast %160 : vector<1x16xf32> to vector<64x16xf32>
    %162 = arith.addf %152, %161 : vector<64x16xf32>
    %163 = tpu.concatenate %123, %162 in 1 : vector<64x16xf32>, vector<64x16xf32> -> vector<64x32xf32>
    %164 = vector.shape_cast %163 : vector<64x32xf32> to vector<8x8x32xf32>
    %c0_166 = arith.constant 0 : index
    %c0_167 = arith.constant 0 : index
    %c1_168 = arith.constant 1 : index
    %c0_169 = arith.constant 0 : index
    %c0_170 = arith.constant 0 : index
    %165 = vector.load %arg4[%c0_166, %c0_167, %c1_168, %c0_169, %c0_170] : memref<1x8x2x8x32xf32, #tpu.memory_space<vmem>>, vector<1x8x1x8x32xf32>
    %166 = vector.shape_cast %165 : vector<1x8x1x8x32xf32> to vector<8x8x32xf32>
    %167 = vector.shape_cast %164 : vector<8x8x32xf32> to vector<1x8x1x8x32xf32>
    tpu.vector_store %arg4[%c0_166, %c0_167, %c1_168, %c0_169, %c0_170], %167 {strides = array<i32>} : memref<1x8x2x8x32xf32, #tpu.memory_space<vmem>>, vector<1x8x1x8x32xf32>,
    %c0_171 = arith.constant 0 : index
    %c0_172 = arith.constant 0 : index
    %c0_173 = arith.constant 0 : index
    %168 = vector.load %arg5[%c0_171, %c0_172, %c0_173] : memref<1x1x16xf32, #tpu.memory_space<vmem>>, vector<1x1x16xf32>
    %169 = vector.shape_cast %168 : vector<1x1x16xf32> to vector<1x16xf32>
    %170 = vector.shape_cast %155 : vector<1x16xf32> to vector<1x1x16xf32>
    tpu.vector_store %arg5[%c0_171, %c0_172, %c0_173], %170 {strides = array<i32>} : memref<1x1x16xf32, #tpu.memory_space<vmem>>, vector<1x1x16xf32>,
    %c0_174 = arith.constant 0 : index
    %c0_175 = arith.constant 0 : index
    %c0_176 = arith.constant 0 : index
    %171 = vector.load %arg6[%c0_174, %c0_175, %c0_176] : memref<1x1x16xf32, #tpu.memory_space<vmem>>, vector<1x1x16xf32>
    %172 = vector.shape_cast %171 : vector<1x1x16xf32> to vector<1x16xf32>
    %173 = vector.shape_cast %159 : vector<1x16xf32> to vector<1x1x16xf32>
    tpu.vector_store %arg6[%c0_174, %c0_175, %c0_176], %173 {strides = array<i32>} : memref<1x1x16xf32, #tpu.memory_space<vmem>>, vector<1x1x16xf32>,
    return
  }
  func.func @transform_0(%arg0: i32) -> (i32, i32, i32, i32) {
    %c0_i32 = arith.constant 0 : i32
    %c0_i32_0 = arith.constant 0 : i32
    %c0_i32_1 = arith.constant 0 : i32
    %c0_i32_2 = arith.constant 0 : i32
    return %arg0, %c0_i32, %c0_i32_0, %c0_i32_1 : i32, i32, i32, i32
  }
  func.func @transform_1(%arg0: i32) -> (i32, i32, i32, i32) {
    %c0_i32 = arith.constant 0 : i32
    %c0_i32_0 = arith.constant 0 : i32
    %c0_i32_1 = arith.constant 0 : i32
    %c0_i32_2 = arith.constant 0 : i32
    %c0_i32_3 = arith.constant 0 : i32
    return %c0_i32, %c0_i32_0, %c0_i32_1, %c0_i32_2 : i32, i32, i32, i32
  }
  func.func @transform_2(%arg0: i32) -> (i32, i32) {
    %c0_i32 = arith.constant 0 : i32
    %c0_i32_0 = arith.constant 0 : i32
    %c0_i32_1 = arith.constant 0 : i32
    return %c0_i32, %c0_i32_0 : i32, i32
  }
  func.func @transform_3(%arg0: i32) -> (i32, i32, i32, i32, i32) {
    %c0_i32 = arith.constant 0 : i32
    %c0_i32_0 = arith.constant 0 : i32
    %c0_i32_1 = arith.constant 0 : i32
    %c0_i32_2 = arith.constant 0 : i32
    %c0_i32_3 = arith.constant 0 : i32
    return %arg0, %c0_i32, %c0_i32_0, %c0_i32_1, %c0_i32_2 : i32, i32, i32, i32, i32
  }
  func.func @transform_4(%arg0: i32) -> (i32, i32, i32) {
    %c0_i32 = arith.constant 0 : i32
    %c0_i32_0 = arith.constant 0 : i32
    %c0_i32_1 = arith.constant 0 : i32
    return %arg0, %c0_i32, %c0_i32_0 : i32, i32, i32
  }
  func.func @transform_5(%arg0: i32) -> (i32, i32, i32) {
    %c0_i32 = arith.constant 0 : i32
    %c0_i32_0 = arith.constant 0 : i32
    %c0_i32_1 = arith.constant 0 : i32
    return %arg0, %c0_i32, %c0_i32_0 : i32, i32, i32
  }
}

module attributes {stable_mosaic.version = 11 : i64} {
  func.func @_bn_relu_kernel(%arg0: i32, %arg1: memref<256x32xf32, #tpu.memory_space<vmem>>, %arg2: memref<1x32xf32, #tpu.memory_space<vmem>>, %arg3: memref<1x32xf32, #tpu.memory_space<vmem>>, %arg4: memref<256x32xf32, #tpu.memory_space<vmem>>) attributes {dimension_semantics = [#tpu.dimension_semantics<parallel>], iteration_bounds = array<i64: 1>, scalar_prefetch = 0 : i64, scratch_operands = 0 : i64, tpu.core_type = #tpu.core_type<tc>, window_params = [{transform_indices = @transform_0, window_bounds = array<i64: 256, 32>}, {pipeline_mode = #tpu.pipeline_mode<synchronous>, transform_indices = @transform_1, window_bounds = array<i64: 1, 32>}, {pipeline_mode = #tpu.pipeline_mode<synchronous>, transform_indices = @transform_2, window_bounds = array<i64: 1, 32>}, {transform_indices = @transform_3, window_bounds = array<i64: 256, 32>}]} {
    %c0 = arith.constant 0 : index
    %c0_0 = arith.constant 0 : index
    %0 = vector.load %arg1[%c0, %c0_0] : memref<256x32xf32, #tpu.memory_space<vmem>>, vector<256x32xf32>
    %c0_1 = arith.constant 0 : index
    %c0_2 = arith.constant 0 : index
    %1 = vector.load %arg2[%c0_1, %c0_2] : memref<1x32xf32, #tpu.memory_space<vmem>>, vector<1x32xf32>
    %2 = vector.broadcast %1 : vector<1x32xf32> to vector<256x32xf32>
    %3 = arith.mulf %0, %2 : vector<256x32xf32>
    %c0_3 = arith.constant 0 : index
    %c0_4 = arith.constant 0 : index
    %4 = vector.load %arg3[%c0_3, %c0_4] : memref<1x32xf32, #tpu.memory_space<vmem>>, vector<1x32xf32>
    %5 = vector.broadcast %4 : vector<1x32xf32> to vector<256x32xf32>
    %6 = arith.addf %3, %5 : vector<256x32xf32>
    %cst = arith.constant 0.000000e+00 : f32
    %7 = vector.broadcast %cst : f32 to vector<256x32xf32>
    %8 = arith.maximumf %6, %7 : vector<256x32xf32>
    %c0_5 = arith.constant 0 : index
    %c0_6 = arith.constant 0 : index
    %9 = vector.load %arg4[%c0_5, %c0_6] : memref<256x32xf32, #tpu.memory_space<vmem>>, vector<256x32xf32>
    tpu.vector_store %arg4[%c0_5, %c0_6], %8 {strides = array<i32>} : memref<256x32xf32, #tpu.memory_space<vmem>>, vector<256x32xf32>,
    return
  }
  func.func @transform_0(%arg0: i32) -> (i32, i32) {
    %c0_i32 = arith.constant 0 : i32
    %c0_i32_0 = arith.constant 0 : i32
    return %arg0, %c0_i32 : i32, i32
  }
  func.func @transform_1(%arg0: i32) -> (i32, i32) {
    %c0_i32 = arith.constant 0 : i32
    %c0_i32_0 = arith.constant 0 : i32
    %c0_i32_1 = arith.constant 0 : i32
    return %c0_i32, %c0_i32_0 : i32, i32
  }
  func.func @transform_2(%arg0: i32) -> (i32, i32) {
    %c0_i32 = arith.constant 0 : i32
    %c0_i32_0 = arith.constant 0 : i32
    %c0_i32_1 = arith.constant 0 : i32
    return %c0_i32, %c0_i32_0 : i32, i32
  }
  func.func @transform_3(%arg0: i32) -> (i32, i32) {
    %c0_i32 = arith.constant 0 : i32
    %c0_i32_0 = arith.constant 0 : i32
    return %arg0, %c0_i32 : i32, i32
  }
}

</mosaic_0001>

<llo_original>
// kernel: generator_block.3
$region0: #{generator_block.3}
  #allocation0 [shape = 'u32[]', space=smem, size = 0x4, offset = 0x4, fixed_abs, tag = 'smem constant byte address 0x4 - core index']
  #allocation1 [shape = 'u32[144,128]{1,0:T(1,128)}', space=vmem, size = 0x12000, scoped, tag = 'internal scratch']
  %s0 = inlined_call_operand.vmem [shape: f32[256,32], index: 0, kind: input, shape index: {}, may-alias: {0,3}]
  %s1 = inlined_call_operand.vmem [shape: f32[1,32], index: 1, kind: input, shape index: {}]
  %s2 = inlined_call_operand.vmem [shape: f32[1,32], index: 2, kind: input, shape index: {}]
  %s3 = inlined_call_operand.vmem [shape: f32[256,32], index: 3, kind: output, shape index: {}, may-alias: {0,3}]
  %s4 = sld [smem:[#allocation0]]
  $region22: #{generator_block.3} parent=0
    _
  %s6 = ssub.s32 1, %s4
  %s7 = scalar_select 0, %s6, %s4
  // Predicated region
  $region2: #{generator_block.3} parent=0 // pred_check
    _
  $region3: #{generator_block.3} parent=0 // pred_check_branch
    %9 = sbr.rel (0) target = $region5
  $region4: #{generator_block.3} parent=0 // pred_region
    _
  $region5: #{generator_block.3} parent=0 // pred_fallthru
    _
  // Predicated region
  $region6: #{generator_block.3} parent=0 // pred_check
    _
  $region7: #{generator_block.3} parent=0 // pred_check_branch
    %11 = sbr.rel (0) target = $region9
  $region8: #{generator_block.3} parent=0 // pred_region
    _
  $region9: #{generator_block.3} parent=0 // pred_fallthru
    _
  // Predicated region
  $region10: #{generator_block.3} parent=0 // pred_check
    _
  $region11: #{generator_block.3} parent=0 // pred_check_branch
    %13 = sbr.rel (0) target = $region13
  $region12: #{generator_block.3} parent=0 // pred_region
    _
  $region13: #{generator_block.3} parent=0 // pred_fallthru
    _
  %v14 = vld [vmem:[%s0] sm:$0xff]
  %v15 = vld [vmem:[%s0 + $0x8] sm:$0xff]
  %v16 = vld [vmem:[%s0 + $0x10] sm:$0xff]
  %v17 = vld [vmem:[%s0 + $0x18] sm:$0xff]
  %v18 = vld [vmem:[%s0 + $0x20] sm:$0xff]
  %v19 = vld [vmem:[%s0 + $0x28] sm:$0xff]
  %v20 = vld [vmem:[%s0 + $0x30] sm:$0xff]
  %v21 = vld [vmem:[%s0 + $0x38] sm:$0xff]
  %v22 = vld [vmem:[%s0 + $0x40] sm:$0xff]
  %v23 = vld [vmem:[%s0 + $0x48] sm:$0xff]
  %v24 = vld [vmem:[%s0 + $0x50] sm:$0xff]
  %v25 = vld [vmem:[%s0 + $0x58] sm:$0xff]
  %v26 = vld [vmem:[%s0 + $0x60] sm:$0xff]
  %v27 = vld [vmem:[%s0 + $0x68] sm:$0xff]
  %v28 = vld [vmem:[%s0 + $0x70] sm:$0xff]
  %v29 = vld [vmem:[%s0 + $0x78] sm:$0xff]
  %v30 = vld [vmem:[%s0 + $0x80] sm:$0xff]
  %v31 = vld [vmem:[%s0 + $0x88] sm:$0xff]
  %v32 = vld [vmem:[%s0 + $0x90] sm:$0xff]
  %v33 = vld [vmem:[%s0 + $0x98] sm:$0xff]
  %v34 = vld [vmem:[%s0 + $0xa0] sm:$0xff]
  %v35 = vld [vmem:[%s0 + $0xa8] sm:$0xff]
  %v36 = vld [vmem:[%s0 + $0xb0] sm:$0xff]
  %v37 = vld [vmem:[%s0 + $0xb8] sm:$0xff]
  %v38 = vld [vmem:[%s0 + $0xc0] sm:$0xff]
  %v39 = vld [vmem:[%s0 + $0xc8] sm:$0xff]
  %v40 = vld [vmem:[%s0 + $0xd0] sm:$0xff]
  %v41 = vld [vmem:[%s0 + $0xd8] sm:$0xff]
  %v42 = vld [vmem:[%s0 + $0xe0] sm:$0xff]
  %v43 = vld [vmem:[%s0 + $0xe8] sm:$0xff]
  %v44 = vld [vmem:[%s0 + $0xf0] sm:$0xff]
  %v45 = vld [vmem:[%s0 + $0xf8] sm:$0xff]
  %v46 = vld [vmem:[%s1] sm:$0x1]
  %v48 = vlaneseq
  %v49 = vshrl.u32 %v48, 7
  %v50 = vsub.s32 0, %v49
  %v51 = vrot.slane %v46, %v50
  %v53 = vmul.f32 %v14, %v51
  %v54 = vmul.f32 %v15, %v51
  %v55 = vmul.f32 %v16, %v51
  %v56 = vmul.f32 %v17, %v51
  %v57 = vmul.f32 %v18, %v51
  %v58 = vmul.f32 %v19, %v51
  %v59 = vmul.f32 %v20, %v51
  %v60 = vmul.f32 %v21, %v51
  %v61 = vmul.f32 %v22, %v51
  %v62 = vmul.f32 %v23, %v51
  %v63 = vmul.f32 %v24, %v51
  %v64 = vmul.f32 %v25, %v51
  %v65 = vmul.f32 %v26, %v51
  %v66 = vmul.f32 %v27, %v51
  %v67 = vmul.f32 %v28, %v51
  %v68 = vmul.f32 %v29, %v51
  %v69 = vmul.f32 %v30, %v51
  %v70 = vmul.f32 %v31, %v51
  %v71 = vmul.f32 %v32, %v51
  %v72 = vmul.f32 %v33, %v51
  %v73 = vmul.f32 %v34, %v51
  %v74 = vmul.f32 %v35, %v51
  %v75 = vmul.f32 %v36, %v51
  %v76 = vmul.f32 %v37, %v51
  %v77 = vmul.f32 %v38, %v51
  %v78 = vmul.f32 %v39, %v51
  %v79 = vmul.f32 %v40, %v51
  %v80 = vmul.f32 %v41, %v51
  %v81 = vmul.f32 %v42, %v51
  %v82 = vmul.f32 %v43, %v51
  %v83 = vmul.f32 %v44, %v51
  %v84 = vmul.f32 %v45, %v51
  %v85 = vld [vmem:[%s2] sm:$0x1]
  %v87 = vlaneseq
  %v88 = vshrl.u32 %v87, 7
  %v89 = vsub.s32 0, %v88
  %v90 = vrot.slane %v85, %v89
  %v92 = vadd.f32 %v53, %v90
  %v93 = vadd.f32 %v54, %v90
  %v94 = vadd.f32 %v55, %v90
  %v95 = vadd.f32 %v56, %v90
  %v96 = vadd.f32 %v57, %v90
  %v97 = vadd.f32 %v58, %v90
  %v98 = vadd.f32 %v59, %v90
  %v99 = vadd.f32 %v60, %v90
  %v100 = vadd.f32 %v61, %v90
  %v101 = vadd.f32 %v62, %v90
  %v102 = vadd.f32 %v63, %v90
  %v103 = vadd.f32 %v64, %v90
  %v104 = vadd.f32 %v65, %v90
  %v105 = vadd.f32 %v66, %v90
  %v106 = vadd.f32 %v67, %v90
  %v107 = vadd.f32 %v68, %v90
  %v108 = vadd.f32 %v69, %v90
  %v109 = vadd.f32 %v70, %v90
  %v110 = vadd.f32 %v71, %v90
  %v111 = vadd.f32 %v72, %v90
  %v112 = vadd.f32 %v73, %v90
  %v113 = vadd.f32 %v74, %v90
  %v114 = vadd.f32 %v75, %v90
  %v115 = vadd.f32 %v76, %v90
  %v116 = vadd.f32 %v77, %v90
  %v117 = vadd.f32 %v78, %v90
  %v118 = vadd.f32 %v79, %v90
  %v119 = vadd.f32 %v80, %v90
  %v120 = vadd.f32 %v81, %v90
  %v121 = vadd.f32 %v82, %v90
  %v122 = vadd.f32 %v83, %v90
  %v123 = vadd.f32 %v84, %v90
  %v124 = vmax.f32 %v92, 0.0
  %v125 = vmax.f32 %v93, 0.0
  %v126 = vmax.f32 %v94, 0.0
  %v127 = vmax.f32 %v95, 0.0
  %v128 = vmax.f32 %v96, 0.0
  %v129 = vmax.f32 %v97, 0.0
  %v130 = vmax.f32 %v98, 0.0
  %v131 = vmax.f32 %v99, 0.0
  %v132 = vmax.f32 %v100, 0.0
  %v133 = vmax.f32 %v101, 0.0
  %v134 = vmax.f32 %v102, 0.0
  %v135 = vmax.f32 %v103, 0.0
  %v136 = vmax.f32 %v104, 0.0
  %v137 = vmax.f32 %v105, 0.0
  %v138 = vmax.f32 %v106, 0.0
  %v139 = vmax.f32 %v107, 0.0
  %v140 = vmax.f32 %v108, 0.0
  %v141 = vmax.f32 %v109, 0.0
  %v142 = vmax.f32 %v110, 0.0
  %v143 = vmax.f32 %v111, 0.0
  %v144 = vmax.f32 %v112, 0.0
  %v145 = vmax.f32 %v113, 0.0
  %v146 = vmax.f32 %v114, 0.0
  %v147 = vmax.f32 %v115, 0.0
  %v148 = vmax.f32 %v116, 0.0
  %v149 = vmax.f32 %v117, 0.0
  %v150 = vmax.f32 %v118, 0.0
  %v151 = vmax.f32 %v119, 0.0
  %v152 = vmax.f32 %v120, 0.0
  %v153 = vmax.f32 %v121, 0.0
  %v154 = vmax.f32 %v122, 0.0
  %v155 = vmax.f32 %v123, 0.0
  %vm156 = vcmask 261120
  %157 = vst.msk [vmem:[%s3] sm:$0xff] %vm156, %v124
  %158 = vst.msk [vmem:[%s3 + $0x8] sm:$0xff] %vm156, %v125
  %159 = vst.msk [vmem:[%s3 + $0x10] sm:$0xff] %vm156, %v126
  %160 = vst.msk [vmem:[%s3 + $0x18] sm:$0xff] %vm156, %v127
  %161 = vst.msk [vmem:[%s3 + $0x20] sm:$0xff] %vm156, %v128
  %162 = vst.msk [vmem:[%s3 + $0x28] sm:$0xff] %vm156, %v129
  %163 = vst.msk [vmem:[%s3 + $0x30] sm:$0xff] %vm156, %v130
  %164 = vst.msk [vmem:[%s3 + $0x38] sm:$0xff] %vm156, %v131
  %165 = vst.msk [vmem:[%s3 + $0x40] sm:$0xff] %vm156, %v132
  %166 = vst.msk [vmem:[%s3 + $0x48] sm:$0xff] %vm156, %v133
  %167 = vst.msk [vmem:[%s3 + $0x50] sm:$0xff] %vm156, %v134
  %168 = vst.msk [vmem:[%s3 + $0x58] sm:$0xff] %vm156, %v135
  %169 = vst.msk [vmem:[%s3 + $0x60] sm:$0xff] %vm156, %v136
  %170 = vst.msk [vmem:[%s3 + $0x68] sm:$0xff] %vm156, %v137
  %171 = vst.msk [vmem:[%s3 + $0x70] sm:$0xff] %vm156, %v138
  %172 = vst.msk [vmem:[%s3 + $0x78] sm:$0xff] %vm156, %v139
  %173 = vst.msk [vmem:[%s3 + $0x80] sm:$0xff] %vm156, %v140
  %174 = vst.msk [vmem:[%s3 + $0x88] sm:$0xff] %vm156, %v141
  %175 = vst.msk [vmem:[%s3 + $0x90] sm:$0xff] %vm156, %v142
  %176 = vst.msk [vmem:[%s3 + $0x98] sm:$0xff] %vm156, %v143
  %177 = vst.msk [vmem:[%s3 + $0xa0] sm:$0xff] %vm156, %v144
  %178 = vst.msk [vmem:[%s3 + $0xa8] sm:$0xff] %vm156, %v145
  %179 = vst.msk [vmem:[%s3 + $0xb0] sm:$0xff] %vm156, %v146
  %180 = vst.msk [vmem:[%s3 + $0xb8] sm:$0xff] %vm156, %v147
  %181 = vst.msk [vmem:[%s3 + $0xc0] sm:$0xff] %vm156, %v148
  %182 = vst.msk [vmem:[%s3 + $0xc8] sm:$0xff] %vm156, %v149
  %183 = vst.msk [vmem:[%s3 + $0xd0] sm:$0xff] %vm156, %v150
  %184 = vst.msk [vmem:[%s3 + $0xd8] sm:$0xff] %vm156, %v151
  %185 = vst.msk [vmem:[%s3 + $0xe0] sm:$0xff] %vm156, %v152
  %186 = vst.msk [vmem:[%s3 + $0xe8] sm:$0xff] %vm156, %v153
  %187 = vst.msk [vmem:[%s3 + $0xf0] sm:$0xff] %vm156, %v154
  %188 = vst.msk [vmem:[%s3 + $0xf8] sm:$0xff] %vm156, %v155
  // Predicated region
  $region14: #{generator_block.3} parent=0 // pred_check
    _
  $region15: #{generator_block.3} parent=0 // pred_check_branch
    %190 = sbr.rel (0) target = $region17
  $region16: #{generator_block.3} parent=0 // pred_region
    _
  $region17: #{generator_block.3} parent=0 // pred_fallthru
    _
  // Predicated region
  $region18: #{generator_block.3} parent=0 // pred_check
    _
  $region19: #{generator_block.3} parent=0 // pred_check_branch
    %192 = sbr.rel (0) target = $region21
  $region20: #{generator_block.3} parent=0 // pred_region
    _
  $region21: #{generator_block.3} parent=0 // pred_fallthru
    _

// kernel: generator_block.2
$region0: #{generator_block.2}
  #allocation0 [shape = 'u32[]', space=smem, size = 0x4, offset = 0x4, fixed_abs, tag = 'smem constant byte address 0x4 - core index']
  #allocation1 [shape = 'u32[144,128]{1,0:T(1,128)}', space=vmem, size = 0x12000, scoped, tag = 'internal scratch']
  %s0 = inlined_call_operand.vmem [shape: f32[2,10,10,8], index: 0, kind: input, shape index: {}]
  %s1 = inlined_call_operand.vmem [shape: f32[4,4,8,16], index: 1, kind: input, shape index: {}]
  %s2 = inlined_call_operand.vmem [shape: f32[1,16], index: 2, kind: input, shape index: {}]
  %s3 = inlined_call_operand.vmem [shape: f32[2,8,2,8,32], index: 3, kind: output, shape index: {0}]
  %s4 = inlined_call_operand.vmem [shape: f32[2,1,16], index: 4, kind: output, shape index: {1}]
  %s5 = inlined_call_operand.vmem [shape: f32[2,1,16], index: 5, kind: output, shape index: {2}]
  %6 = xla_tuple %s3, %s4, %s5
  %s7 = sld [smem:[#allocation0]]
  $region61: #{generator_block.2} parent=0
    _
  %s9 = ssub.s32 1, %s7
  %s10 = scalar_select 0, %s9, %s7
  loop: start=0, step=1, limit=4
  $region2: #{generator_block.2} parent=0 // loop_pre_header
    _
  $region3: #{generator_block.2} parent=0 // loop_header
    %s12 = sphi 0, %s16
    %p13 = scmp.ge.s32.totalorder %s12, 4
    %s22 = sphi 0, %s24
    %s25 = sphi 0, %s22
    %s26 = sphi 0, %s25
    %s42 = sphi 0, %s26
    %s46 = sphi 0, %s46
    %s48 = sphi 0, %s46
    %s49 = sphi 0, %s48
    %s63 = sphi 0, %s49
    %s67 = sphi 0, %s67
    %s69 = sphi 0, %s67
    %s70 = sphi 0, %s69
    %s84 = sphi 0, %s70
    %s90 = sphi 0, %s92
    %s93 = sphi 0, %s90
    %s94 = sphi 0, %s93
    %s110 = sphi 0, %s94
    %s116 = sphi 0, %s118
    %s119 = sphi 0, %s116
    %s120 = sphi 0, %s119
    %s136 = sphi 0, %s120
    %s142 = sphi 0, %s144
    %s145 = sphi 0, %s142
    %s146 = sphi 0, %s145
    %s162 = sphi 0, %s146
  $region4: #{generator_block.2} parent=0 // loop_header_branch
    %15 = sbr.rel (%p13) target = $region8
  $region5: #{generator_block.2} parent=0 // loop_body
    %s17 = ssub.s32 %s12, 1
    %s18 = ssub.s32 %s12, 2
    %s19 = sadd.s32 %s12, 1
    %s20 = ssub.s32 %s12, %s19
    %p21 = scmp.eq.s32.totalorder %s20, 0
    %s23 = sadd.s32 %s22, 1
    %s24 = scalar_select %p21, %s22, %s23
    %p27 = pneg %p21
    %p28 = scmp.eq.s32.totalorder %s12, 1
    %p29 = por %p27, %p28
    %p30 = scmp.ne.s32.totalorder %s22, %s25
    %p31 = scmp.eq.s32.totalorder %s12, 0
    %p32 = por %p30, %p31
    %p33 = scmp.ne.s32.totalorder %s22, %s25
    %p34 = scmp.eq.s32.totalorder %s17, 1
    %p35 = por %p33, %p34
    %p36 = scmp.ne.s32.totalorder %s25, %s26
    %p37 = scmp.eq.s32.totalorder %s17, 0
    %p38 = por %p36, %p37
    %p39 = scmp.ne.s32.totalorder %s25, %s26
    %p40 = scmp.eq.s32.totalorder %s18, 1
    %p41 = por %p39, %p40
    %p43 = scmp.ne.s32.totalorder %s26, %s42
    %p44 = scmp.eq.s32.totalorder %s18, 0
    %p45 = por %p43, %p44
    %s47 = sadd.s32 %s46, 1
    %p50 = scmp.eq.s32.totalorder %s12, 1
    %p51 = scmp.ne.s32.totalorder %s46, %s48
    %p52 = scmp.eq.s32.totalorder %s12, 0
    %p53 = por %p51, %p52
    %p54 = scmp.ne.s32.totalorder %s46, %s48
    %p55 = scmp.eq.s32.totalorder %s17, 1
    %p56 = por %p54, %p55
    %p57 = scmp.ne.s32.totalorder %s48, %s49
    %p58 = scmp.eq.s32.totalorder %s17, 0
    %p59 = por %p57, %p58
    %p60 = scmp.ne.s32.totalorder %s48, %s49
    %p61 = scmp.eq.s32.totalorder %s18, 1
    %p62 = por %p60, %p61
    %p64 = scmp.ne.s32.totalorder %s49, %s63
    %p65 = scmp.eq.s32.totalorder %s18, 0
    %p66 = por %p64, %p65
    %s68 = sadd.s32 %s67, 1
    %p71 = scmp.eq.s32.totalorder %s12, 1
    %p72 = scmp.ne.s32.totalorder %s67, %s69
    %p73 = scmp.eq.s32.totalorder %s12, 0
    %p74 = por %p72, %p73
    %p75 = scmp.ne.s32.totalorder %s67, %s69
    %p76 = scmp.eq.s32.totalorder %s17, 1
    %p77 = por %p75, %p76
    %p78 = scmp.ne.s32.totalorder %s69, %s70
    %p79 = scmp.eq.s32.totalorder %s17, 0
    %p80 = por %p78, %p79
    %p81 = scmp.ne.s32.totalorder %s69, %s70
    %p82 = scmp.eq.s32.totalorder %s18, 1
    %p83 = por %p81, %p82
    %p85 = scmp.ne.s32.totalorder %s70, %s84
    %p86 = scmp.eq.s32.totalorder %s18, 0
    %p87 = por %p85, %p86
    %s88 = ssub.s32 %s12, %s19
    %p89 = scmp.eq.s32.totalorder %s88, 0
    %s91 = sadd.s32 %s90, 1
    %s92 = scalar_select %p89, %s90, %s91
    %p95 = pneg %p89
    %p96 = scmp.eq.s32.totalorder %s12, 1
    %p97 = por %p95, %p96
    %p98 = scmp.ne.s32.totalorder %s90, %s93
    %p99 = scmp.eq.s32.totalorder %s12, 0
    %p100 = por %p98, %p99
    %p101 = scmp.ne.s32.totalorder %s90, %s93
    %p102 = scmp.eq.s32.totalorder %s17, 1
    %p103 = por %p101, %p102
    %p104 = scmp.ne.s32.totalorder %s93, %s94
    %p105 = scmp.eq.s32.totalorder %s17, 0
    %p106 = por %p104, %p105
    %p107 = scmp.ne.s32.totalorder %s93, %s94
    %p108 = scmp.eq.s32.totalorder %s18, 1
    %p109 = por %p107, %p108
    %p111 = scmp.ne.s32.totalorder %s94, %s110
    %p112 = scmp.eq.s32.totalorder %s18, 0
    %p113 = por %p111, %p112
    %s114 = ssub.s32 %s12, %s19
    %p115 = scmp.eq.s32.totalorder %s114, 0
    %s117 = sadd.s32 %s116, 1
    %s118 = scalar_select %p115, %s116, %s117
    %p121 = pneg %p115
    %p122 = scmp.eq.s32.totalorder %s12, 1
    %p123 = por %p121, %p122
    %p124 = scmp.ne.s32.totalorder %s116, %s119
    %p125 = scmp.eq.s32.totalorder %s12, 0
    %p126 = por %p124, %p125
    %p127 = scmp.ne.s32.totalorder %s116, %s119
    %p128 = scmp.eq.s32.totalorder %s17, 1
    %p129 = por %p127, %p128
    %p130 = scmp.ne.s32.totalorder %s119, %s120
    %p131 = scmp.eq.s32.totalorder %s17, 0
    %p132 = por %p130, %p131
    %p133 = scmp.ne.s32.totalorder %s119, %s120
    %p134 = scmp.eq.s32.totalorder %s18, 1
    %p135 = por %p133, %p134
    %p137 = scmp.ne.s32.totalorder %s120, %s136
    %p138 = scmp.eq.s32.totalorder %s18, 0
    %p139 = por %p137, %p138
    %s140 = ssub.s32 %s12, %s19
    %p141 = scmp.eq.s32.totalorder %s140, 0
    %s143 = sadd.s32 %s142, 1
    %s144 = scalar_select %p141, %s142, %s143
    %p147 = pneg %p141
    %p148 = scmp.eq.s32.totalorder %s12, 1
    %p149 = por %p147, %p148
    %p150 = scmp.ne.s32.totalorder %s142, %s145
    %p151 = scmp.eq.s32.totalorder %s12, 0
    %p152 = por %p150, %p151
    %p153 = scmp.ne.s32.totalorder %s142, %s145
    %p154 = scmp.eq.s32.totalorder %s17, 1
    %p155 = por %p153, %p154
    %p156 = scmp.ne.s32.totalorder %s145, %s146
    %p157 = scmp.eq.s32.totalorder %s17, 0
    %p158 = por %p156, %p157
    %p159 = scmp.ne.s32.totalorder %s145, %s146
    %p160 = scmp.eq.s32.totalorder %s18, 1
    %p161 = por %p159, %p160
    %p163 = scmp.ne.s32.totalorder %s146, %s162
    %p164 = scmp.eq.s32.totalorder %s18, 0
    %p165 = por %p163, %p164
    %p166 = scmp.le.s32.totalorder 1, %s12
    %p167 = scmp.lt.s32.totalorder %s12, 3
    %p168 = pnand %p166, %p167
    %p169 = pneg %p168
    // Predicated region
    $region9: #{generator_block.2} parent=5 // pred_check
      _
    $region10: #{generator_block.2} parent=5 // pred_check_branch
      %171 = sbr.rel (%p168) target = $region12
    $region11: #{generator_block.2} parent=5 // pred_region
      %s172 = ssub.s32 %s12, 1
      // Predicated region
      $region13: #{generator_block.2} parent=11 // pred_check
        %p173 = pneg %p59
      $region14: #{generator_block.2} parent=11 // pred_check_branch
        %175 = sbr.rel (%p173) target = $region16
      $region15: #{generator_block.2} parent=11 // pred_region
        _
      $region16: #{generator_block.2} parent=11 // pred_fallthru
        _
      // Predicated region
      $region17: #{generator_block.2} parent=11 // pred_check
        %p176 = pneg %p80
      $region18: #{generator_block.2} parent=11 // pred_check_branch
        %178 = sbr.rel (%p176) target = $region20
      $region19: #{generator_block.2} parent=11 // pred_region
        _
      $region20: #{generator_block.2} parent=11 // pred_fallthru
        _
    $region12: #{generator_block.2} parent=5 // pred_fallthru
      _
    %p179 = scmp.lt.s32.totalorder %s12, 2
    // Predicated region
    $region21: #{generator_block.2} parent=5 // pred_check
      %p180 = pneg %p179
    $region22: #{generator_block.2} parent=5 // pred_check_branch
      %182 = sbr.rel (%p180) target = $region24
    $region23: #{generator_block.2} parent=5 // pred_region
      // Predicated region
      $region25: #{generator_block.2} parent=23 // pred_check
        %p183 = pneg %p32
      $region26: #{generator_block.2} parent=23 // pred_check_branch
        %185 = sbr.rel (%p183) target = $region28
      $region27: #{generator_block.2} parent=23 // pred_region
        %p186 = scmp.lt.s32.totalorder %s12, 1
        %s187 = scalar_select %p186, %s12, 1
        %s188 = smul.addr %s187, 20
        %s189 = smul.addr %s188, 8
        %s190 = scalar_lea.vmem %s0, %s189
      $region28: #{generator_block.2} parent=23 // pred_fallthru
        _
    $region24: #{generator_block.2} parent=5 // pred_fallthru
      _
    %p191 = scmp.le.s32.totalorder 1, %s12
    %p192 = scmp.lt.s32.totalorder %s12, 3
    %p193 = pnand %p191, %p192
    %p194 = pneg %p193
    // Predicated region
    $region29: #{generator_block.2} parent=5 // pred_check
      _
    $region30: #{generator_block.2} parent=5 // pred_check_branch
      %196 = sbr.rel (%p193) target = $region32
    $region31: #{generator_block.2} parent=5 // pred_region
      %s197 = ssub.s32 %s12, 1
      %p198 = scmp.lt.s32.totalorder %s17, 1
      %s199 = scalar_select %p198, %s17, 1
      %s200 = smul.addr %s199, 20
      %s201 = smul.addr %s200, 8
      %s202 = scalar_lea.vmem %s0, %s201
      %p203 = pneg %p38
      %p204 = pneg %p35
      %p205 = pneg %p59
      %p206 = pneg %p56
      %p207 = pneg %p80
      %p208 = pneg %p77
      %p209 = pneg %p106
      %p210 = pneg %p103
      %p211 = scmp.lt.s32.totalorder %s17, 1
      %s212 = scalar_select %p211, %s17, 1
      %s213 = smul.addr %s212, 16
      %s214 = smul.addr %s213, 8
      %s215 = scalar_lea.vmem %s3, %s214
      %p216 = pneg %p132
      %p217 = pneg %p129
      %p218 = scmp.lt.s32.totalorder %s17, 1
      %s219 = scalar_select %p218, %s17, 1
      %s220 = scalar_lea.vmem %s4, %s219
      %p221 = pneg %p158
      %p222 = pneg %p155
      %p223 = scmp.lt.s32.totalorder %s17, 1
      %s224 = scalar_select %p223, %s17, 1
      %s225 = scalar_lea.vmem %s5, %s224
      %p226 = scmp.lt.s32.totalorder %s17, 1
      %s227 = scalar_select %p226, %s17, 1
      %s228 = smul.addr %s227, 20
      %s229 = smul.addr %s228, 8
      %s230 = scalar_lea.vmem %s0, %s229
      %p231 = scmp.lt.s32.totalorder %s17, 1
      %s232 = scalar_select %p231, %s17, 1
      %s233 = smul.addr %s232, 16
      %s234 = smul.addr %s233, 8
      %s235 = scalar_lea.vmem %s3, %s234
      %p236 = scmp.lt.s32.totalorder %s17, 1
      %s237 = scalar_select %p236, %s17, 1
      %s238 = scalar_lea.vmem %s4, %s237
      %p239 = scmp.lt.s32.totalorder %s17, 1
      %s240 = scalar_select %p239, %s17, 1
      %s241 = scalar_lea.vmem %s5, %s240
      %v242 = vld [vmem:[%s230] sm:$0xff]
      %v243 = vld [vmem:[%s230 + $0x10] sm:$0xff]
      %v244 = vld [vmem:[%s230 + $0x20] sm:$0xff]
      %v245 = vld [vmem:[%s230 + $0x30] sm:$0xff]
      %v246 = vld [vmem:[%s230 + $0x40] sm:$0xff]
      %v247 = vld [vmem:[%s230 + $0x50] sm:$0xff]
      %v248 = vld [vmem:[%s230 + $0x60] sm:$0xff]
      %v249 = vld [vmem:[%s230 + $0x70] sm:$0xff]
      %v250 = vld [vmem:[%s1] sm:$0xff]
      %v251 = vld [vmem:[%s230 + $0x1] sm:$0xff]
      %v252 = vld [vmem:[%s230 + $0x11] sm:$0xff]
      %v253 = vld [vmem:[%s230 + $0x21] sm:$0xff]
      %v254 = vld [vmem:[%s230 + $0x31] sm:$0xff]
      %v255 = vld [vmem:[%s230 + $0x41] sm:$0xff]
      %v256 = vld [vmem:[%s230 + $0x51] sm:$0xff]
      %v257 = vld [vmem:[%s230 + $0x61] sm:$0xff]
      %v258 = vld [vmem:[%s230 + $0x71] sm:$0xff]
      %s259 = scalar_lea.vmem %s1, 8
      %v260 = vld [vmem:[%s259] sm:$0xff]
      %vm261 = vcmask 64512
      %v263 = vsel %vm261, %v251, 0
      %v266 = vsel %vm261, %v252, 0
      %v269 = vsel %vm261, %v253, 0
      %v272 = vsel %vm261, %v254, 0
      %v275 = vsel %vm261, %v255, 0
      %v278 = vsel %vm261, %v256, 0
      %v281 = vsel %vm261, %v257, 0
      %v284 = vsel %vm261, %v258, 0
      %286 = vmatprep.subr.mxu0 0.0
      %287 = vmatpush1.msra.mxu0 %v260
      %288 = vmatprep.subr.mxu0 0.0
      %289 = vmatpush1.msra.mxu0 0.0
      %290 = vmatprep.subr.mxu0 0.0
      %291 = vmatpush1.msra.mxu0 0.0
      %292 = vmatprep.subr.mxu0 0.0
      %293 = vmatpush1.msra.mxu0 0.0
      %294 = vmatprep.subr.mxu0 0.0
      %295 = vmatpush1.msra.mxu0 0.0
      %296 = vmatprep.subr.mxu0 0.0
      %297 = vmatpush1.msra.mxu0 0.0
      %298 = vmatprep.subr.mxu0 0.0
      %299 = vmatpush1.msra.mxu0 0.0
      %300 = vmatprep.subr.mxu0 0.0
      %301 = vmatpush1.msra.mxu0 0.0
      %302 = vmatprep.subr.mxu0 0.0
      %303 = vmatpush1.msra.mxu0 0.0
      %304 = vmatprep.subr.mxu0 0.0
      %305 = vmatpush1.msra.mxu0 0.0
      %306 = vmatprep.subr.mxu0 0.0
      %307 = vmatpush1.msra.mxu0 0.0
      %308 = vmatprep.subr.mxu0 0.0
      %309 = vmatpush1.msra.mxu0 0.0
      %310 = vmatprep.subr.mxu0 0.0
      %311 = vmatpush1.msra.mxu0 0.0
      %312 = vmatprep.subr.mxu0 0.0
      %313 = vmatpush1.msra.mxu0 0.0
      %314 = vmatprep.subr.mxu0 0.0
      %315 = vmatpush1.msra.mxu0 0.0
      %316 = vmatprep.subr.mxu0 0.0
      %317 = vmatpush1.msra.mxu0 0.0
      %318 = vmatprep.subr.mxu0 0.0
      %319 = vmatpush1.msra.mxu0 0.0
      %320 = vmatprep.subr.mxu0 0.0
      %321 = vmatpush1.msra.mxu0 0.0
      %322 = vmatprep.subr.mxu0 0.0
      %323 = vmatpush1.msra.mxu0 0.0
      %324 = vmatprep.subr.mxu0 0.0
      %325 = vmatpush1.msra.mxu0 0.0
      %326 = vmatprep.subr.mxu0 0.0
      %327 = vmatpush1.msra.mxu0 0.0
      %328 = vmatprep.subr.mxu0 0.0
      %329 = vmatpush1.msra.mxu0 0.0
      %330 = vmatprep.subr.mxu0 0.0
      %331 = vmatpush1.msra.mxu0 0.0
      %332 = vmatprep.subr.mxu0 0.0
      %333 = vmatpush1.msra.mxu0 0.0
      %334 = vmatprep.subr.mxu0 0.0
      %335 = vmatpush1.msra.mxu0 0.0
      %336 = vmatprep.subr.mxu0 0.0
      %337 = vmatpush1.msra.mxu0 0.0
      %338 = vmatprep.subr.mxu0 0.0
      %339 = vmatpush1.msra.mxu0 0.0
      %340 = vmatprep.subr.mxu0 0.0
      %341 = vmatpush1.msra.mxu0 0.0
      %342 = vmatprep.subr.mxu0 0.0
      %343 = vmatpush1.msra.mxu0 0.0
      %344 = vmatprep.subr.mxu0 0.0
      %345 = vmatpush1.msra.mxu0 0.0
      %346 = vmatprep.subr.mxu0 0.0
      %347 = vmatpush1.msra.mxu0 0.0
      %348 = vmatprep.subr.mxu0 0.0
      %349 = vmatpush1.msra.mxu0 0.0
      %350 = vmatprep.mubr.f32.mxu0 0.0
      %351 = vmatmul.mubr.f32.gmra.mrb[0].mxu0 %v263
      %v352 = vpop.f32.mrb[0].mxu0
      %v353 = vadd.f32 0.0, %v352
      %v354 = vpop.f32.mrb[0].mxu0
      %355 = vmatprep.mubr.f32.mxu0 0.0
      %356 = vmatmul.mubr.f32.gmra.mrb[0].mxu0 %v266
      %v357 = vpop.f32.mrb[0].mxu0
      %v358 = vadd.f32 0.0, %v357
      %v359 = vpop.f32.mrb[0].mxu0
      %360 = vmatprep.mubr.f32.mxu0 0.0
      %361 = vmatmul.mubr.f32.gmra.mrb[0].mxu0 %v269
      %v362 = vpop.f32.mrb[0].mxu0
      %v363 = vadd.f32 0.0, %v362
      %v364 = vpop.f32.mrb[0].mxu0
      %365 = vmatprep.mubr.f32.mxu0 0.0
      %366 = vmatmul.mubr.f32.gmra.mrb[0].mxu0 %v272
      %v367 = vpop.f32.mrb[0].mxu0
      %v368 = vadd.f32 0.0, %v367
      %v369 = vpop.f32.mrb[0].mxu0
      %370 = vmatprep.mubr.f32.mxu0 0.0
      %371 = vmatmul.mubr.f32.gmra.mrb[0].mxu0 %v275
      %v372 = vpop.f32.mrb[0].mxu0
      %v373 = vadd.f32 0.0, %v372
      %v374 = vpop.f32.mrb[0].mxu0
      %375 = vmatprep.mubr.f32.mxu0 0.0
      %376 = vmatmul.mubr.f32.gmra.mrb[0].mxu0 %v278
      %v377 = vpop.f32.mrb[0].mxu0
      %v378 = vadd.f32 0.0, %v377
      %v379 = vpop.f32.mrb[0].mxu0
      %380 = vmatprep.mubr.f32.mxu0 0.0
      %381 = vmatmul.mubr.f32.gmra.mrb[0].mxu0 %v281
      %v382 = vpop.f32.mrb[0].mxu0
      %v383 = vadd.f32 0.0, %v382
      %v384 = vpop.f32.mrb[0].mxu0
      %385 = vmatprep.mubr.f32.mxu0 0.0
      %386 = vmatmul.mubr.f32.gmra.mrb[0].mxu0 %v284
      %v387 = vpop.f32.mrb[0].mxu0
      %v388 = vadd.f32 0.0, %v387
      %v389 = vpop.f32.mrb[0].mxu0
      %390 = vdwg.mxu0
      %v392 = vsel %vm261, %v242, 0
      %v395 = vsel %vm261, %v243, 0
      %v398 = vsel %vm261, %v244, 0
      %v401 = vsel %vm261, %v245, 0
      %v404 = vsel %vm261, %v246, 0
      %v407 = vsel %vm261, %v247, 0
      %v410 = vsel %vm261, %v248, 0
      %v413 = vsel %vm261, %v249, 0
      %415 = vmatprep.subr.mxu0 0.0
      %416 = vmatpush1.msra.mxu0 %v250
      %417 = vmatprep.subr.mxu0 0.0
      %418 = vmatpush1.msra.mxu0 0.0
      %419 = vmatprep.subr.mxu0 0.0
      %420 = vmatpush1.msra.mxu0 0.0
      %421 = vmatprep.subr.mxu0 0.0
      %422 = vmatpush1.msra.mxu0 0.0
      %423 = vmatprep.subr.mxu0 0.0
      %424 = vmatpush1.msra.mxu0 0.0
      %425 = vmatprep.subr.mxu0 0.0
      %426 = vmatpush1.msra.mxu0 0.0
      %427 = vmatprep.subr.mxu0 0.0
      %428 = vmatpush1.msra.mxu0 0.0
      %429 = vmatprep.subr.mxu0 0.0
      %430 = vmatpush1.msra.mxu0 0.0
      %431 = vmatprep.subr.mxu0 0.0
      %432 = vmatpush1.msra.mxu0 0.0
      %433 = vmatprep.subr.mxu0 0.0
      %434 = vmatpush1.msra.mxu0 0.0
      %435 = vmatprep.subr.mxu0 0.0
      %436 = vmatpush1.msra.mxu0 0.0
      %437 = vmatprep.subr.mxu0 0.0
      %438 = vmatpush1.msra.mxu0 0.0
      %439 = vmatprep.subr.mxu0 0.0
      %440 = vmatpush1.msra.mxu0 0.0
      %441 = vmatprep.subr.mxu0 0.0
      %442 = vmatpush1.msra.mxu0 0.0
      %443 = vmatprep.subr.mxu0 0.0
      %444 = vmatpush1.msra.mxu0 0.0
      %445 = vmatprep.subr.mxu0 0.0
      %446 = vmatpush1.msra.mxu0 0.0
      %447 = vmatprep.subr.mxu0 0.0
      %448 = vmatpush1.msra.mxu0 0.0
      %449 = vmatprep.subr.mxu0 0.0
      %450 = vmatpush1.msra.mxu0 0.0
      %451 = vmatprep.subr.mxu0 0.0
      %452 = vmatpush1.msra.mxu0 0.0
      %453 = vmatprep.subr.mxu0 0.0
      %454 = vmatpush1.msra.mxu0 0.0
      %455 = vmatprep.subr.mxu0 0.0
      %456 = vmatpush1.msra.mxu0 0.0
      %457 = vmatprep.subr.mxu0 0.0
      %458 = vmatpush1.msra.mxu0 0.0
      %459 = vmatprep.subr.mxu0 0.0
      %460 = vmatpush1.msra.mxu0 0.0
      %461 = vmatprep.subr.mxu0 0.0
      %462 = vmatpush1.msra.mxu0 0.0
      %463 = vmatprep.subr.mxu0 0.0
      %464 = vmatpush1.msra.mxu0 0.0
      %465 = vmatprep.subr.mxu0 0.0
      %466 = vmatpush1.msra.mxu0 0.0
      %467 = vmatprep.subr.mxu0 0.0
      %468 = vmatpush1.msra.mxu0 0.0
      %469 = vmatprep.subr.mxu0 0.0
      %470 = vmatpush1.msra.mxu0 0.0
      %471 = vmatprep.subr.mxu0 0.0
      %472 = vmatpush1.msra.mxu0 0.0
      %473 = vmatprep.subr.mxu0 0.0
      %474 = vmatpush1.msra.mxu0 0.0
      %475 = vmatprep.subr.mxu0 0.0
      %476 = vmatpush1.msra.mxu0 0.0
      %477 = vmatprep.subr.mxu0 0.0
      %478 = vmatpush1.msra.mxu0 0.0
      %479 = vmatprep.mubr.f32.mxu0 0.0
      %480 = vmatmul.mubr.f32.gmra.mrb[0].mxu0 %v392
      %v481 = vpop.f32.mrb[0].mxu0
      %v482 = vadd.f32 %v353, %v481
      %v483 = vpop.f32.mrb[0].mxu0
      %484 = vmatprep.mubr.f32.mxu0 0.0
      %485 = vmatmul.mubr.f32.gmra.mrb[0].mxu0 %v395
      %v486 = vpop.f32.mrb[0].mxu0
      %v487 = vadd.f32 %v358, %v486
      %v488 = vpop.f32.mrb[0].mxu0
      %489 = vmatprep.mubr.f32.mxu0 0.0
      %490 = vmatmul.mubr.f32.gmra.mrb[0].mxu0 %v398
      %v491 = vpop.f32.mrb[0].mxu0
      %v492 = vadd.f32 %v363, %v491
      %v493 = vpop.f32.mrb[0].mxu0
      %494 = vmatprep.mubr.f32.mxu0 0.0
      %495 = vmatmul.mubr.f32.gmra.mrb[0].mxu0 %v401
      %v496 = vpop.f32.mrb[0].mxu0
      %v497 = vadd.f32 %v368, %v496
      %v498 = vpop.f32.mrb[0].mxu0
      %499 = vmatprep.mubr.f32.mxu0 0.0
      %500 = vmatmul.mubr.f32.gmra.mrb[0].mxu0 %v404
      %v501 = vpop.f32.mrb[0].mxu0
      %v502 = vadd.f32 %v373, %v501
      %v503 = vpop.f32.mrb[0].mxu0
      %504 = vmatprep.mubr.f32.mxu0 0.0
      %505 = vmatmul.mubr.f32.gmra.mrb[0].mxu0 %v407
      %v506 = vpop.f32.mrb[0].mxu0
      %v507 = vadd.f32 %v378, %v506
      %v508 = vpop.f32.mrb[0].mxu0
      %509 = vmatprep.mubr.f32.mxu0 0.0
      %510 = vmatmul.mubr.f32.gmra.mrb[0].mxu0 %v410
      %v511 = vpop.f32.mrb[0].mxu0
      %v512 = vadd.f32 %v383, %v511
      %v513 = vpop.f32.mrb[0].mxu0
      %514 = vmatprep.mubr.f32.mxu0 0.0
      %515 = vmatmul.mubr.f32.gmra.mrb[0].mxu0 %v413
      %v516 = vpop.f32.mrb[0].mxu0
      %v517 = vadd.f32 %v388, %v516
      %v518 = vpop.f32.mrb[0].mxu0
      %519 = vdwg.mxu0
      %s520 = scalar_lea.vmem %s230, 16
      %v521 = vld [vmem:[%s520] sm:$0xff]
      %v522 = vld [vmem:[%s520 + $0x10] sm:$0xff]
      %v523 = vld [vmem:[%s520 + $0x20] sm:$0xff]
      %v524 = vld [vmem:[%s520 + $0x30] sm:$0xff]
      %v525 = vld [vmem:[%s520 + $0x40] sm:$0xff]
      %v526 = vld [vmem:[%s520 + $0x50] sm:$0xff]
      %v527 = vld [vmem:[%s520 + $0x60] sm:$0xff]
      %v528 = vld [vmem:[%s520 + $0x70] sm:$0xff]
      %s529 = scalar_lea.vmem %s1, 16
      %v530 = vld [vmem:[%s529] sm:$0xff]
      %v532 = vsel %vm261, %v521, 0
      %v535 = vsel %vm261, %v522, 0
      %v538 = vsel %vm261, %v523, 0
      %v541 = vsel %vm261, %v524, 0
      %v544 = vsel %vm261, %v525, 0
      %v547 = vsel %vm261, %v526, 0
      %v550 = vsel %vm261, %v527, 0
      %v553 = vsel %vm261, %v528, 0
      %555 = vmatprep.subr.mxu0 0.0
      %556 = vmatpush1.msra.mxu0 %v530
      %557 = vmatprep.subr.mxu0 0.0
      %558 = vmatpush1.msra.mxu0 0.0
      %559 = vmatprep.subr.mxu0 0.0
      %560 = vmatpush1.msra.mxu0 0.0
      %561 = vmatprep.subr.mxu0 0.0
      %562 = vmatpush1.msra.mxu0 0.0
      %563 = vmatprep.subr.mxu0 0.0
      %564 = vmatpush1.msra.mxu0 0.0
      %565 = vmatprep.subr.mxu0 0.0
      %566 = vmatpush1.msra.mxu0 0.0
      %567 = vmatprep.subr.mxu0 0.0
      %568 = vmatpush1.msra.mxu0 0.0
      %569 = vmatprep.subr.mxu0 0.0
      %570 = vmatpush1.msra.mxu0 0.0
      %571 = vmatprep.subr.mxu0 0.0
      %572 = vmatpush1.msra.mxu0 0.0
      %573 = vmatprep.subr.mxu0 0.0
      %574 = vmatpush1.msra.mxu0 0.0
      %575 = vmatprep.subr.mxu0 0.0
      %576 = vmatpush1.msra.mxu0 0.0
      %577 = vmatprep.subr.mxu0 0.0
      %578 = vmatpush1.msra.mxu0 0.0
      %579 = vmatprep.subr.mxu0 0.0
      %580 = vmatpush1.msra.mxu0 0.0
      %581 = vmatprep.subr.mxu0 0.0
      %582 = vmatpush1.msra.mxu0 0.0
      %583 = vmatprep.subr.mxu0 0.0
      %584 = vmatpush1.msra.mxu0 0.0
      %585 = vmatprep.subr.mxu0 0.0
      %586 = vmatpush1.msra.mxu0 0.0
      %587 = vmatprep.subr.mxu0 0.0
      %588 = vmatpush1.msra.mxu0 0.0
      %589 = vmatprep.subr.mxu0 0.0
      %590 = vmatpush1.msra.mxu0 0.0
      %591 = vmatprep.subr.mxu0 0.0
      %592 = vmatpush1.msra.mxu0 0.0
      %593 = vmatprep.subr.mxu0 0.0
      %594 = vmatpush1.msra.mxu0 0.0
      %595 = vmatprep.subr.mxu0 0.0
      %596 = vmatpush1.msra.mxu0 0.0
      %597 = vmatprep.subr.mxu0 0.0
      %598 = vmatpush1.msra.mxu0 0.0
      %599 = vmatprep.subr.mxu0 0.0
      %600 = vmatpush1.msra.mxu0 0.0
      %601 = vmatprep.subr.mxu0 0.0
      %602 = vmatpush1.msra.mxu0 0.0
      %603 = vmatprep.subr.mxu0 0.0
      %604 = vmatpush1.msra.mxu0 0.0
      %605 = vmatprep.subr.mxu0 0.0
      %606 = vmatpush1.msra.mxu0 0.0
      %607 = vmatprep.subr.mxu0 0.0
      %608 = vmatpush1.msra.mxu0 0.0
      %609 = vmatprep.subr.mxu0 0.0
      %610 = vmatpush1.msra.mxu0 0.0
      %611 = vmatprep.subr.mxu0 0.0
      %612 = vmatpush1.msra.mxu0 0.0
      %613 = vmatprep.subr.mxu0 0.0
      %614 = vmatpush1.msra.mxu0 0.0
      %615 = vmatprep.subr.mxu0 0.0
      %616 = vmatpush1.msra.mxu0 0.0
      %617 = vmatprep.subr.mxu0 0.0
      %618 = vmatpush1.msra.mxu0 0.0
      %619 = vmatprep.mubr.f32.mxu0 0.0
      %620 = vmatmul.mubr.f32.gmra.mrb[0].mxu0 %v532
      %v621 = vpop.f32.mrb[0].mxu0
      %v622 = vadd.f32 0.0, %v621
      %v623 = vpop.f32.mrb[0].mxu0
      %624 = vmatprep.mubr.f32.mxu0 0.0
      %625 = vmatmul.mubr.f32.gmra.mrb[0].mxu0 %v535
      %v626 = vpop.f32.mrb[0].mxu0
      %v627 = vadd.f32 0.0, %v626
      %v628 = vpop.f32.mrb[0].mxu0
      %629 = vmatprep.mubr.f32.mxu0 0.0
      %630 = vmatmul.mubr.f32.gmra.mrb[0].mxu0 %v538
      %v631 = vpop.f32.mrb[0].mxu0
      %v632 = vadd.f32 0.0, %v631
      %v633 = vpop.f32.mrb[0].mxu0
      %634 = vmatprep.mubr.f32.mxu0 0.0
      %635 = vmatmul.mubr.f32.gmra.mrb[0].mxu0 %v541
      %v636 = vpop.f32.mrb[0].mxu0
      %v637 = vadd.f32 0.0, %v636
      %v638 = vpop.f32.mrb[0].mxu0
      %639 = vmatprep.mubr.f32.mxu0 0.0
      %640 = vmatmul.mubr.f32.gmra.mrb[0].mxu0 %v544
      %v641 = vpop.f32.mrb[0].mxu0
      %v642 = vadd.f32 0.0, %v641
      %v643 = vpop.f32.mrb[0].mxu0
      %644 = vmatprep.mubr.f32.mxu0 0.0
      %645 = vmatmul.mubr.f32.gmra.mrb[0].mxu0 %v547
      %v646 = vpop.f32.mrb[0].mxu0
      %v647 = vadd.f32 0.0, %v646
      %v648 = vpop.f32.mrb[0].mxu0
      %649 = vmatprep.mubr.f32.mxu0 0.0
      %650 = vmatmul.mubr.f32.gmra.mrb[0].mxu0 %v550
      %v651 = vpop.f32.mrb[0].mxu0
      %v652 = vadd.f32 0.0, %v651
      %v653 = vpop.f32.mrb[0].mxu0
      %654 = vmatprep.mubr.f32.mxu0 0.0
      %655 = vmatmul.mubr.f32.gmra.mrb[0].mxu0 %v553
      %v656 = vpop.f32.mrb[0].mxu0
      %v657 = vadd.f32 0.0, %v656
      %v658 = vpop.f32.mrb[0].mxu0
      %659 = vdwg.mxu0
      %v660 = vadd.f32 %v482, %v622
      %v661 = vadd.f32 %v487, %v627
      %v662 = vadd.f32 %v492, %v632
      %v663 = vadd.f32 %v497, %v637
      %v664 = vadd.f32 %v502, %v642
      %v665 = vadd.f32 %v507, %v647
      %v666 = vadd.f32 %v512, %v652
      %v667 = vadd.f32 %v517, %v657
      %v668 = vld [vmem:[%s520 + $0x1] sm:$0xff]
      %v669 = vld [vmem:[%s520 + $0x11] sm:$0xff]
      %v670 = vld [vmem:[%s520 + $0x21] sm:$0xff]
      %v671 = vld [vmem:[%s520 + $0x31] sm:$0xff]
      %v672 = vld [vmem:[%s520 + $0x41] sm:$0xff]
      %v673 = vld [vmem:[%s520 + $0x51] sm:$0xff]
      %v674 = vld [vmem:[%s520 + $0x61] sm:$0xff]
      %v675 = vld [vmem:[%s520 + $0x71] sm:$0xff]
      %s676 = scalar_lea.vmem %s1, 24
      %v677 = vld [vmem:[%s676] sm:$0xff]
      %v679 = vsel %vm261, %v668, 0
      %v682 = vsel %vm261, %v669, 0
      %v685 = vsel %vm261, %v670, 0
      %v688 = vsel %vm261, %v671, 0
      %v691 = vsel %vm261, %v672, 0
      %v694 = vsel %vm261, %v673, 0
      %v697 = vsel %vm261, %v674, 0
      %v700 = vsel %vm261, %v675, 0
      %702 = vmatprep.subr.mxu0 0.0
      %703 = vmatpush1.msra.mxu0 %v677
      %704 = vmatprep.subr.mxu0 0.0
      %705 = vmatpush1.msra.mxu0 0.0
      %706 = vmatprep.subr.mxu0 0.0
      %707 = vmatpush1.msra.mxu0 0.0
      %708 = vmatprep.subr.mxu0 0.0
      %709 = vmatpush1.msra.mxu0 0.0
      %710 = vmatprep.subr.mxu0 0.0
      %711 = vmatpush1.msra.mxu0 0.0
      %712 = vmatprep.subr.mxu0 0.0
      %713 = vmatpush1.msra.mxu0 0.0
      %714 = vmatprep.subr.mxu0 0.0
      %715 = vmatpush1.msra.mxu0 0.0
      %716 = vmatprep.subr.mxu0 0.0
      %717 = vmatpush1.msra.mxu0 0.0
      %718 = vmatprep.subr.mxu0 0.0
      %719 = vmatpush1.msra.mxu0 0.0
      %720 = vmatprep.subr.mxu0 0.0
      %721 = vmatpush1.msra.mxu0 0.0
      %722 = vmatprep.subr.mxu0 0.0
      %723 = vmatpush1.msra.mxu0 0.0
      %724 = vmatprep.subr.mxu0 0.0
      %725 = vmatpush1.msra.mxu0 0.0
      %726 = vmatprep.subr.mxu0 0.0
      %727 = vmatpush1.msra.mxu0 0.0
      %728 = vmatprep.subr.mxu0 0.0
      %729 = vmatpush1.msra.mxu0 0.0
      %730 = vmatprep.subr.mxu0 0.0
      %731 = vmatpush1.msra.mxu0 0.0
      %732 = vmatprep.subr.mxu0 0.0
      %733 = vmatpush1.msra.mxu0 0.0
      %734 = vmatprep.subr.mxu0 0.0
      %735 = vmatpush1.msra.mxu0 0.0
      %736 = vmatprep.subr.mxu0 0.0
      %737 = vmatpush1.msra.mxu0 0.0
      %738 = vmatprep.subr.mxu0 0.0
      %739 = vmatpush1.msra.mxu0 0.0
      %740 = vmatprep.subr.mxu0 0.0
      %741 = vmatpush1.msra.mxu0 0.0
      %742 = vmatprep.subr.mxu0 0.0
      %743 = vmatpush1.msra.mxu0 0.0
      %744 = vmatprep.subr.mxu0 0.0
      %745 = vmatpush1.msra.mxu0 0.0
      %746 = vmatprep.subr.mxu0 0.0
      %747 = vmatpush1.msra.mxu0 0.0
      %748 = vmatprep.subr.mxu0 0.0
      %749 = vmatpush1.msra.mxu0 0.0
      %750 = vmatprep.subr.mxu0 0.0
      %751 = vmatpush1.msra.mxu0 0.0
      %752 = vmatprep.subr.mxu0 0.0
      %753 = vmatpush1.msra.mxu0 0.0
      %754 = vmatprep.subr.mxu0 0.0
      %755 = vmatpush1.msra.mxu0 0.0
      %756 = vmatprep.subr.mxu0 0.0
      %757 = vmatpush1.msra.mxu0 0.0
      %758 = vmatprep.subr.mxu0 0.0
      %759 = vmatpush1.msra.mxu0 0.0
      %760 = vmatprep.subr.mxu0 0.0
      %761 = vmatpush1.msra.mxu0 0.0
      %762 = vmatprep.subr.mxu0 0.0
      %763 = vmatpush1.msra.mxu0 0.0
      %764 = vmatprep.subr.mxu0 0.0
      %765 = vmatpush1.msra.mxu0 0.0
      %766 = vmatprep.mubr.f32.mxu0 0.0
      %767 = vmatmul.mubr.f32.gmra.mrb[0].mxu0 %v679
      %v768 = vpop.f32.mrb[0].mxu0
      %v769 = vadd.f32 0.0, %v768
      %v770 = vpop.f32.mrb[0].mxu0
      %771 = vmatprep.mubr.f32.mxu0 0.0
      %772 = vmatmul.mubr.f32.gmra.mrb[0].mxu0 %v682
      %v773 = vpop.f32.mrb[0].mxu0
      %v774 = vadd.f32 0.0, %v773
      %v775 = vpop.f32.mrb[0].mxu0
      %776 = vmatprep.mubr.f32.mxu0 0.0
      %777 = vmatmul.mubr.f32.gmra.mrb[0].mxu0 %v685
      %v778 = vpop.f32.mrb[0].mxu0
      %v779 = vadd.f32 0.0, %v778
      %v780 = vpop.f32.mrb[0].mxu0
      %781 = vmatprep.mubr.f32.mxu0 0.0
      %782 = vmatmul.mubr.f32.gmra.mrb[0].mxu0 %v688
      %v783 = vpop.f32.mrb[0].mxu0
      %v784 = vadd.f32 0.0, %v783
      %v785 = vpop.f32.mrb[0].mxu0
      %786 = vmatprep.mubr.f32.mxu0 0.0
      %787 = vmatmul.mubr.f32.gmra.mrb[0].mxu0 %v691
      %v788 = vpop.f32.mrb[0].mxu0
      %v789 = vadd.f32 0.0, %v788
      %v790 = vpop.f32.mrb[0].mxu0
      %791 = vmatprep.mubr.f32.mxu0 0.0
      %792 = vmatmul.mubr.f32.gmra.mrb[0].mxu0 %v694
      %v793 = vpop.f32.mrb[0].mxu0
      %v794 = vadd.f32 0.0, %v793
      %v795 = vpop.f32.mrb[0].mxu0
      %796 = vmatprep.mubr.f32.mxu0 0.0
      %797 = vmatmul.mubr.f32.gmra.mrb[0].mxu0 %v697
      %v798 = vpop.f32.mrb[0].mxu0
      %v799 = vadd.f32 0.0, %v798
      %v800 = vpop.f32.mrb[0].mxu0
      %801 = vmatprep.mubr.f32.mxu0 0.0
      %802 = vmatmul.mubr.f32.gmra.mrb[0].mxu0 %v700
      %v803 = vpop.f32.mrb[0].mxu0
      %v804 = vadd.f32 0.0, %v803
      %v805 = vpop.f32.mrb[0].mxu0
      %806 = vdwg.mxu0
      %v807 = vadd.f32 %v660, %v769
      %v808 = vadd.f32 %v661, %v774
      %v809 = vadd.f32 %v662, %v779
      %v810 = vadd.f32 %v663, %v784
      %v811 = vadd.f32 %v664, %v789
      %v812 = vadd.f32 %v665, %v794
      %v813 = vadd.f32 %v666, %v799
      %v814 = vadd.f32 %v667, %v804
      %vm815 = vcmask 130048
      %v816 = vsel %vm815, %v807, 0.0
      %v817 = vsel %vm815, %v808, 0.0
      %v818 = vadd.f32 %v816, %v817
      %v819 = vsel %vm815, %v809, 0.0
      %v820 = vadd.f32 %v818, %v819
      %v821 = vsel %vm815, %v810, 0.0
      %v822 = vadd.f32 %v820, %v821
      %v823 = vsel %vm815, %v811, 0.0
      %v824 = vadd.f32 %v822, %v823
      %v825 = vsel %vm815, %v812, 0.0
      %v826 = vadd.f32 %v824, %v825
      %v827 = vsel %vm815, %v813, 0.0
      %v828 = vadd.f32 %v826, %v827
      %v829 = vsel %vm815, %v814, 0.0
      %v830 = vadd.f32 %v828, %v829
      %v831 = vrot.slane %v830, 4
      %v832 = vadd.f32 %v830, %v831
      %v833 = vrot.slane %v832, 2
      %v834 = vadd.f32 %v832, %v833
      %v835 = vrot.slane %v834, 1
      %v836 = vadd.f32 %v834, %v835
      %v837 = vadd.f32 %v836, 0.0
      %v838 = vmul.f32 %v807, %v807
      %v839 = vmul.f32 %v808, %v808
      %v840 = vmul.f32 %v809, %v809
      %v841 = vmul.f32 %v810, %v810
      %v842 = vmul.f32 %v811, %v811
      %v843 = vmul.f32 %v812, %v812
      %v844 = vmul.f32 %v813, %v813
      %v845 = vmul.f32 %v814, %v814
      %v846 = vsel %vm815, %v838, 0.0
      %v847 = vsel %vm815, %v839, 0.0
      %v848 = vadd.f32 %v846, %v847
      %v849 = vsel %vm815, %v840, 0.0
      %v850 = vadd.f32 %v848, %v849
      %v851 = vsel %vm815, %v841, 0.0
      %v852 = vadd.f32 %v850, %v851
      %v853 = vsel %vm815, %v842, 0.0
      %v854 = vadd.f32 %v852, %v853
      %v855 = vsel %vm815, %v843, 0.0
      %v856 = vadd.f32 %v854, %v855
      %v857 = vsel %vm815, %v844, 0.0
      %v858 = vadd.f32 %v856, %v857
      %v859 = vsel %vm815, %v845, 0.0
      %v860 = vadd.f32 %v858, %v859
      %v861 = vrot.slane %v860, 4
      %v862 = vadd.f32 %v860, %v861
      %v863 = vrot.slane %v862, 2
      %v864 = vadd.f32 %v862, %v863
      %v865 = vrot.slane %v864, 1
      %v866 = vadd.f32 %v864, %v865
      %v867 = vadd.f32 %v866, 0.0
      %v868 = vld [vmem:[%s2] sm:$0x1]
      %v870 = vlaneseq
      %v871 = vshrl.u32 %v870, 7
      %v872 = vsub.s32 0, %v871
      %v873 = vrot.slane %v868, %v872
      %v875 = vadd.f32 %v807, %v873
      %v876 = vadd.f32 %v808, %v873
      %v877 = vadd.f32 %v809, %v873
      %v878 = vadd.f32 %v810, %v873
      %v879 = vadd.f32 %v811, %v873
      %v880 = vadd.f32 %v812, %v873
      %v881 = vadd.f32 %v813, %v873
      %v882 = vadd.f32 %v814, %v873
      %s883 = scalar_lea.vmem %s1, 32
      %v884 = vld [vmem:[%s883] sm:$0xff]
      %v885 = vld [vmem:[%s230 + $0x2] sm:$0xff]
      %v886 = vld [vmem:[%s230 + $0x12] sm:$0xff]
      %v887 = vld [vmem:[%s230 + $0x22] sm:$0xff]
      %v888 = vld [vmem:[%s230 + $0x32] sm:$0xff]
      %v889 = vld [vmem:[%s230 + $0x42] sm:$0xff]
      %v890 = vld [vmem:[%s230 + $0x52] sm:$0xff]
      %v891 = vld [vmem:[%s230 + $0x62] sm:$0xff]
      %v892 = vld [vmem:[%s230 + $0x72] sm:$0xff]
      %s893 = scalar_lea.vmem %s1, 40
      %v894 = vld [vmem:[%s893] sm:$0xff]
      %v896 = vsel %vm261, %v885, 0
      %v899 = vsel %vm261, %v886, 0
      %v902 = vsel %vm261, %v887, 0
      %v905 = vsel %vm261, %v888, 0
      %v908 = vsel %vm261, %v889, 0
      %v911 = vsel %vm261, %v890, 0
      %v914 = vsel %vm261, %v891, 0
      %v917 = vsel %vm261, %v892, 0
      %919 = vmatprep.subr.mxu0 0.0
      %920 = vmatpush1.msra.mxu0 %v894
      %921 = vmatprep.subr.mxu0 0.0
      %922 = vmatpush1.msra.mxu0 0.0
      %923 = vmatprep.subr.mxu0 0.0
      %924 = vmatpush1.msra.mxu0 0.0
      %925 = vmatprep.subr.mxu0 0.0
      %926 = vmatpush1.msra.mxu0 0.0
      %927 = vmatprep.subr.mxu0 0.0
      %928 = vmatpush1.msra.mxu0 0.0
      %929 = vmatprep.subr.mxu0 0.0
      %930 = vmatpush1.msra.mxu0 0.0
      %931 = vmatprep.subr.mxu0 0.0
      %932 = vmatpush1.msra.mxu0 0.0
      %933 = vmatprep.subr.mxu0 0.0
      %934 = vmatpush1.msra.mxu0 0.0
      %935 = vmatprep.subr.mxu0 0.0
      %936 = vmatpush1.msra.mxu0 0.0
      %937 = vmatprep.subr.mxu0 0.0
      %938 = vmatpush1.msra.mxu0 0.0
      %939 = vmatprep.subr.mxu0 0.0
      %940 = vmatpush1.msra.mxu0 0.0
      %941 = vmatprep.subr.mxu0 0.0
      %942 = vmatpush1.msra.mxu0 0.0
      %943 = vmatprep.subr.mxu0 0.0
      %944 = vmatpush1.msra.mxu0 0.0
      %945 = vmatprep.subr.mxu0 0.0
      %946 = vmatpush1.msra.mxu0 0.0
      %947 = vmatprep.subr.mxu0 0.0
      %948 = vmatpush1.msra.mxu0 0.0
      %949 = vmatprep.subr.mxu0 0.0
      %950 = vmatpush1.msra.mxu0 0.0
      %951 = vmatprep.subr.mxu0 0.0
      %952 = vmatpush1.msra.mxu0 0.0
      %953 = vmatprep.subr.mxu0 0.0
      %954 = vmatpush1.msra.mxu0 0.0
      %955 = vmatprep.subr.mxu0 0.0
      %956 = vmatpush1.msra.mxu0 0.0
      %957 = vmatprep.subr.mxu0 0.0
      %958 = vmatpush1.msra.mxu0 0.0
      %959 = vmatprep.subr.mxu0 0.0
      %960 = vmatpush1.msra.mxu0 0.0
      %961 = vmatprep.subr.mxu0 0.0
      %962 = vmatpush1.msra.mxu0 0.0
      %963 = vmatprep.subr.mxu0 0.0
      %964 = vmatpush1.msra.mxu0 0.0
      %965 = vmatprep.subr.mxu0 0.0
      %966 = vmatpush1.msra.mxu0 0.0
      %967 = vmatprep.subr.mxu0 0.0
      %968 = vmatpush1.msra.mxu0 0.0
      %969 = vmatprep.subr.mxu0 0.0
      %970 = vmatpush1.msra.mxu0 0.0
      %971 = vmatprep.subr.mxu0 0.0
      %972 = vmatpush1.msra.mxu0 0.0
      %973 = vmatprep.subr.mxu0 0.0
      %974 = vmatpush1.msra.mxu0 0.0
      %975 = vmatprep.subr.mxu0 0.0
      %976 = vmatpush1.msra.mxu0 0.0
      %977 = vmatprep.subr.mxu0 0.0
      %978 = vmatpush1.msra.mxu0 0.0
      %979 = vmatprep.subr.mxu0 0.0
      %980 = vmatpush1.msra.mxu0 0.0
      %981 = vmatprep.subr.mxu0 0.0
      %982 = vmatpush1.msra.mxu0 0.0
      %983 = vmatprep.mubr.f32.mxu0 0.0
      %984 = vmatmul.mubr.f32.gmra.mrb[0].mxu0 %v896
      %v985 = vpop.f32.mrb[0].mxu0
      %v986 = vadd.f32 0.0, %v985
      %v987 = vpop.f32.mrb[0].mxu0
      %988 = vmatprep.mubr.f32.mxu0 0.0
      %989 = vmatmul.mubr.f32.gmra.mrb[0].mxu0 %v899
      %v990 = vpop.f32.mrb[0].mxu0
      %v991 = vadd.f32 0.0, %v990
      %v992 = vpop.f32.mrb[0].mxu0
      %993 = vmatprep.mubr.f32.mxu0 0.0
      %994 = vmatmul.mubr.f32.gmra.mrb[0].mxu0 %v902
      %v995 = vpop.f32.mrb[0].mxu0
      %v996 = vadd.f32 0.0, %v995
      %v997 = vpop.f32.mrb[0].mxu0
      %998 = vmatprep.mubr.f32.mxu0 0.0
      %999 = vmatmul.mubr.f32.gmra.mrb[0].mxu0 %v905
      %v1000 = vpop.f32.mrb[0].mxu0
      %v1001 = vadd.f32 0.0, %v1000
      %v1002 = vpop.f32.mrb[0].mxu0
      %1003 = vmatprep.mubr.f32.mxu0 0.0
      %1004 = vmatmul.mubr.f32.gmra.mrb[0].mxu0 %v908
      %v1005 = vpop.f32.mrb[0].mxu0
      %v1006 = vadd.f32 0.0, %v1005
      %v1007 = vpop.f32.mrb[0].mxu0
      %1008 = vmatprep.mubr.f32.mxu0 0.0
      %1009 = vmatmul.mubr.f32.gmra.mrb[0].mxu0 %v911
      %v1010 = vpop.f32.mrb[0].mxu0
      %v1011 = vadd.f32 0.0, %v1010
      %v1012 = vpop.f32.mrb[0].mxu0
      %1013 = vmatprep.mubr.f32.mxu0 0.0
      %1014 = vmatmul.mubr.f32.gmra.mrb[0].mxu0 %v914
      %v1015 = vpop.f32.mrb[0].mxu0
      %v1016 = vadd.f32 0.0, %v1015
      %v1017 = vpop.f32.mrb[0].mxu0
      %1018 = vmatprep.mubr.f32.mxu0 0.0
      %1019 = vmatmul.mubr.f32.gmra.mrb[0].mxu0 %v917
      %v1020 = vpop.f32.mrb[0].mxu0
      %v1021 = vadd.f32 0.0, %v1020
      %v1022 = vpop.f32.mrb[0].mxu0
      %1023 = vdwg.mxu0
      %1024 = vmatprep.subr.mxu0 0.0
      %1025 = vmatpush1.msra.mxu0 %v884
      %1026 = vmatprep.subr.mxu0 0.0
      %1027 = vmatpush1.msra.mxu0 0.0
      %1028 = vmatprep.subr.mxu0 0.0
      %1029 = vmatpush1.msra.mxu0 0.0
      %1030 = vmatprep.subr.mxu0 0.0
      %1031 = vmatpush1.msra.mxu0 0.0
      %1032 = vmatprep.subr.mxu0 0.0
      %1033 = vmatpush1.msra.mxu0 0.0
      %1034 = vmatprep.subr.mxu0 0.0
      %1035 = vmatpush1.msra.mxu0 0.0
      %1036 = vmatprep.subr.mxu0 0.0
      %1037 = vmatpush1.msra.mxu0 0.0
      %1038 = vmatprep.subr.mxu0 0.0
      %1039 = vmatpush1.msra.mxu0 0.0
      %1040 = vmatprep.subr.mxu0 0.0
      %1041 = vmatpush1.msra.mxu0 0.0
      %1042 = vmatprep.subr.mxu0 0.0
      %1043 = vmatpush1.msra.mxu0 0.0
      %1044 = vmatprep.subr.mxu0 0.0
      %1045 = vmatpush1.msra.mxu0 0.0
      %1046 = vmatprep.subr.mxu0 0.0
      %1047 = vmatpush1.msra.mxu0 0.0
      %1048 = vmatprep.subr.mxu0 0.0
      %1049 = vmatpush1.msra.mxu0 0.0
      %1050 = vmatprep.subr.mxu0 0.0
      %1051 = vmatpush1.msra.mxu0 0.0
      %1052 = vmatprep.subr.mxu0 0.0
      %1053 = vmatpush1.msra.mxu0 0.0
      %1054 = vmatprep.subr.mxu0 0.0
      %1055 = vmatpush1.msra.mxu0 0.0
      %1056 = vmatprep.subr.mxu0 0.0
      %1057 = vmatpush1.msra.mxu0 0.0
      %1058 = vmatprep.subr.mxu0 0.0
      %1059 = vmatpush1.msra.mxu0 0.0
      %1060 = vmatprep.subr.mxu0 0.0
      %1061 = vmatpush1.msra.mxu0 0.0
      %1062 = vmatprep.subr.mxu0 0.0
      %1063 = vmatpush1.msra.mxu0 0.0
      %1064 = vmatprep.subr.mxu0 0.0
      %1065 = vmatpush1.msra.mxu0 0.0
      %1066 = vmatprep.subr.mxu0 0.0
      %1067 = vmatpush1.msra.mxu0 0.0
      %1068 = vmatprep.subr.mxu0 0.0
      %1069 = vmatpush1.msra.mxu0 0.0
      %1070 = vmatprep.subr.mxu0 0.0
      %1071 = vmatpush1.msra.mxu0 0.0
      %1072 = vmatprep.subr.mxu0 0.0
      %1073 = vmatpush1.msra.mxu0 0.0
      %1074 = vmatprep.subr.mxu0 0.0
      %1075 = vmatpush1.msra.mxu0 0.0
      %1076 = vmatprep.subr.mxu0 0.0
      %1077 = vmatpush1.msra.mxu0 0.0
      %1078 = vmatprep.subr.mxu0 0.0
      %1079 = vmatpush1.msra.mxu0 0.0
      %1080 = vmatprep.subr.mxu0 0.0
      %1081 = vmatpush1.msra.mxu0 0.0
      %1082 = vmatprep.subr.mxu0 0.0
      %1083 = vmatpush1.msra.mxu0 0.0
      %1084 = vmatprep.subr.mxu0 0.0
      %1085 = vmatpush1.msra.mxu0 0.0
      %1086 = vmatprep.subr.mxu0 0.0
      %1087 = vmatpush1.msra.mxu0 0.0
      %1088 = vmatprep.mubr.f32.mxu0 0.0
      %1089 = vmatmul.mubr.f32.gmra.mrb[0].mxu0 %v263
      %v1090 = vpop.f32.mrb[0].mxu0
      %v1091 = vadd.f32 %v986, %v1090
      %v1092 = vpop.f32.mrb[0].mxu0
      %1093 = vmatprep.mubr.f32.mxu0 0.0
      %1094 = vmatmul.mubr.f32.gmra.mrb[0].mxu0 %v266
      %v1095 = vpop.f32.mrb[0].mxu0
      %v1096 = vadd.f32 %v991, %v1095
      %v1097 = vpop.f32.mrb[0].mxu0
      %1098 = vmatprep.mubr.f32.mxu0 0.0
      %1099 = vmatmul.mubr.f32.gmra.mrb[0].mxu0 %v269
      %v1100 = vpop.f32.mrb[0].mxu0
      %v1101 = vadd.f32 %v996, %v1100
      %v1102 = vpop.f32.mrb[0].mxu0
      %1103 = vmatprep.mubr.f32.mxu0 0.0
      %1104 = vmatmul.mubr.f32.gmra.mrb[0].mxu0 %v272
      %v1105 = vpop.f32.mrb[0].mxu0
      %v1106 = vadd.f32 %v1001, %v1105
      %v1107 = vpop.f32.mrb[0].mxu0
      %1108 = vmatprep.mubr.f32.mxu0 0.0
      %1109 = vmatmul.mubr.f32.gmra.mrb[0].mxu0 %v275
      %v1110 = vpop.f32.mrb[0].mxu0
      %v1111 = vadd.f32 %v1006, %v1110
      %v1112 = vpop.f32.mrb[0].mxu0
      %1113 = vmatprep.mubr.f32.mxu0 0.0
      %1114 = vmatmul.mubr.f32.gmra.mrb[0].mxu0 %v278
      %v1115 = vpop.f32.mrb[0].mxu0
      %v1116 = vadd.f32 %v1011, %v1115
      %v1117 = vpop.f32.mrb[0].mxu0
      %1118 = vmatprep.mubr.f32.mxu0 0.0
      %1119 = vmatmul.mubr.f32.gmra.mrb[0].mxu0 %v281
      %v1120 = vpop.f32.mrb[0].mxu0
      %v1121 = vadd.f32 %v1016, %v1120
      %v1122 = vpop.f32.mrb[0].mxu0
      %1123 = vmatprep.mubr.f32.mxu0 0.0
      %1124 = vmatmul.mubr.f32.gmra.mrb[0].mxu0 %v284
      %v1125 = vpop.f32.mrb[0].mxu0
      %v1126 = vadd.f32 %v1021, %v1125
      %v1127 = vpop.f32.mrb[0].mxu0
      %1128 = vdwg.mxu0
      %s1129 = scalar_lea.vmem %s1, 48
      %v1130 = vld [vmem:[%s1129] sm:$0xff]
      %1131 = vmatprep.subr.mxu0 0.0
      %1132 = vmatpush1.msra.mxu0 %v1130
      %1133 = vmatprep.subr.mxu0 0.0
      %1134 = vmatpush1.msra.mxu0 0.0
      %1135 = vmatprep.subr.mxu0 0.0
      %1136 = vmatpush1.msra.mxu0 0.0
      %1137 = vmatprep.subr.mxu0 0.0
      %1138 = vmatpush1.msra.mxu0 0.0
      %1139 = vmatprep.subr.mxu0 0.0
      %1140 = vmatpush1.msra.mxu0 0.0
      %1141 = vmatprep.subr.mxu0 0.0
      %1142 = vmatpush1.msra.mxu0 0.0
      %1143 = vmatprep.subr.mxu0 0.0
      %1144 = vmatpush1.msra.mxu0 0.0
      %1145 = vmatprep.subr.mxu0 0.0
      %1146 = vmatpush1.msra.mxu0 0.0
      %1147 = vmatprep.subr.mxu0 0.0
      %1148 = vmatpush1.msra.mxu0 0.0
      %1149 = vmatprep.subr.mxu0 0.0
      %1150 = vmatpush1.msra.mxu0 0.0
      %1151 = vmatprep.subr.mxu0 0.0
      %1152 = vmatpush1.msra.mxu0 0.0
      %1153 = vmatprep.subr.mxu0 0.0
      %1154 = vmatpush1.msra.mxu0 0.0
      %1155 = vmatprep.subr.mxu0 0.0
      %1156 = vmatpush1.msra.mxu0 0.0
      %1157 = vmatprep.subr.mxu0 0.0
      %1158 = vmatpush1.msra.mxu0 0.0
      %1159 = vmatprep.subr.mxu0 0.0
      %1160 = vmatpush1.msra.mxu0 0.0
      %1161 = vmatprep.subr.mxu0 0.0
      %1162 = vmatpush1.msra.mxu0 0.0
      %1163 = vmatprep.subr.mxu0 0.0
      %1164 = vmatpush1.msra.mxu0 0.0
      %1165 = vmatprep.subr.mxu0 0.0
      %1166 = vmatpush1.msra.mxu0 0.0
      %1167 = vmatprep.subr.mxu0 0.0
      %1168 = vmatpush1.msra.mxu0 0.0
      %1169 = vmatprep.subr.mxu0 0.0
      %1170 = vmatpush1.msra.mxu0 0.0
      %1171 = vmatprep.subr.mxu0 0.0
      %1172 = vmatpush1.msra.mxu0 0.0
      %1173 = vmatprep.subr.mxu0 0.0
      %1174 = vmatpush1.msra.mxu0 0.0
      %1175 = vmatprep.subr.mxu0 0.0
      %1176 = vmatpush1.msra.mxu0 0.0
      %1177 = vmatprep.subr.mxu0 0.0
      %1178 = vmatpush1.msra.mxu0 0.0
      %1179 = vmatprep.subr.mxu0 0.0
      %1180 = vmatpush1.msra.mxu0 0.0
      %1181 = vmatprep.subr.mxu0 0.0
      %1182 = vmatpush1.msra.mxu0 0.0
      %1183 = vmatprep.subr.mxu0 0.0
      %1184 = vmatpush1.msra.mxu0 0.0
      %1185 = vmatprep.subr.mxu0 0.0
      %1186 = vmatpush1.msra.mxu0 0.0
      %1187 = vmatprep.subr.mxu0 0.0
      %1188 = vmatpush1.msra.mxu0 0.0
      %1189 = vmatprep.subr.mxu0 0.0
      %1190 = vmatpush1.msra.mxu0 0.0
      %1191 = vmatprep.subr.mxu0 0.0
      %1192 = vmatpush1.msra.mxu0 0.0
      %1193 = vmatprep.subr.mxu0 0.0
      %1194 = vmatpush1.msra.mxu0 0.0
      %1195 = vmatprep.mubr.f32.mxu0 0.0
      %1196 = vmatmul.mubr.f32.gmra.mrb[0].mxu0 %v679
      %v1197 = vpop.f32.mrb[0].mxu0
      %v1198 = vadd.f32 0.0, %v1197
      %v1199 = vpop.f32.mrb[0].mxu0
      %1200 = vmatprep.mubr.f32.mxu0 0.0
      %1201 = vmatmul.mubr.f32.gmra.mrb[0].mxu0 %v682
      %v1202 = vpop.f32.mrb[0].mxu0
      %v1203 = vadd.f32 0.0, %v1202
      %v1204 = vpop.f32.mrb[0].mxu0
      %1205 = vmatprep.mubr.f32.mxu0 0.0
      %1206 = vmatmul.mubr.f32.gmra.mrb[0].mxu0 %v685
      %v1207 = vpop.f32.mrb[0].mxu0
      %v1208 = vadd.f32 0.0, %v1207
      %v1209 = vpop.f32.mrb[0].mxu0
      %1210 = vmatprep.mubr.f32.mxu0 0.0
      %1211 = vmatmul.mubr.f32.gmra.mrb[0].mxu0 %v688
      %v1212 = vpop.f32.mrb[0].mxu0
      %v1213 = vadd.f32 0.0, %v1212
      %v1214 = vpop.f32.mrb[0].mxu0
      %1215 = vmatprep.mubr.f32.mxu0 0.0
      %1216 = vmatmul.mubr.f32.gmra.mrb[0].mxu0 %v691
      %v1217 = vpop.f32.mrb[0].mxu0
      %v1218 = vadd.f32 0.0, %v1217
      %v1219 = vpop.f32.mrb[0].mxu0
      %1220 = vmatprep.mubr.f32.mxu0 0.0
      %1221 = vmatmul.mubr.f32.gmra.mrb[0].mxu0 %v694
      %v1222 = vpop.f32.mrb[0].mxu0
      %v1223 = vadd.f32 0.0, %v1222
      %v1224 = vpop.f32.mrb[0].mxu0
      %1225 = vmatprep.mubr.f32.mxu0 0.0
      %1226 = vmatmul.mubr.f32.gmra.mrb[0].mxu0 %v697
      %v1227 = vpop.f32.mrb[0].mxu0
      %v1228 = vadd.f32 0.0, %v1227
      %v1229 = vpop.f32.mrb[0].mxu0
      %1230 = vmatprep.mubr.f32.mxu0 0.0
      %1231 = vmatmul.mubr.f32.gmra.mrb[0].mxu0 %v700
      %v1232 = vpop.f32.mrb[0].mxu0
      %v1233 = vadd.f32 0.0, %v1232
      %v1234 = vpop.f32.mrb[0].mxu0
      %1235 = vdwg.mxu0
      %v1236 = vadd.f32 %v1091, %v1198
      %v1237 = vadd.f32 %v1096, %v1203
      %v1238 = vadd.f32 %v1101, %v1208
      %v1239 = vadd.f32 %v1106, %v1213
      %v1240 = vadd.f32 %v1111, %v1218
      %v1241 = vadd.f32 %v1116, %v1223
      %v1242 = vadd.f32 %v1121, %v1228
      %v1243 = vadd.f32 %v1126, %v1233
      %v1244 = vld [vmem:[%s520 + $0x2] sm:$0xff]
      %v1245 = vld [vmem:[%s520 + $0x12] sm:$0xff]
      %v1246 = vld [vmem:[%s520 + $0x22] sm:$0xff]
      %v1247 = vld [vmem:[%s520 + $0x32] sm:$0xff]
      %v1248 = vld [vmem:[%s520 + $0x42] sm:$0xff]
      %v1249 = vld [vmem:[%s520 + $0x52] sm:$0xff]
      %v1250 = vld [vmem:[%s520 + $0x62] sm:$0xff]
      %v1251 = vld [vmem:[%s520 + $0x72] sm:$0xff]
      %s1252 = scalar_lea.vmem %s1, 56
      %v1253 = vld [vmem:[%s1252] sm:$0xff]
      %v1255 = vsel %vm261, %v1244, 0
      %v1258 = vsel %vm261, %v1245, 0
      %v1261 = vsel %vm261, %v1246, 0
      %v1264 = vsel %vm261, %v1247, 0
      %v1267 = vsel %vm261, %v1248, 0
      %v1270 = vsel %vm261, %v1249, 0
      %v1273 = vsel %vm261, %v1250, 0
      %v1276 = vsel %vm261, %v1251, 0
      %1278 = vmatprep.subr.mxu0 0.0
      %1279 = vmatpush1.msra.mxu0 %v1253
      %1280 = vmatprep.subr.mxu0 0.0
      %1281 = vmatpush1.msra.mxu0 0.0
      %1282 = vmatprep.subr.mxu0 0.0
      %1283 = vmatpush1.msra.mxu0 0.0
      %1284 = vmatprep.subr.mxu0 0.0
      %1285 = vmatpush1.msra.mxu0 0.0
      %1286 = vmatprep.subr.mxu0 0.0
      %1287 = vmatpush1.msra.mxu0 0.0
      %1288 = vmatprep.subr.mxu0 0.0
      %1289 = vmatpush1.msra.mxu0 0.0
      %1290 = vmatprep.subr.mxu0 0.0
      %1291 = vmatpush1.msra.mxu0 0.0
      %1292 = vmatprep.subr.mxu0 0.0
      %1293 = vmatpush1.msra.mxu0 0.0
      %1294 = vmatprep.subr.mxu0 0.0
      %1295 = vmatpush1.msra.mxu0 0.0
      %1296 = vmatprep.subr.mxu0 0.0
      %1297 = vmatpush1.msra.mxu0 0.0
      %1298 = vmatprep.subr.mxu0 0.0
      %1299 = vmatpush1.msra.mxu0 0.0
      %1300 = vmatprep.subr.mxu0 0.0
      %1301 = vmatpush1.msra.mxu0 0.0
      %1302 = vmatprep.subr.mxu0 0.0
      %1303 = vmatpush1.msra.mxu0 0.0
      %1304 = vmatprep.subr.mxu0 0.0
      %1305 = vmatpush1.msra.mxu0 0.0
      %1306 = vmatprep.subr.mxu0 0.0
      %1307 = vmatpush1.msra.mxu0 0.0
      %1308 = vmatprep.subr.mxu0 0.0
      %1309 = vmatpush1.msra.mxu0 0.0
      %1310 = vmatprep.subr.mxu0 0.0
      %1311 = vmatpush1.msra.mxu0 0.0
      %1312 = vmatprep.subr.mxu0 0.0
      %1313 = vmatpush1.msra.mxu0 0.0
      %1314 = vmatprep.subr.mxu0 0.0
      %1315 = vmatpush1.msra.mxu0 0.0
      %1316 = vmatprep.subr.mxu0 0.0
      %1317 = vmatpush1.msra.mxu0 0.0
      %1318 = vmatprep.subr.mxu0 0.0
      %1319 = vmatpush1.msra.mxu0 0.0
      %1320 = vmatprep.subr.mxu0 0.0
      %1321 = vmatpush1.msra.mxu0 0.0
      %1322 = vmatprep.subr.mxu0 0.0
      %1323 = vmatpush1.msra.mxu0 0.0
      %1324 = vmatprep.subr.mxu0 0.0
      %1325 = vmatpush1.msra.mxu0 0.0
      %1326 = vmatprep.subr.mxu0 0.0
      %1327 = vmatpush1.msra.mxu0 0.0
      %1328 = vmatprep.subr.mxu0 0.0
      %1329 = vmatpush1.msra.mxu0 0.0
      %1330 = vmatprep.subr.mxu0 0.0
      %1331 = vmatpush1.msra.mxu0 0.0
      %1332 = vmatprep.subr.mxu0 0.0
      %1333 = vmatpush1.msra.mxu0 0.0
      %1334 = vmatprep.subr.mxu0 0.0
      %1335 = vmatpush1.msra.mxu0 0.0
      %1336 = vmatprep.subr.mxu0 0.0
      %1337 = vmatpush1.msra.mxu0 0.0
      %1338 = vmatprep.subr.mxu0 0.0
      %1339 = vmatpush1.msra.mxu0 0.0
      %1340 = vmatprep.subr.mxu0 0.0
      %1341 = vmatpush1.msra.mxu0 0.0
      %1342 = vmatprep.mubr.f32.mxu0 0.0
      %1343 = vmatmul.mubr.f32.gmra.mrb[0].mxu0 %v1255
      %v1344 = vpop.f32.mrb[0].mxu0
      %v1345 = vadd.f32 0.0, %v1344
      %v1346 = vpop.f32.mrb[0].mxu0
      %1347 = vmatprep.mubr.f32.mxu0 0.0
      %1348 = vmatmul.mubr.f32.gmra.mrb[0].mxu0 %v1258
      %v1349 = vpop.f32.mrb[0].mxu0
      %v1350 = vadd.f32 0.0, %v1349
      %v1351 = vpop.f32.mrb[0].mxu0
      %1352 = vmatprep.mubr.f32.mxu0 0.0
      %1353 = vmatmul.mubr.f32.gmra.mrb[0].mxu0 %v1261
      %v1354 = vpop.f32.mrb[0].mxu0
      %v1355 = vadd.f32 0.0, %v1354
      %v1356 = vpop.f32.mrb[0].mxu0
      %1357 = vmatprep.mubr.f32.mxu0 0.0
      %1358 = vmatmul.mubr.f32.gmra.mrb[0].mxu0 %v1264
      %v1359 = vpop.f32.mrb[0].mxu0
      %v1360 = vadd.f32 0.0, %v1359
      %v1361 = vpop.f32.mrb[0].mxu0
      %1362 = vmatprep.mubr.f32.mxu0 0.0
      %1363 = vmatmul.mubr.f32.gmra.mrb[0].mxu0 %v1267
      %v1364 = vpop.f32.mrb[0].mxu0
      %v1365 = vadd.f32 0.0, %v1364
      %v1366 = vpop.f32.mrb[0].mxu0
      %1367 = vmatprep.mubr.f32.mxu0 0.0
      %1368 = vmatmul.mubr.f32.gmra.mrb[0].mxu0 %v1270
      %v1369 = vpop.f32.mrb[0].mxu0
      %v1370 = vadd.f32 0.0, %v1369
      %v1371 = vpop.f32.mrb[0].mxu0
      %1372 = vmatprep.mubr.f32.mxu0 0.0
      %1373 = vmatmul.mubr.f32.gmra.mrb[0].mxu0 %v1273
      %v1374 = vpop.f32.mrb[0].mxu0
      %v1375 = vadd.f32 0.0, %v1374
      %v1376 = vpop.f32.mrb[0].mxu0
      %1377 = vmatprep.mubr.f32.mxu0 0.0
      %1378 = vmatmul.mubr.f32.gmra.mrb[0].mxu0 %v1276
      %v1379 = vpop.f32.mrb[0].mxu0
      %v1380 = vadd.f32 0.0, %v1379
      %v1381 = vpop.f32.mrb[0].mxu0
      %1382 = vdwg.mxu0
      %v1383 = vadd.f32 %v1236, %v1345
      %v1384 = vadd.f32 %v1237, %v1350
      %v1385 = vadd.f32 %v1238, %v1355
      %v1386 = vadd.f32 %v1239, %v1360
      %v1387 = vadd.f32 %v1240, %v1365
      %v1388 = vadd.f32 %v1241, %v1370
      %v1389 = vadd.f32 %v1242, %v1375
      %v1390 = vadd.f32 %v1243, %v1380
      %v1391 = vsel %vm815, %v1383, 0.0
      %v1392 = vsel %vm815, %v1384, 0.0
      %v1393 = vadd.f32 %v1391, %v1392
      %v1394 = vsel %vm815, %v1385, 0.0
      %v1395 = vadd.f32 %v1393, %v1394
      %v1396 = vsel %vm815, %v1386, 0.0
      %v1397 = vadd.f32 %v1395, %v1396
      %v1398 = vsel %vm815, %v1387, 0.0
      %v1399 = vadd.f32 %v1397, %v1398
      %v1400 = vsel %vm815, %v1388, 0.0
      %v1401 = vadd.f32 %v1399, %v1400
      %v1402 = vsel %vm815, %v1389, 0.0
      %v1403 = vadd.f32 %v1401, %v1402
      %v1404 = vsel %vm815, %v1390, 0.0
      %v1405 = vadd.f32 %v1403, %v1404
      %v1406 = vrot.slane %v1405, 4
      %v1407 = vadd.f32 %v1405, %v1406
      %v1408 = vrot.slane %v1407, 2
      %v1409 = vadd.f32 %v1407, %v1408
      %v1410 = vrot.slane %v1409, 1
      %v1411 = vadd.f32 %v1409, %v1410
      %v1412 = vadd.f32 %v837, %v1411
      %v1413 = vmul.f32 %v1383, %v1383
      %v1414 = vmul.f32 %v1384, %v1384
      %v1415 = vmul.f32 %v1385, %v1385
      %v1416 = vmul.f32 %v1386, %v1386
      %v1417 = vmul.f32 %v1387, %v1387
      %v1418 = vmul.f32 %v1388, %v1388
      %v1419 = vmul.f32 %v1389, %v1389
      %v1420 = vmul.f32 %v1390, %v1390
      %v1421 = vsel %vm815, %v1413, 0.0
      %v1422 = vsel %vm815, %v1414, 0.0
      %v1423 = vadd.f32 %v1421, %v1422
      %v1424 = vsel %vm815, %v1415, 0.0
      %v1425 = vadd.f32 %v1423, %v1424
      %v1426 = vsel %vm815, %v1416, 0.0
      %v1427 = vadd.f32 %v1425, %v1426
      %v1428 = vsel %vm815, %v1417, 0.0
      %v1429 = vadd.f32 %v1427, %v1428
      %v1430 = vsel %vm815, %v1418, 0.0
      %v1431 = vadd.f32 %v1429, %v1430
      %v1432 = vsel %vm815, %v1419, 0.0
      %v1433 = vadd.f32 %v1431, %v1432
      %v1434 = vsel %vm815, %v1420, 0.0
      %v1435 = vadd.f32 %v1433, %v1434
      %v1436 = vrot.slane %v1435, 4
      %v1437 = vadd.f32 %v1435, %v1436
      %v1438 = vrot.slane %v1437, 2
      %v1439 = vadd.f32 %v1437, %v1438
      %v1440 = vrot.slane %v1439, 1
      %v1441 = vadd.f32 %v1439, %v1440
      %v1442 = vadd.f32 %v867, %v1441
      %v1443 = vadd.f32 %v1383, %v873
      %v1444 = vadd.f32 %v1384, %v873
      %v1445 = vadd.f32 %v1385, %v873
      %v1446 = vadd.f32 %v1386, %v873
      %v1447 = vadd.f32 %v1387, %v873
      %v1448 = vadd.f32 %v1388, %v873
      %v1449 = vadd.f32 %v1389, %v873
      %v1450 = vadd.f32 %v1390, %v873
      %1459 = vrot.lane.b32.xlu0 %v1443, 16
      %v1460 = vpop.permute.xlu0 %1459
      %1461 = vrot.lane.b32.xlu0 %v1444, 16
      %v1462 = vpop.permute.xlu0 %1461
      %1463 = vrot.lane.b32.xlu0 %v1445, 16
      %v1464 = vpop.permute.xlu0 %1463
      %1465 = vrot.lane.b32.xlu0 %v1446, 16
      %v1466 = vpop.permute.xlu0 %1465
      %1467 = vrot.lane.b32.xlu0 %v1447, 16
      %v1468 = vpop.permute.xlu0 %1467
      %1469 = vrot.lane.b32.xlu0 %v1448, 16
      %v1470 = vpop.permute.xlu0 %1469
      %1471 = vrot.lane.b32.xlu0 %v1449, 16
      %v1472 = vpop.permute.xlu0 %1471
      %1473 = vrot.lane.b32.xlu0 %v1450, 16
      %v1474 = vpop.permute.xlu0 %1473
      %v1483 = vsel %vm815, %v875, %v1460
      %v1484 = vsel %vm815, %v876, %v1462
      %v1485 = vsel %vm815, %v877, %v1464
      %v1486 = vsel %vm815, %v878, %v1466
      %v1487 = vsel %vm815, %v879, %v1468
      %v1488 = vsel %vm815, %v880, %v1470
      %v1489 = vsel %vm815, %v881, %v1472
      %v1490 = vsel %vm815, %v882, %v1474
      %vm1491 = vcmask 261120
      %1492 = vst.msk [vmem:[%s235] sm:$0xff] %vm1491, %v1483
      %1493 = vst.msk [vmem:[%s235 + $0x10] sm:$0xff] %vm1491, %v1484
      %1494 = vst.msk [vmem:[%s235 + $0x20] sm:$0xff] %vm1491, %v1485
      %1495 = vst.msk [vmem:[%s235 + $0x30] sm:$0xff] %vm1491, %v1486
      %1496 = vst.msk [vmem:[%s235 + $0x40] sm:$0xff] %vm1491, %v1487
      %1497 = vst.msk [vmem:[%s235 + $0x50] sm:$0xff] %vm1491, %v1488
      %1498 = vst.msk [vmem:[%s235 + $0x60] sm:$0xff] %vm1491, %v1489
      %1499 = vst.msk [vmem:[%s235 + $0x70] sm:$0xff] %vm1491, %v1490
      %v1500 = vld [vmem:[%s520] sm:$0xff]
      %v1501 = vld [vmem:[%s520 + $0x10] sm:$0xff]
      %v1502 = vld [vmem:[%s520 + $0x20] sm:$0xff]
      %v1503 = vld [vmem:[%s520 + $0x30] sm:$0xff]
      %v1504 = vld [vmem:[%s520 + $0x40] sm:$0xff]
      %v1505 = vld [vmem:[%s520 + $0x50] sm:$0xff]
      %v1506 = vld [vmem:[%s520 + $0x60] sm:$0xff]
      %v1507 = vld [vmem:[%s520 + $0x70] sm:$0xff]
      %s1508 = scalar_lea.vmem %s1, 64
      %v1509 = vld [vmem:[%s1508] sm:$0xff]
      %v1510 = vld [vmem:[%s520 + $0x1] sm:$0xff]
      %v1511 = vld [vmem:[%s520 + $0x11] sm:$0xff]
      %v1512 = vld [vmem:[%s520 + $0x21] sm:$0xff]
      %v1513 = vld [vmem:[%s520 + $0x31] sm:$0xff]
      %v1514 = vld [vmem:[%s520 + $0x41] sm:$0xff]
      %v1515 = vld [vmem:[%s520 + $0x51] sm:$0xff]
      %v1516 = vld [vmem:[%s520 + $0x61] sm:$0xff]
      %v1517 = vld [vmem:[%s520 + $0x71] sm:$0xff]
      %s1518 = scalar_lea.vmem %s1, 72
      %v1519 = vld [vmem:[%s1518] sm:$0xff]
      %v1521 = vsel %vm261, %v1510, 0
      %v1524 = vsel %vm261, %v1511, 0
      %v1527 = vsel %vm261, %v1512, 0
      %v1530 = vsel %vm261, %v1513, 0
      %v1533 = vsel %vm261, %v1514, 0
      %v1536 = vsel %vm261, %v1515, 0
      %v1539 = vsel %vm261, %v1516, 0
      %v1542 = vsel %vm261, %v1517, 0
      %1544 = vmatprep.subr.mxu0 0.0
      %1545 = vmatpush1.msra.mxu0 %v1519
      %1546 = vmatprep.subr.mxu0 0.0
      %1547 = vmatpush1.msra.mxu0 0.0
      %1548 = vmatprep.subr.mxu0 0.0
      %1549 = vmatpush1.msra.mxu0 0.0
      %1550 = vmatprep.subr.mxu0 0.0
      %1551 = vmatpush1.msra.mxu0 0.0
      %1552 = vmatprep.subr.mxu0 0.0
      %1553 = vmatpush1.msra.mxu0 0.0
      %1554 = vmatprep.subr.mxu0 0.0
      %1555 = vmatpush1.msra.mxu0 0.0
      %1556 = vmatprep.subr.mxu0 0.0
      %1557 = vmatpush1.msra.mxu0 0.0
      %1558 = vmatprep.subr.mxu0 0.0
      %1559 = vmatpush1.msra.mxu0 0.0
      %1560 = vmatprep.subr.mxu0 0.0
      %1561 = vmatpush1.msra.mxu0 0.0
      %1562 = vmatprep.subr.mxu0 0.0
      %1563 = vmatpush1.msra.mxu0 0.0
      %1564 = vmatprep.subr.mxu0 0.0
      %1565 = vmatpush1.msra.mxu0 0.0
      %1566 = vmatprep.subr.mxu0 0.0
      %1567 = vmatpush1.msra.mxu0 0.0
      %1568 = vmatprep.subr.mxu0 0.0
      %1569 = vmatpush1.msra.mxu0 0.0
      %1570 = vmatprep.subr.mxu0 0.0
      %1571 = vmatpush1.msra.mxu0 0.0
      %1572 = vmatprep.subr.mxu0 0.0
      %1573 = vmatpush1.msra.mxu0 0.0
      %1574 = vmatprep.subr.mxu0 0.0
      %1575 = vmatpush1.msra.mxu0 0.0
      %1576 = vmatprep.subr.mxu0 0.0
      %1577 = vmatpush1.msra.mxu0 0.0
      %1578 = vmatprep.subr.mxu0 0.0
      %1579 = vmatpush1.msra.mxu0 0.0
      %1580 = vmatprep.subr.mxu0 0.0
      %1581 = vmatpush1.msra.mxu0 0.0
      %1582 = vmatprep.subr.mxu0 0.0
      %1583 = vmatpush1.msra.mxu0 0.0
      %1584 = vmatprep.subr.mxu0 0.0
      %1585 = vmatpush1.msra.mxu0 0.0
      %1586 = vmatprep.subr.mxu0 0.0
      %1587 = vmatpush1.msra.mxu0 0.0
      %1588 = vmatprep.subr.mxu0 0.0
      %1589 = vmatpush1.msra.mxu0 0.0
      %1590 = vmatprep.subr.mxu0 0.0
      %1591 = vmatpush1.msra.mxu0 0.0
      %1592 = vmatprep.subr.mxu0 0.0
      %1593 = vmatpush1.msra.mxu0 0.0
      %1594 = vmatprep.subr.mxu0 0.0
      %1595 = vmatpush1.msra.mxu0 0.0
      %1596 = vmatprep.subr.mxu0 0.0
      %1597 = vmatpush1.msra.mxu0 0.0
      %1598 = vmatprep.subr.mxu0 0.0
      %1599 = vmatpush1.msra.mxu0 0.0
      %1600 = vmatprep.subr.mxu0 0.0
      %1601 = vmatpush1.msra.mxu0 0.0
      %1602 = vmatprep.subr.mxu0 0.0
      %1603 = vmatpush1.msra.mxu0 0.0
      %1604 = vmatprep.subr.mxu0 0.0
      %1605 = vmatpush1.msra.mxu0 0.0
      %1606 = vmatprep.subr.mxu0 0.0
      %1607 = vmatpush1.msra.mxu0 0.0
      %1608 = vmatprep.mubr.f32.mxu0 0.0
      %1609 = vmatmul.mubr.f32.gmra.mrb[0].mxu0 %v1521
      %v1610 = vpop.f32.mrb[0].mxu0
      %v1611 = vadd.f32 0.0, %v1610
      %v1612 = vpop.f32.mrb[0].mxu0
      %1613 = vmatprep.mubr.f32.mxu0 0.0
      %1614 = vmatmul.mubr.f32.gmra.mrb[0].mxu0 %v1524
      %v1615 = vpop.f32.mrb[0].mxu0
      %v1616 = vadd.f32 0.0, %v1615
      %v1617 = vpop.f32.mrb[0].mxu0
      %1618 = vmatprep.mubr.f32.mxu0 0.0
      %1619 = vmatmul.mubr.f32.gmra.mrb[0].mxu0 %v1527
      %v1620 = vpop.f32.mrb[0].mxu0
      %v1621 = vadd.f32 0.0, %v1620
      %v1622 = vpop.f32.mrb[0].mxu0
      %1623 = vmatprep.mubr.f32.mxu0 0.0
      %1624 = vmatmul.mubr.f32.gmra.mrb[0].mxu0 %v1530
      %v1625 = vpop.f32.mrb[0].mxu0
      %v1626 = vadd.f32 0.0, %v1625
      %v1627 = vpop.f32.mrb[0].mxu0
      %1628 = vmatprep.mubr.f32.mxu0 0.0
      %1629 = vmatmul.mubr.f32.gmra.mrb[0].mxu0 %v1533
      %v1630 = vpop.f32.mrb[0].mxu0
      %v1631 = vadd.f32 0.0, %v1630
      %v1632 = vpop.f32.mrb[0].mxu0
      %1633 = vmatprep.mubr.f32.mxu0 0.0
      %1634 = vmatmul.mubr.f32.gmra.mrb[0].mxu0 %v1536
      %v1635 = vpop.f32.mrb[0].mxu0
      %v1636 = vadd.f32 0.0, %v1635
      %v1637 = vpop.f32.mrb[0].mxu0
      %1638 = vmatprep.mubr.f32.mxu0 0.0
      %1639 = vmatmul.mubr.f32.gmra.mrb[0].mxu0 %v1539
      %v1640 = vpop.f32.mrb[0].mxu0
      %v1641 = vadd.f32 0.0, %v1640
      %v1642 = vpop.f32.mrb[0].mxu0
      %1643 = vmatprep.mubr.f32.mxu0 0.0
      %1644 = vmatmul.mubr.f32.gmra.mrb[0].mxu0 %v1542
      %v1645 = vpop.f32.mrb[0].mxu0
      %v1646 = vadd.f32 0.0, %v1645
      %v1647 = vpop.f32.mrb[0].mxu0
      %1648 = vdwg.mxu0
      %v1650 = vsel %vm261, %v1500, 0
      %v1653 = vsel %vm261, %v1501, 0
      %v1656 = vsel %vm261, %v1502, 0
      %v1659 = vsel %vm261, %v1503, 0
      %v1662 = vsel %vm261, %v1504, 0
      %v1665 = vsel %vm261, %v1505, 0
      %v1668 = vsel %vm261, %v1506, 0
      %v1671 = vsel %vm261, %v1507, 0
      %1673 = vmatprep.subr.mxu0 0.0
      %1674 = vmatpush1.msra.mxu0 %v1509
      %1675 = vmatprep.subr.mxu0 0.0
      %1676 = vmatpush1.msra.mxu0 0.0
      %1677 = vmatprep.subr.mxu0 0.0
      %1678 = vmatpush1.msra.mxu0 0.0
      %1679 = vmatprep.subr.mxu0 0.0
      %1680 = vmatpush1.msra.mxu0 0.0
      %1681 = vmatprep.subr.mxu0 0.0
      %1682 = vmatpush1.msra.mxu0 0.0
      %1683 = vmatprep.subr.mxu0 0.0
      %1684 = vmatpush1.msra.mxu0 0.0
      %1685 = vmatprep.subr.mxu0 0.0
      %1686 = vmatpush1.msra.mxu0 0.0
      %1687 = vmatprep.subr.mxu0 0.0
      %1688 = vmatpush1.msra.mxu0 0.0
      %1689 = vmatprep.subr.mxu0 0.0
      %1690 = vmatpush1.msra.mxu0 0.0
      %1691 = vmatprep.subr.mxu0 0.0
      %1692 = vmatpush1.msra.mxu0 0.0
      %1693 = vmatprep.subr.mxu0 0.0
      %1694 = vmatpush1.msra.mxu0 0.0
      %1695 = vmatprep.subr.mxu0 0.0
      %1696 = vmatpush1.msra.mxu0 0.0
      %1697 = vmatprep.subr.mxu0 0.0
      %1698 = vmatpush1.msra.mxu0 0.0
      %1699 = vmatprep.subr.mxu0 0.0
      %1700 = vmatpush1.msra.mxu0 0.0
      %1701 = vmatprep.subr.mxu0 0.0
      %1702 = vmatpush1.msra.mxu0 0.0
      %1703 = vmatprep.subr.mxu0 0.0
      %1704 = vmatpush1.msra.mxu0 0.0
      %1705 = vmatprep.subr.mxu0 0.0
      %1706 = vmatpush1.msra.mxu0 0.0
      %1707 = vmatprep.subr.mxu0 0.0
      %1708 = vmatpush1.msra.mxu0 0.0
      %1709 = vmatprep.subr.mxu0 0.0
      %1710 = vmatpush1.msra.mxu0 0.0
      %1711 = vmatprep.subr.mxu0 0.0
      %1712 = vmatpush1.msra.mxu0 0.0
      %1713 = vmatprep.subr.mxu0 0.0
      %1714 = vmatpush1.msra.mxu0 0.0
      %1715 = vmatprep.subr.mxu0 0.0
      %1716 = vmatpush1.msra.mxu0 0.0
      %1717 = vmatprep.subr.mxu0 0.0
      %1718 = vmatpush1.msra.mxu0 0.0
      %1719 = vmatprep.subr.mxu0 0.0
      %1720 = vmatpush1.msra.mxu0 0.0
      %1721 = vmatprep.subr.mxu0 0.0
      %1722 = vmatpush1.msra.mxu0 0.0
      %1723 = vmatprep.subr.mxu0 0.0
      %1724 = vmatpush1.msra.mxu0 0.0
      %1725 = vmatprep.subr.mxu0 0.0
      %1726 = vmatpush1.msra.mxu0 0.0
      %1727 = vmatprep.subr.mxu0 0.0
      %1728 = vmatpush1.msra.mxu0 0.0
      %1729 = vmatprep.subr.mxu0 0.0
      %1730 = vmatpush1.msra.mxu0 0.0
      %1731 = vmatprep.subr.mxu0 0.0
      %1732 = vmatpush1.msra.mxu0 0.0
      %1733 = vmatprep.subr.mxu0 0.0
      %1734 = vmatpush1.msra.mxu0 0.0
      %1735 = vmatprep.subr.mxu0 0.0
      %1736 = vmatpush1.msra.mxu0 0.0
      %1737 = vmatprep.mubr.f32.mxu0 0.0
      %1738 = vmatmul.mubr.f32.gmra.mrb[0].mxu0 %v1650
      %v1739 = vpop.f32.mrb[0].mxu0
      %v1740 = vadd.f32 %v1611, %v1739
      %v1741 = vpop.f32.mrb[0].mxu0
      %1742 = vmatprep.mubr.f32.mxu0 0.0
      %1743 = vmatmul.mubr.f32.gmra.mrb[0].mxu0 %v1653
      %v1744 = vpop.f32.mrb[0].mxu0
      %v1745 = vadd.f32 %v1616, %v1744
      %v1746 = vpop.f32.mrb[0].mxu0
      %1747 = vmatprep.mubr.f32.mxu0 0.0
      %1748 = vmatmul.mubr.f32.gmra.mrb[0].mxu0 %v1656
      %v1749 = vpop.f32.mrb[0].mxu0
      %v1750 = vadd.f32 %v1621, %v1749
      %v1751 = vpop.f32.mrb[0].mxu0
      %1752 = vmatprep.mubr.f32.mxu0 0.0
      %1753 = vmatmul.mubr.f32.gmra.mrb[0].mxu0 %v1659
      %v1754 = vpop.f32.mrb[0].mxu0
      %v1755 = vadd.f32 %v1626, %v1754
      %v1756 = vpop.f32.mrb[0].mxu0
      %1757 = vmatprep.mubr.f32.mxu0 0.0
      %1758 = vmatmul.mubr.f32.gmra.mrb[0].mxu0 %v1662
      %v1759 = vpop.f32.mrb[0].mxu0
      %v1760 = vadd.f32 %v1631, %v1759
      %v1761 = vpop.f32.mrb[0].mxu0
      %1762 = vmatprep.mubr.f32.mxu0 0.0
      %1763 = vmatmul.mubr.f32.gmra.mrb[0].mxu0 %v1665
      %v1764 = vpop.f32.mrb[0].mxu0
      %v1765 = vadd.f32 %v1636, %v1764
      %v1766 = vpop.f32.mrb[0].mxu0
      %1767 = vmatprep.mubr.f32.mxu0 0.0
      %1768 = vmatmul.mubr.f32.gmra.mrb[0].mxu0 %v1668
      %v1769 = vpop.f32.mrb[0].mxu0
      %v1770 = vadd.f32 %v1641, %v1769
      %v1771 = vpop.f32.mrb[0].mxu0
      %1772 = vmatprep.mubr.f32.mxu0 0.0
      %1773 = vmatmul.mubr.f32.gmra.mrb[0].mxu0 %v1671
      %v1774 = vpop.f32.mrb[0].mxu0
      %v1775 = vadd.f32 %v1646, %v1774
      %v1776 = vpop.f32.mrb[0].mxu0
      %1777 = vdwg.mxu0
      %s1778 = scalar_lea.vmem %s230, 32
      %v1779 = vld [vmem:[%s1778] sm:$0xff]
      %v1780 = vld [vmem:[%s1778 + $0x10] sm:$0xff]
      %v1781 = vld [vmem:[%s1778 + $0x20] sm:$0xff]
      %v1782 = vld [vmem:[%s1778 + $0x30] sm:$0xff]
      %v1783 = vld [vmem:[%s1778 + $0x40] sm:$0xff]
      %v1784 = vld [vmem:[%s1778 + $0x50] sm:$0xff]
      %v1785 = vld [vmem:[%s1778 + $0x60] sm:$0xff]
      %v1786 = vld [vmem:[%s1778 + $0x70] sm:$0xff]
      %s1787 = scalar_lea.vmem %s1, 80
      %v1788 = vld [vmem:[%s1787] sm:$0xff]
      %v1790 = vsel %vm261, %v1779, 0
      %v1793 = vsel %vm261, %v1780, 0
      %v1796 = vsel %vm261, %v1781, 0
      %v1799 = vsel %vm261, %v1782, 0
      %v1802 = vsel %vm261, %v1783, 0
      %v1805 = vsel %vm261, %v1784, 0
      %v1808 = vsel %vm261, %v1785, 0
      %v1811 = vsel %vm261, %v1786, 0
      %1813 = vmatprep.subr.mxu0 0.0
      %1814 = vmatpush1.msra.mxu0 %v1788
      %1815 = vmatprep.subr.mxu0 0.0
      %1816 = vmatpush1.msra.mxu0 0.0
      %1817 = vmatprep.subr.mxu0 0.0
      %1818 = vmatpush1.msra.mxu0 0.0
      %1819 = vmatprep.subr.mxu0 0.0
      %1820 = vmatpush1.msra.mxu0 0.0
      %1821 = vmatprep.subr.mxu0 0.0
      %1822 = vmatpush1.msra.mxu0 0.0
      %1823 = vmatprep.subr.mxu0 0.0
      %1824 = vmatpush1.msra.mxu0 0.0
      %1825 = vmatprep.subr.mxu0 0.0
      %1826 = vmatpush1.msra.mxu0 0.0
      %1827 = vmatprep.subr.mxu0 0.0
      %1828 = vmatpush1.msra.mxu0 0.0
      %1829 = vmatprep.subr.mxu0 0.0
      %1830 = vmatpush1.msra.mxu0 0.0
      %1831 = vmatprep.subr.mxu0 0.0
      %1832 = vmatpush1.msra.mxu0 0.0
      %1833 = vmatprep.subr.mxu0 0.0
      %1834 = vmatpush1.msra.mxu0 0.0
      %1835 = vmatprep.subr.mxu0 0.0
      %1836 = vmatpush1.msra.mxu0 0.0
      %1837 = vmatprep.subr.mxu0 0.0
      %1838 = vmatpush1.msra.mxu0 0.0
      %1839 = vmatprep.subr.mxu0 0.0
      %1840 = vmatpush1.msra.mxu0 0.0
      %1841 = vmatprep.subr.mxu0 0.0
      %1842 = vmatpush1.msra.mxu0 0.0
      %1843 = vmatprep.subr.mxu0 0.0
      %1844 = vmatpush1.msra.mxu0 0.0
      %1845 = vmatprep.subr.mxu0 0.0
      %1846 = vmatpush1.msra.mxu0 0.0
      %1847 = vmatprep.subr.mxu0 0.0
      %1848 = vmatpush1.msra.mxu0 0.0
      %1849 = vmatprep.subr.mxu0 0.0
      %1850 = vmatpush1.msra.mxu0 0.0
      %1851 = vmatprep.subr.mxu0 0.0
      %1852 = vmatpush1.msra.mxu0 0.0
      %1853 = vmatprep.subr.mxu0 0.0
      %1854 = vmatpush1.msra.mxu0 0.0
      %1855 = vmatprep.subr.mxu0 0.0
      %1856 = vmatpush1.msra.mxu0 0.0
      %1857 = vmatprep.subr.mxu0 0.0
      %1858 = vmatpush1.msra.mxu0 0.0
      %1859 = vmatprep.subr.mxu0 0.0
      %1860 = vmatpush1.msra.mxu0 0.0
      %1861 = vmatprep.subr.mxu0 0.0
      %1862 = vmatpush1.msra.mxu0 0.0
      %1863 = vmatprep.subr.mxu0 0.0
      %1864 = vmatpush1.msra.mxu0 0.0
      %1865 = vmatprep.subr.mxu0 0.0
      %1866 = vmatpush1.msra.mxu0 0.0
      %1867 = vmatprep.subr.mxu0 0.0
      %1868 = vmatpush1.msra.mxu0 0.0
      %1869 = vmatprep.subr.mxu0 0.0
      %1870 = vmatpush1.msra.mxu0 0.0
      %1871 = vmatprep.subr.mxu0 0.0
      %1872 = vmatpush1.msra.mxu0 0.0
      %1873 = vmatprep.subr.mxu0 0.0
      %1874 = vmatpush1.msra.mxu0 0.0
      %1875 = vmatprep.subr.mxu0 0.0
      %1876 = vmatpush1.msra.mxu0 0.0
      %1877 = vmatprep.mubr.f32.mxu0 0.0
      %1878 = vmatmul.mubr.f32.gmra.mrb[0].mxu0 %v1790
      %v1879 = vpop.f32.mrb[0].mxu0
      %v1880 = vadd.f32 0.0, %v1879
      %v1881 = vpop.f32.mrb[0].mxu0
      %1882 = vmatprep.mubr.f32.mxu0 0.0
      %1883 = vmatmul.mubr.f32.gmra.mrb[0].mxu0 %v1793
      %v1884 = vpop.f32.mrb[0].mxu0
      %v1885 = vadd.f32 0.0, %v1884
      %v1886 = vpop.f32.mrb[0].mxu0
      %1887 = vmatprep.mubr.f32.mxu0 0.0
      %1888 = vmatmul.mubr.f32.gmra.mrb[0].mxu0 %v1796
      %v1889 = vpop.f32.mrb[0].mxu0
      %v1890 = vadd.f32 0.0, %v1889
      %v1891 = vpop.f32.mrb[0].mxu0
      %1892 = vmatprep.mubr.f32.mxu0 0.0
      %1893 = vmatmul.mubr.f32.gmra.mrb[0].mxu0 %v1799
      %v1894 = vpop.f32.mrb[0].mxu0
      %v1895 = vadd.f32 0.0, %v1894
      %v1896 = vpop.f32.mrb[0].mxu0
      %1897 = vmatprep.mubr.f32.mxu0 0.0
      %1898 = vmatmul.mubr.f32.gmra.mrb[0].mxu0 %v1802
      %v1899 = vpop.f32.mrb[0].mxu0
      %v1900 = vadd.f32 0.0, %v1899
      %v1901 = vpop.f32.mrb[0].mxu0
      %1902 = vmatprep.mubr.f32.mxu0 0.0
      %1903 = vmatmul.mubr.f32.gmra.mrb[0].mxu0 %v1805
      %v1904 = vpop.f32.mrb[0].mxu0
      %v1905 = vadd.f32 0.0, %v1904
      %v1906 = vpop.f32.mrb[0].mxu0
      %1907 = vmatprep.mubr.f32.mxu0 0.0
      %1908 = vmatmul.mubr.f32.gmra.mrb[0].mxu0 %v1808
      %v1909 = vpop.f32.mrb[0].mxu0
      %v1910 = vadd.f32 0.0, %v1909
      %v1911 = vpop.f32.mrb[0].mxu0
      %1912 = vmatprep.mubr.f32.mxu0 0.0
      %1913 = vmatmul.mubr.f32.gmra.mrb[0].mxu0 %v1811
      %v1914 = vpop.f32.mrb[0].mxu0
      %v1915 = vadd.f32 0.0, %v1914
      %v1916 = vpop.f32.mrb[0].mxu0
      %1917 = vdwg.mxu0
      %v1918 = vadd.f32 %v1740, %v1880
      %v1919 = vadd.f32 %v1745, %v1885
      %v1920 = vadd.f32 %v1750, %v1890
      %v1921 = vadd.f32 %v1755, %v1895
      %v1922 = vadd.f32 %v1760, %v1900
      %v1923 = vadd.f32 %v1765, %v1905
      %v1924 = vadd.f32 %v1770, %v1910
      %v1925 = vadd.f32 %v1775, %v1915
      %v1926 = vld [vmem:[%s1778 + $0x1] sm:$0xff]
      %v1927 = vld [vmem:[%s1778 + $0x11] sm:$0xff]
      %v1928 = vld [vmem:[%s1778 + $0x21] sm:$0xff]
      %v1929 = vld [vmem:[%s1778 + $0x31] sm:$0xff]
      %v1930 = vld [vmem:[%s1778 + $0x41] sm:$0xff]
      %v1931 = vld [vmem:[%s1778 + $0x51] sm:$0xff]
      %v1932 = vld [vmem:[%s1778 + $0x61] sm:$0xff]
      %v1933 = vld [vmem:[%s1778 + $0x71] sm:$0xff]
      %s1934 = scalar_lea.vmem %s1, 88
      %v1935 = vld [vmem:[%s1934] sm:$0xff]
      %v1937 = vsel %vm261, %v1926, 0
      %v1940 = vsel %vm261, %v1927, 0
      %v1943 = vsel %vm261, %v1928, 0
      %v1946 = vsel %vm261, %v1929, 0
      %v1949 = vsel %vm261, %v1930, 0
      %v1952 = vsel %vm261, %v1931, 0
      %v1955 = vsel %vm261, %v1932, 0
      %v1958 = vsel %vm261, %v1933, 0
      %1960 = vmatprep.subr.mxu0 0.0
      %1961 = vmatpush1.msra.mxu0 %v1935
      %1962 = vmatprep.subr.mxu0 0.0
      %1963 = vmatpush1.msra.mxu0 0.0
      %1964 = vmatprep.subr.mxu0 0.0
      %1965 = vmatpush1.msra.mxu0 0.0
      %1966 = vmatprep.subr.mxu0 0.0
      %1967 = vmatpush1.msra.mxu0 0.0
      %1968 = vmatprep.subr.mxu0 0.0
      %1969 = vmatpush1.msra.mxu0 0.0
      %1970 = vmatprep.subr.mxu0 0.0
      %1971 = vmatpush1.msra.mxu0 0.0
      %1972 = vmatprep.subr.mxu0 0.0
      %1973 = vmatpush1.msra.mxu0 0.0
      %1974 = vmatprep.subr.mxu0 0.0
      %1975 = vmatpush1.msra.mxu0 0.0
      %1976 = vmatprep.subr.mxu0 0.0
      %1977 = vmatpush1.msra.mxu0 0.0
      %1978 = vmatprep.subr.mxu0 0.0
      %1979 = vmatpush1.msra.mxu0 0.0
      %1980 = vmatprep.subr.mxu0 0.0
      %1981 = vmatpush1.msra.mxu0 0.0
      %1982 = vmatprep.subr.mxu0 0.0
      %1983 = vmatpush1.msra.mxu0 0.0
      %1984 = vmatprep.subr.mxu0 0.0
      %1985 = vmatpush1.msra.mxu0 0.0
      %1986 = vmatprep.subr.mxu0 0.0
      %1987 = vmatpush1.msra.mxu0 0.0
      %1988 = vmatprep.subr.mxu0 0.0
      %1989 = vmatpush1.msra.mxu0 0.0
      %1990 = vmatprep.subr.mxu0 0.0
      %1991 = vmatpush1.msra.mxu0 0.0
      %1992 = vmatprep.subr.mxu0 0.0
      %1993 = vmatpush1.msra.mxu0 0.0
      %1994 = vmatprep.subr.mxu0 0.0
      %1995 = vmatpush1.msra.mxu0 0.0
      %1996 = vmatprep.subr.mxu0 0.0
      %1997 = vmatpush1.msra.mxu0 0.0
      %1998 = vmatprep.subr.mxu0 0.0
      %1999 = vmatpush1.msra.mxu0 0.0
      %2000 = vmatprep.subr.mxu0 0.0
      %2001 = vmatpush1.msra.mxu0 0.0
      %2002 = vmatprep.subr.mxu0 0.0
      %2003 = vmatpush1.msra.mxu0 0.0
      %2004 = vmatprep.subr.mxu0 0.0
      %2005 = vmatpush1.msra.mxu0 0.0
      %2006 = vmatprep.subr.mxu0 0.0
      %2007 = vmatpush1.msra.mxu0 0.0
      %2008 = vmatprep.subr.mxu0 0.0
      %2009 = vmatpush1.msra.mxu0 0.0
      %2010 = vmatprep.subr.mxu0 0.0
      %2011 = vmatpush1.msra.mxu0 0.0
      %2012 = vmatprep.subr.mxu0 0.0
      %2013 = vmatpush1.msra.mxu0 0.0
      %2014 = vmatprep.subr.mxu0 0.0
      %2015 = vmatpush1.msra.mxu0 0.0
      %2016 = vmatprep.subr.mxu0 0.0
      %2017 = vmatpush1.msra.mxu0 0.0
      %2018 = vmatprep.subr.mxu0 0.0
      %2019 = vmatpush1.msra.mxu0 0.0
      %2020 = vmatprep.subr.mxu0 0.0
      %2021 = vmatpush1.msra.mxu0 0.0
      %2022 = vmatprep.subr.mxu0 0.0
      %2023 = vmatpush1.msra.mxu0 0.0
      %2024 = vmatprep.mubr.f32.mxu0 0.0
      %2025 = vmatmul.mubr.f32.gmra.mrb[0].mxu0 %v1937
      %v2026 = vpop.f32.mrb[0].mxu0
      %v2027 = vadd.f32 0.0, %v2026
      %v2028 = vpop.f32.mrb[0].mxu0
      %2029 = vmatprep.mubr.f32.mxu0 0.0
      %2030 = vmatmul.mubr.f32.gmra.mrb[0].mxu0 %v1940
      %v2031 = vpop.f32.mrb[0].mxu0
      %v2032 = vadd.f32 0.0, %v2031
      %v2033 = vpop.f32.mrb[0].mxu0
      %2034 = vmatprep.mubr.f32.mxu0 0.0
      %2035 = vmatmul.mubr.f32.gmra.mrb[0].mxu0 %v1943
      %v2036 = vpop.f32.mrb[0].mxu0
      %v2037 = vadd.f32 0.0, %v2036
      %v2038 = vpop.f32.mrb[0].mxu0
      %2039 = vmatprep.mubr.f32.mxu0 0.0
      %2040 = vmatmul.mubr.f32.gmra.mrb[0].mxu0 %v1946
      %v2041 = vpop.f32.mrb[0].mxu0
      %v2042 = vadd.f32 0.0, %v2041
      %v2043 = vpop.f32.mrb[0].mxu0
      %2044 = vmatprep.mubr.f32.mxu0 0.0
      %2045 = vmatmul.mubr.f32.gmra.mrb[0].mxu0 %v1949
      %v2046 = vpop.f32.mrb[0].mxu0
      %v2047 = vadd.f32 0.0, %v2046
      %v2048 = vpop.f32.mrb[0].mxu0
      %2049 = vmatprep.mubr.f32.mxu0 0.0
      %2050 = vmatmul.mubr.f32.gmra.mrb[0].mxu0 %v1952
      %v2051 = vpop.f32.mrb[0].mxu0
      %v2052 = vadd.f32 0.0, %v2051
      %v2053 = vpop.f32.mrb[0].mxu0
      %2054 = vmatprep.mubr.f32.mxu0 0.0
      %2055 = vmatmul.mubr.f32.gmra.mrb[0].mxu0 %v1955
      %v2056 = vpop.f32.mrb[0].mxu0
      %v2057 = vadd.f32 0.0, %v2056
      %v2058 = vpop.f32.mrb[0].mxu0
      %2059 = vmatprep.mubr.f32.mxu0 0.0
      %2060 = vmatmul.mubr.f32.gmra.mrb[0].mxu0 %v1958
      %v2061 = vpop.f32.mrb[0].mxu0
      %v2062 = vadd.f32 0.0, %v2061
      %v2063 = vpop.f32.mrb[0].mxu0
      %2064 = vdwg.mxu0
      %v2065 = vadd.f32 %v1918, %v2027
      %v2066 = vadd.f32 %v1919, %v2032
      %v2067 = vadd.f32 %v1920, %v2037
      %v2068 = vadd.f32 %v1921, %v2042
      %v2069 = vadd.f32 %v1922, %v2047
      %v2070 = vadd.f32 %v1923, %v2052
      %v2071 = vadd.f32 %v1924, %v2057
      %v2072 = vadd.f32 %v1925, %v2062
      %v2073 = vsel %vm815, %v2065, 0.0
      %v2074 = vsel %vm815, %v2066, 0.0
      %v2075 = vadd.f32 %v2073, %v2074
      %v2076 = vsel %vm815, %v2067, 0.0
      %v2077 = vadd.f32 %v2075, %v2076
      %v2078 = vsel %vm815, %v2068, 0.0
      %v2079 = vadd.f32 %v2077, %v2078
      %v2080 = vsel %vm815, %v2069, 0.0
      %v2081 = vadd.f32 %v2079, %v2080
      %v2082 = vsel %vm815, %v2070, 0.0
      %v2083 = vadd.f32 %v2081, %v2082
      %v2084 = vsel %vm815, %v2071, 0.0
      %v2085 = vadd.f32 %v2083, %v2084
      %v2086 = vsel %vm815, %v2072, 0.0
      %v2087 = vadd.f32 %v2085, %v2086
      %v2088 = vrot.slane %v2087, 4
      %v2089 = vadd.f32 %v2087, %v2088
      %v2090 = vrot.slane %v2089, 2
      %v2091 = vadd.f32 %v2089, %v2090
      %v2092 = vrot.slane %v2091, 1
      %v2093 = vadd.f32 %v2091, %v2092
      %v2094 = vadd.f32 %v1412, %v2093
      %v2095 = vmul.f32 %v2065, %v2065
      %v2096 = vmul.f32 %v2066, %v2066
      %v2097 = vmul.f32 %v2067, %v2067
      %v2098 = vmul.f32 %v2068, %v2068
      %v2099 = vmul.f32 %v2069, %v2069
      %v2100 = vmul.f32 %v2070, %v2070
      %v2101 = vmul.f32 %v2071, %v2071
      %v2102 = vmul.f32 %v2072, %v2072
      %v2103 = vsel %vm815, %v2095, 0.0
      %v2104 = vsel %vm815, %v2096, 0.0
      %v2105 = vadd.f32 %v2103, %v2104
      %v2106 = vsel %vm815, %v2097, 0.0
      %v2107 = vadd.f32 %v2105, %v2106
      %v2108 = vsel %vm815, %v2098, 0.0
      %v2109 = vadd.f32 %v2107, %v2108
      %v2110 = vsel %vm815, %v2099, 0.0
      %v2111 = vadd.f32 %v2109, %v2110
      %v2112 = vsel %vm815, %v2100, 0.0
      %v2113 = vadd.f32 %v2111, %v2112
      %v2114 = vsel %vm815, %v2101, 0.0
      %v2115 = vadd.f32 %v2113, %v2114
      %v2116 = vsel %vm815, %v2102, 0.0
      %v2117 = vadd.f32 %v2115, %v2116
      %v2118 = vrot.slane %v2117, 4
      %v2119 = vadd.f32 %v2117, %v2118
      %v2120 = vrot.slane %v2119, 2
      %v2121 = vadd.f32 %v2119, %v2120
      %v2122 = vrot.slane %v2121, 1
      %v2123 = vadd.f32 %v2121, %v2122
      %v2124 = vadd.f32 %v1442, %v2123
      %v2125 = vld [vmem:[%s2] sm:$0x1]
      %v2127 = vlaneseq
      %v2128 = vshrl.u32 %v2127, 7
      %v2129 = vsub.s32 0, %v2128
      %v2130 = vrot.slane %v2125, %v2129
      %v2132 = vadd.f32 %v2065, %v2130
      %v2133 = vadd.f32 %v2066, %v2130
      %v2134 = vadd.f32 %v2067, %v2130
      %v2135 = vadd.f32 %v2068, %v2130
      %v2136 = vadd.f32 %v2069, %v2130
      %v2137 = vadd.f32 %v2070, %v2130
      %v2138 = vadd.f32 %v2071, %v2130
      %v2139 = vadd.f32 %v2072, %v2130
      %s2140 = scalar_lea.vmem %s1, 96
      %v2141 = vld [vmem:[%s2140] sm:$0xff]
      %v2142 = vld [vmem:[%s520 + $0x2] sm:$0xff]
      %v2143 = vld [vmem:[%s520 + $0x12] sm:$0xff]
      %v2144 = vld [vmem:[%s520 + $0x22] sm:$0xff]
      %v2145 = vld [vmem:[%s520 + $0x32] sm:$0xff]
      %v2146 = vld [vmem:[%s520 + $0x42] sm:$0xff]
      %v2147 = vld [vmem:[%s520 + $0x52] sm:$0xff]
      %v2148 = vld [vmem:[%s520 + $0x62] sm:$0xff]
      %v2149 = vld [vmem:[%s520 + $0x72] sm:$0xff]
      %s2150 = scalar_lea.vmem %s1, 104
      %v2151 = vld [vmem:[%s2150] sm:$0xff]
      %v2153 = vsel %vm261, %v2142, 0
      %v2156 = vsel %vm261, %v2143, 0
      %v2159 = vsel %vm261, %v2144, 0
      %v2162 = vsel %vm261, %v2145, 0
      %v2165 = vsel %vm261, %v2146, 0
      %v2168 = vsel %vm261, %v2147, 0
      %v2171 = vsel %vm261, %v2148, 0
      %v2174 = vsel %vm261, %v2149, 0
      %2176 = vmatprep.subr.mxu0 0.0
      %2177 = vmatpush1.msra.mxu0 %v2151
      %2178 = vmatprep.subr.mxu0 0.0
      %2179 = vmatpush1.msra.mxu0 0.0
      %2180 = vmatprep.subr.mxu0 0.0
      %2181 = vmatpush1.msra.mxu0 0.0
      %2182 = vmatprep.subr.mxu0 0.0
      %2183 = vmatpush1.msra.mxu0 0.0
      %2184 = vmatprep.subr.mxu0 0.0
      %2185 = vmatpush1.msra.mxu0 0.0
      %2186 = vmatprep.subr.mxu0 0.0
      %2187 = vmatpush1.msra.mxu0 0.0
      %2188 = vmatprep.subr.mxu0 0.0
      %2189 = vmatpush1.msra.mxu0 0.0
      %2190 = vmatprep.subr.mxu0 0.0
      %2191 = vmatpush1.msra.mxu0 0.0
      %2192 = vmatprep.subr.mxu0 0.0
      %2193 = vmatpush1.msra.mxu0 0.0
      %2194 = vmatprep.subr.mxu0 0.0
      %2195 = vmatpush1.msra.mxu0 0.0
      %2196 = vmatprep.subr.mxu0 0.0
      %2197 = vmatpush1.msra.mxu0 0.0
      %2198 = vmatprep.subr.mxu0 0.0
      %2199 = vmatpush1.msra.mxu0 0.0
      %2200 = vmatprep.subr.mxu0 0.0
      %2201 = vmatpush1.msra.mxu0 0.0
      %2202 = vmatprep.subr.mxu0 0.0
      %2203 = vmatpush1.msra.mxu0 0.0
      %2204 = vmatprep.subr.mxu0 0.0
      %2205 = vmatpush1.msra.mxu0 0.0
      %2206 = vmatprep.subr.mxu0 0.0
      %2207 = vmatpush1.msra.mxu0 0.0
      %2208 = vmatprep.subr.mxu0 0.0
      %2209 = vmatpush1.msra.mxu0 0.0
      %2210 = vmatprep.subr.mxu0 0.0
      %2211 = vmatpush1.msra.mxu0 0.0
      %2212 = vmatprep.subr.mxu0 0.0
      %2213 = vmatpush1.msra.mxu0 0.0
      %2214 = vmatprep.subr.mxu0 0.0
      %2215 = vmatpush1.msra.mxu0 0.0
      %2216 = vmatprep.subr.mxu0 0.0
      %2217 = vmatpush1.msra.mxu0 0.0
      %2218 = vmatprep.subr.mxu0 0.0
      %2219 = vmatpush1.msra.mxu0 0.0
      %2220 = vmatprep.subr.mxu0 0.0
      %2221 = vmatpush1.msra.mxu0 0.0
      %2222 = vmatprep.subr.mxu0 0.0
      %2223 = vmatpush1.msra.mxu0 0.0
      %2224 = vmatprep.subr.mxu0 0.0
      %2225 = vmatpush1.msra.mxu0 0.0
      %2226 = vmatprep.subr.mxu0 0.0
      %2227 = vmatpush1.msra.mxu0 0.0
      %2228 = vmatprep.subr.mxu0 0.0
      %2229 = vmatpush1.msra.mxu0 0.0
      %2230 = vmatprep.subr.mxu0 0.0
      %2231 = vmatpush1.msra.mxu0 0.0
      %2232 = vmatprep.subr.mxu0 0.0
      %2233 = vmatpush1.msra.mxu0 0.0
      %2234 = vmatprep.subr.mxu0 0.0
      %2235 = vmatpush1.msra.mxu0 0.0
      %2236 = vmatprep.subr.mxu0 0.0
      %2237 = vmatpush1.msra.mxu0 0.0
      %2238 = vmatprep.subr.mxu0 0.0
      %2239 = vmatpush1.msra.mxu0 0.0
      %2240 = vmatprep.mubr.f32.mxu0 0.0
      %2241 = vmatmul.mubr.f32.gmra.mrb[0].mxu0 %v2153
      %v2242 = vpop.f32.mrb[0].mxu0
      %v2243 = vadd.f32 0.0, %v2242
      %v2244 = vpop.f32.mrb[0].mxu0
      %2245 = vmatprep.mubr.f32.mxu0 0.0
      %2246 = vmatmul.mubr.f32.gmra.mrb[0].mxu0 %v2156
      %v2247 = vpop.f32.mrb[0].mxu0
      %v2248 = vadd.f32 0.0, %v2247
      %v2249 = vpop.f32.mrb[0].mxu0
      %2250 = vmatprep.mubr.f32.mxu0 0.0
      %2251 = vmatmul.mubr.f32.gmra.mrb[0].mxu0 %v2159
      %v2252 = vpop.f32.mrb[0].mxu0
      %v2253 = vadd.f32 0.0, %v2252
      %v2254 = vpop.f32.mrb[0].mxu0
      %2255 = vmatprep.mubr.f32.mxu0 0.0
      %2256 = vmatmul.mubr.f32.gmra.mrb[0].mxu0 %v2162
      %v2257 = vpop.f32.mrb[0].mxu0
      %v2258 = vadd.f32 0.0, %v2257
      %v2259 = vpop.f32.mrb[0].mxu0
      %2260 = vmatprep.mubr.f32.mxu0 0.0
      %2261 = vmatmul.mubr.f32.gmra.mrb[0].mxu0 %v2165
      %v2262 = vpop.f32.mrb[0].mxu0
      %v2263 = vadd.f32 0.0, %v2262
      %v2264 = vpop.f32.mrb[0].mxu0
      %2265 = vmatprep.mubr.f32.mxu0 0.0
      %2266 = vmatmul.mubr.f32.gmra.mrb[0].mxu0 %v2168
      %v2267 = vpop.f32.mrb[0].mxu0
      %v2268 = vadd.f32 0.0, %v2267
      %v2269 = vpop.f32.mrb[0].mxu0
      %2270 = vmatprep.mubr.f32.mxu0 0.0
      %2271 = vmatmul.mubr.f32.gmra.mrb[0].mxu0 %v2171
      %v2272 = vpop.f32.mrb[0].mxu0
      %v2273 = vadd.f32 0.0, %v2272
      %v2274 = vpop.f32.mrb[0].mxu0
      %2275 = vmatprep.mubr.f32.mxu0 0.0
      %2276 = vmatmul.mubr.f32.gmra.mrb[0].mxu0 %v2174
      %v2277 = vpop.f32.mrb[0].mxu0
      %v2278 = vadd.f32 0.0, %v2277
      %v2279 = vpop.f32.mrb[0].mxu0
      %2280 = vdwg.mxu0
      %2281 = vmatprep.subr.mxu0 0.0
      %2282 = vmatpush1.msra.mxu0 %v2141
      %2283 = vmatprep.subr.mxu0 0.0
      %2284 = vmatpush1.msra.mxu0 0.0
      %2285 = vmatprep.subr.mxu0 0.0
      %2286 = vmatpush1.msra.mxu0 0.0
      %2287 = vmatprep.subr.mxu0 0.0
      %2288 = vmatpush1.msra.mxu0 0.0
      %2289 = vmatprep.subr.mxu0 0.0
      %2290 = vmatpush1.msra.mxu0 0.0
      %2291 = vmatprep.subr.mxu0 0.0
      %2292 = vmatpush1.msra.mxu0 0.0
      %2293 = vmatprep.subr.mxu0 0.0
      %2294 = vmatpush1.msra.mxu0 0.0
      %2295 = vmatprep.subr.mxu0 0.0
      %2296 = vmatpush1.msra.mxu0 0.0
      %2297 = vmatprep.subr.mxu0 0.0
      %2298 = vmatpush1.msra.mxu0 0.0
      %2299 = vmatprep.subr.mxu0 0.0
      %2300 = vmatpush1.msra.mxu0 0.0
      %2301 = vmatprep.subr.mxu0 0.0
      %2302 = vmatpush1.msra.mxu0 0.0
      %2303 = vmatprep.subr.mxu0 0.0
      %2304 = vmatpush1.msra.mxu0 0.0
      %2305 = vmatprep.subr.mxu0 0.0
      %2306 = vmatpush1.msra.mxu0 0.0
      %2307 = vmatprep.subr.mxu0 0.0
      %2308 = vmatpush1.msra.mxu0 0.0
      %2309 = vmatprep.subr.mxu0 0.0
      %2310 = vmatpush1.msra.mxu0 0.0
      %2311 = vmatprep.subr.mxu0 0.0
      %2312 = vmatpush1.msra.mxu0 0.0
      %2313 = vmatprep.subr.mxu0 0.0
      %2314 = vmatpush1.msra.mxu0 0.0
      %2315 = vmatprep.subr.mxu0 0.0
      %2316 = vmatpush1.msra.mxu0 0.0
      %2317 = vmatprep.subr.mxu0 0.0
      %2318 = vmatpush1.msra.mxu0 0.0
      %2319 = vmatprep.subr.mxu0 0.0
      %2320 = vmatpush1.msra.mxu0 0.0
      %2321 = vmatprep.subr.mxu0 0.0
      %2322 = vmatpush1.msra.mxu0 0.0
      %2323 = vmatprep.subr.mxu0 0.0
      %2324 = vmatpush1.msra.mxu0 0.0
      %2325 = vmatprep.subr.mxu0 0.0
      %2326 = vmatpush1.msra.mxu0 0.0
      %2327 = vmatprep.subr.mxu0 0.0
      %2328 = vmatpush1.msra.mxu0 0.0
      %2329 = vmatprep.subr.mxu0 0.0
      %2330 = vmatpush1.msra.mxu0 0.0
      %2331 = vmatprep.subr.mxu0 0.0
      %2332 = vmatpush1.msra.mxu0 0.0
      %2333 = vmatprep.subr.mxu0 0.0
      %2334 = vmatpush1.msra.mxu0 0.0
      %2335 = vmatprep.subr.mxu0 0.0
      %2336 = vmatpush1.msra.mxu0 0.0
      %2337 = vmatprep.subr.mxu0 0.0
      %2338 = vmatpush1.msra.mxu0 0.0
      %2339 = vmatprep.subr.mxu0 0.0
      %2340 = vmatpush1.msra.mxu0 0.0
      %2341 = vmatprep.subr.mxu0 0.0
      %2342 = vmatpush1.msra.mxu0 0.0
      %2343 = vmatprep.subr.mxu0 0.0
      %2344 = vmatpush1.msra.mxu0 0.0
      %2345 = vmatprep.mubr.f32.mxu0 0.0
      %2346 = vmatmul.mubr.f32.gmra.mrb[0].mxu0 %v1521
      %v2347 = vpop.f32.mrb[0].mxu0
      %v2348 = vadd.f32 %v2243, %v2347
      %v2349 = vpop.f32.mrb[0].mxu0
      %2350 = vmatprep.mubr.f32.mxu0 0.0
      %2351 = vmatmul.mubr.f32.gmra.mrb[0].mxu0 %v1524
      %v2352 = vpop.f32.mrb[0].mxu0
      %v2353 = vadd.f32 %v2248, %v2352
      %v2354 = vpop.f32.mrb[0].mxu0
      %2355 = vmatprep.mubr.f32.mxu0 0.0
      %2356 = vmatmul.mubr.f32.gmra.mrb[0].mxu0 %v1527
      %v2357 = vpop.f32.mrb[0].mxu0
      %v2358 = vadd.f32 %v2253, %v2357
      %v2359 = vpop.f32.mrb[0].mxu0
      %2360 = vmatprep.mubr.f32.mxu0 0.0
      %2361 = vmatmul.mubr.f32.gmra.mrb[0].mxu0 %v1530
      %v2362 = vpop.f32.mrb[0].mxu0
      %v2363 = vadd.f32 %v2258, %v2362
      %v2364 = vpop.f32.mrb[0].mxu0
      %2365 = vmatprep.mubr.f32.mxu0 0.0
      %2366 = vmatmul.mubr.f32.gmra.mrb[0].mxu0 %v1533
      %v2367 = vpop.f32.mrb[0].mxu0
      %v2368 = vadd.f32 %v2263, %v2367
      %v2369 = vpop.f32.mrb[0].mxu0
      %2370 = vmatprep.mubr.f32.mxu0 0.0
      %2371 = vmatmul.mubr.f32.gmra.mrb[0].mxu0 %v1536
      %v2372 = vpop.f32.mrb[0].mxu0
      %v2373 = vadd.f32 %v2268, %v2372
      %v2374 = vpop.f32.mrb[0].mxu0
      %2375 = vmatprep.mubr.f32.mxu0 0.0
      %2376 = vmatmul.mubr.f32.gmra.mrb[0].mxu0 %v1539
      %v2377 = vpop.f32.mrb[0].mxu0
      %v2378 = vadd.f32 %v2273, %v2377
      %v2379 = vpop.f32.mrb[0].mxu0
      %2380 = vmatprep.mubr.f32.mxu0 0.0
      %2381 = vmatmul.mubr.f32.gmra.mrb[0].mxu0 %v1542
      %v2382 = vpop.f32.mrb[0].mxu0
      %v2383 = vadd.f32 %v2278, %v2382
      %v2384 = vpop.f32.mrb[0].mxu0
      %2385 = vdwg.mxu0
      %s2386 = scalar_lea.vmem %s1, 112
      %v2387 = vld [vmem:[%s2386] sm:$0xff]
      %2388 = vmatprep.subr.mxu0 0.0
      %2389 = vmatpush1.msra.mxu0 %v2387
      %2390 = vmatprep.subr.mxu0 0.0
      %2391 = vmatpush1.msra.mxu0 0.0
      %2392 = vmatprep.subr.mxu0 0.0
      %2393 = vmatpush1.msra.mxu0 0.0
      %2394 = vmatprep.subr.mxu0 0.0
      %2395 = vmatpush1.msra.mxu0 0.0
      %2396 = vmatprep.subr.mxu0 0.0
      %2397 = vmatpush1.msra.mxu0 0.0
      %2398 = vmatprep.subr.mxu0 0.0
      %2399 = vmatpush1.msra.mxu0 0.0
      %2400 = vmatprep.subr.mxu0 0.0
      %2401 = vmatpush1.msra.mxu0 0.0
      %2402 = vmatprep.subr.mxu0 0.0
      %2403 = vmatpush1.msra.mxu0 0.0
      %2404 = vmatprep.subr.mxu0 0.0
      %2405 = vmatpush1.msra.mxu0 0.0
      %2406 = vmatprep.subr.mxu0 0.0
      %2407 = vmatpush1.msra.mxu0 0.0
      %2408 = vmatprep.subr.mxu0 0.0
      %2409 = vmatpush1.msra.mxu0 0.0
      %2410 = vmatprep.subr.mxu0 0.0
      %2411 = vmatpush1.msra.mxu0 0.0
      %2412 = vmatprep.subr.mxu0 0.0
      %2413 = vmatpush1.msra.mxu0 0.0
      %2414 = vmatprep.subr.mxu0 0.0
      %2415 = vmatpush1.msra.mxu0 0.0
      %2416 = vmatprep.subr.mxu0 0.0
      %2417 = vmatpush1.msra.mxu0 0.0
      %2418 = vmatprep.subr.mxu0 0.0
      %2419 = vmatpush1.msra.mxu0 0.0
      %2420 = vmatprep.subr.mxu0 0.0
      %2421 = vmatpush1.msra.mxu0 0.0
      %2422 = vmatprep.subr.mxu0 0.0
      %2423 = vmatpush1.msra.mxu0 0.0
      %2424 = vmatprep.subr.mxu0 0.0
      %2425 = vmatpush1.msra.mxu0 0.0
      %2426 = vmatprep.subr.mxu0 0.0
      %2427 = vmatpush1.msra.mxu0 0.0
      %2428 = vmatprep.subr.mxu0 0.0
      %2429 = vmatpush1.msra.mxu0 0.0
      %2430 = vmatprep.subr.mxu0 0.0
      %2431 = vmatpush1.msra.mxu0 0.0
      %2432 = vmatprep.subr.mxu0 0.0
      %2433 = vmatpush1.msra.mxu0 0.0
      %2434 = vmatprep.subr.mxu0 0.0
      %2435 = vmatpush1.msra.mxu0 0.0
      %2436 = vmatprep.subr.mxu0 0.0
      %2437 = vmatpush1.msra.mxu0 0.0
      %2438 = vmatprep.subr.mxu0 0.0
      %2439 = vmatpush1.msra.mxu0 0.0
      %2440 = vmatprep.subr.mxu0 0.0
      %2441 = vmatpush1.msra.mxu0 0.0
      %2442 = vmatprep.subr.mxu0 0.0
      %2443 = vmatpush1.msra.mxu0 0.0
      %2444 = vmatprep.subr.mxu0 0.0
      %2445 = vmatpush1.msra.mxu0 0.0
      %2446 = vmatprep.subr.mxu0 0.0
      %2447 = vmatpush1.msra.mxu0 0.0
      %2448 = vmatprep.subr.mxu0 0.0
      %2449 = vmatpush1.msra.mxu0 0.0
      %2450 = vmatprep.subr.mxu0 0.0
      %2451 = vmatpush1.msra.mxu0 0.0
      %2452 = vmatprep.mubr.f32.mxu0 0.0
      %2453 = vmatmul.mubr.f32.gmra.mrb[0].mxu0 %v1937
      %v2454 = vpop.f32.mrb[0].mxu0
      %v2455 = vadd.f32 0.0, %v2454
      %v2456 = vpop.f32.mrb[0].mxu0
      %2457 = vmatprep.mubr.f32.mxu0 0.0
      %2458 = vmatmul.mubr.f32.gmra.mrb[0].mxu0 %v1940
      %v2459 = vpop.f32.mrb[0].mxu0
      %v2460 = vadd.f32 0.0, %v2459
      %v2461 = vpop.f32.mrb[0].mxu0
      %2462 = vmatprep.mubr.f32.mxu0 0.0
      %2463 = vmatmul.mubr.f32.gmra.mrb[0].mxu0 %v1943
      %v2464 = vpop.f32.mrb[0].mxu0
      %v2465 = vadd.f32 0.0, %v2464
      %v2466 = vpop.f32.mrb[0].mxu0
      %2467 = vmatprep.mubr.f32.mxu0 0.0
      %2468 = vmatmul.mubr.f32.gmra.mrb[0].mxu0 %v1946
      %v2469 = vpop.f32.mrb[0].mxu0
      %v2470 = vadd.f32 0.0, %v2469
      %v2471 = vpop.f32.mrb[0].mxu0
      %2472 = vmatprep.mubr.f32.mxu0 0.0
      %2473 = vmatmul.mubr.f32.gmra.mrb[0].mxu0 %v1949
      %v2474 = vpop.f32.mrb[0].mxu0
      %v2475 = vadd.f32 0.0, %v2474
      %v2476 = vpop.f32.mrb[0].mxu0
      %2477 = vmatprep.mubr.f32.mxu0 0.0
      %2478 = vmatmul.mubr.f32.gmra.mrb[0].mxu0 %v1952
      %v2479 = vpop.f32.mrb[0].mxu0
      %v2480 = vadd.f32 0.0, %v2479
      %v2481 = vpop.f32.mrb[0].mxu0
      %2482 = vmatprep.mubr.f32.mxu0 0.0
      %2483 = vmatmul.mubr.f32.gmra.mrb[0].mxu0 %v1955
      %v2484 = vpop.f32.mrb[0].mxu0
      %v2485 = vadd.f32 0.0, %v2484
      %v2486 = vpop.f32.mrb[0].mxu0
      %2487 = vmatprep.mubr.f32.mxu0 0.0
      %2488 = vmatmul.mubr.f32.gmra.mrb[0].mxu0 %v1958
      %v2489 = vpop.f32.mrb[0].mxu0
      %v2490 = vadd.f32 0.0, %v2489
      %v2491 = vpop.f32.mrb[0].mxu0
      %2492 = vdwg.mxu0
      %v2493 = vadd.f32 %v2348, %v2455
      %v2494 = vadd.f32 %v2353, %v2460
      %v2495 = vadd.f32 %v2358, %v2465
      %v2496 = vadd.f32 %v2363, %v2470
      %v2497 = vadd.f32 %v2368, %v2475
      %v2498 = vadd.f32 %v2373, %v2480
      %v2499 = vadd.f32 %v2378, %v2485
      %v2500 = vadd.f32 %v2383, %v2490
      %v2501 = vld [vmem:[%s1778 + $0x2] sm:$0xff]
      %v2502 = vld [vmem:[%s1778 + $0x12] sm:$0xff]
      %v2503 = vld [vmem:[%s1778 + $0x22] sm:$0xff]
      %v2504 = vld [vmem:[%s1778 + $0x32] sm:$0xff]
      %v2505 = vld [vmem:[%s1778 + $0x42] sm:$0xff]
      %v2506 = vld [vmem:[%s1778 + $0x52] sm:$0xff]
      %v2507 = vld [vmem:[%s1778 + $0x62] sm:$0xff]
      %v2508 = vld [vmem:[%s1778 + $0x72] sm:$0xff]
      %s2509 = scalar_lea.vmem %s1, 120
      %v2510 = vld [vmem:[%s2509] sm:$0xff]
      %v2512 = vsel %vm261, %v2501, 0
      %v2515 = vsel %vm261, %v2502, 0
      %v2518 = vsel %vm261, %v2503, 0
      %v2521 = vsel %vm261, %v2504, 0
      %v2524 = vsel %vm261, %v2505, 0
      %v2527 = vsel %vm261, %v2506, 0
      %v2530 = vsel %vm261, %v2507, 0
      %v2533 = vsel %vm261, %v2508, 0
      %2535 = vmatprep.subr.mxu0 0.0
      %2536 = vmatpush1.msra.mxu0 %v2510
      %2537 = vmatprep.subr.mxu0 0.0
      %2538 = vmatpush1.msra.mxu0 0.0
      %2539 = vmatprep.subr.mxu0 0.0
      %2540 = vmatpush1.msra.mxu0 0.0
      %2541 = vmatprep.subr.mxu0 0.0
      %2542 = vmatpush1.msra.mxu0 0.0
      %2543 = vmatprep.subr.mxu0 0.0
      %2544 = vmatpush1.msra.mxu0 0.0
      %2545 = vmatprep.subr.mxu0 0.0
      %2546 = vmatpush1.msra.mxu0 0.0
      %2547 = vmatprep.subr.mxu0 0.0
      %2548 = vmatpush1.msra.mxu0 0.0
      %2549 = vmatprep.subr.mxu0 0.0
      %2550 = vmatpush1.msra.mxu0 0.0
      %2551 = vmatprep.subr.mxu0 0.0
      %2552 = vmatpush1.msra.mxu0 0.0
      %2553 = vmatprep.subr.mxu0 0.0
      %2554 = vmatpush1.msra.mxu0 0.0
      %2555 = vmatprep.subr.mxu0 0.0
      %2556 = vmatpush1.msra.mxu0 0.0
      %2557 = vmatprep.subr.mxu0 0.0
      %2558 = vmatpush1.msra.mxu0 0.0
      %2559 = vmatprep.subr.mxu0 0.0
      %2560 = vmatpush1.msra.mxu0 0.0
      %2561 = vmatprep.subr.mxu0 0.0
      %2562 = vmatpush1.msra.mxu0 0.0
      %2563 = vmatprep.subr.mxu0 0.0
      %2564 = vmatpush1.msra.mxu0 0.0
      %2565 = vmatprep.subr.mxu0 0.0
      %2566 = vmatpush1.msra.mxu0 0.0
      %2567 = vmatprep.subr.mxu0 0.0
      %2568 = vmatpush1.msra.mxu0 0.0
      %2569 = vmatprep.subr.mxu0 0.0
      %2570 = vmatpush1.msra.mxu0 0.0
      %2571 = vmatprep.subr.mxu0 0.0
      %2572 = vmatpush1.msra.mxu0 0.0
      %2573 = vmatprep.subr.mxu0 0.0
      %2574 = vmatpush1.msra.mxu0 0.0
      %2575 = vmatprep.subr.mxu0 0.0
      %2576 = vmatpush1.msra.mxu0 0.0
      %2577 = vmatprep.subr.mxu0 0.0
      %2578 = vmatpush1.msra.mxu0 0.0
      %2579 = vmatprep.subr.mxu0 0.0
      %2580 = vmatpush1.msra.mxu0 0.0
      %2581 = vmatprep.subr.mxu0 0.0
      %2582 = vmatpush1.msra.mxu0 0.0
      %2583 = vmatprep.subr.mxu0 0.0
      %2584 = vmatpush1.msra.mxu0 0.0
      %2585 = vmatprep.subr.mxu0 0.0
      %2586 = vmatpush1.msra.mxu0 0.0
      %2587 = vmatprep.subr.mxu0 0.0
      %2588 = vmatpush1.msra.mxu0 0.0
      %2589 = vmatprep.subr.mxu0 0.0
      %2590 = vmatpush1.msra.mxu0 0.0
      %2591 = vmatprep.subr.mxu0 0.0
      %2592 = vmatpush1.msra.mxu0 0.0
      %2593 = vmatprep.subr.mxu0 0.0
      %2594 = vmatpush1.msra.mxu0 0.0
      %2595 = vmatprep.subr.mxu0 0.0
      %2596 = vmatpush1.msra.mxu0 0.0
      %2597 = vmatprep.subr.mxu0 0.0
      %2598 = vmatpush1.msra.mxu0 0.0
      %2599 = vmatprep.mubr.f32.mxu0 0.0
      %2600 = vmatmul.mubr.f32.gmra.mrb[0].mxu0 %v2512
      %v2601 = vpop.f32.mrb[0].mxu0
      %v2602 = vadd.f32 0.0, %v2601
      %v2603 = vpop.f32.mrb[0].mxu0
      %2604 = vmatprep.mubr.f32.mxu0 0.0
      %2605 = vmatmul.mubr.f32.gmra.mrb[0].mxu0 %v2515
      %v2606 = vpop.f32.mrb[0].mxu0
      %v2607 = vadd.f32 0.0, %v2606
      %v2608 = vpop.f32.mrb[0].mxu0
      %2609 = vmatprep.mubr.f32.mxu0 0.0
      %2610 = vmatmul.mubr.f32.gmra.mrb[0].mxu0 %v2518
      %v2611 = vpop.f32.mrb[0].mxu0
      %v2612 = vadd.f32 0.0, %v2611
      %v2613 = vpop.f32.mrb[0].mxu0
      %2614 = vmatprep.mubr.f32.mxu0 0.0
      %2615 = vmatmul.mubr.f32.gmra.mrb[0].mxu0 %v2521
      %v2616 = vpop.f32.mrb[0].mxu0
      %v2617 = vadd.f32 0.0, %v2616
      %v2618 = vpop.f32.mrb[0].mxu0
      %2619 = vmatprep.mubr.f32.mxu0 0.0
      %2620 = vmatmul.mubr.f32.gmra.mrb[0].mxu0 %v2524
      %v2621 = vpop.f32.mrb[0].mxu0
      %v2622 = vadd.f32 0.0, %v2621
      %v2623 = vpop.f32.mrb[0].mxu0
      %2624 = vmatprep.mubr.f32.mxu0 0.0
      %2625 = vmatmul.mubr.f32.gmra.mrb[0].mxu0 %v2527
      %v2626 = vpop.f32.mrb[0].mxu0
      %v2627 = vadd.f32 0.0, %v2626
      %v2628 = vpop.f32.mrb[0].mxu0
      %2629 = vmatprep.mubr.f32.mxu0 0.0
      %2630 = vmatmul.mubr.f32.gmra.mrb[0].mxu0 %v2530
      %v2631 = vpop.f32.mrb[0].mxu0
      %v2632 = vadd.f32 0.0, %v2631
      %v2633 = vpop.f32.mrb[0].mxu0
      %2634 = vmatprep.mubr.f32.mxu0 0.0
      %2635 = vmatmul.mubr.f32.gmra.mrb[0].mxu0 %v2533
      %v2636 = vpop.f32.mrb[0].mxu0
      %v2637 = vadd.f32 0.0, %v2636
      %v2638 = vpop.f32.mrb[0].mxu0
      %2639 = vdwg.mxu0
      %v2640 = vadd.f32 %v2493, %v2602
      %v2641 = vadd.f32 %v2494, %v2607
      %v2642 = vadd.f32 %v2495, %v2612
      %v2643 = vadd.f32 %v2496, %v2617
      %v2644 = vadd.f32 %v2497, %v2622
      %v2645 = vadd.f32 %v2498, %v2627
      %v2646 = vadd.f32 %v2499, %v2632
      %v2647 = vadd.f32 %v2500, %v2637
      %v2648 = vsel %vm815, %v2640, 0.0
      %v2649 = vsel %vm815, %v2641, 0.0
      %v2650 = vadd.f32 %v2648, %v2649
      %v2651 = vsel %vm815, %v2642, 0.0
      %v2652 = vadd.f32 %v2650, %v2651
      %v2653 = vsel %vm815, %v2643, 0.0
      %v2654 = vadd.f32 %v2652, %v2653
      %v2655 = vsel %vm815, %v2644, 0.0
      %v2656 = vadd.f32 %v2654, %v2655
      %v2657 = vsel %vm815, %v2645, 0.0
      %v2658 = vadd.f32 %v2656, %v2657
      %v2659 = vsel %vm815, %v2646, 0.0
      %v2660 = vadd.f32 %v2658, %v2659
      %v2661 = vsel %vm815, %v2647, 0.0
      %v2662 = vadd.f32 %v2660, %v2661
      %v2663 = vrot.slane %v2662, 4
      %v2664 = vadd.f32 %v2662, %v2663
      %v2665 = vrot.slane %v2664, 2
      %v2666 = vadd.f32 %v2664, %v2665
      %v2667 = vrot.slane %v2666, 1
      %v2668 = vadd.f32 %v2666, %v2667
      %v2669 = vadd.f32 %v2094, %v2668
      %v2670 = vmul.f32 %v2640, %v2640
      %v2671 = vmul.f32 %v2641, %v2641
      %v2672 = vmul.f32 %v2642, %v2642
      %v2673 = vmul.f32 %v2643, %v2643
      %v2674 = vmul.f32 %v2644, %v2644
      %v2675 = vmul.f32 %v2645, %v2645
      %v2676 = vmul.f32 %v2646, %v2646
      %v2677 = vmul.f32 %v2647, %v2647
      %v2678 = vsel %vm815, %v2670, 0.0
      %v2679 = vsel %vm815, %v2671, 0.0
      %v2680 = vadd.f32 %v2678, %v2679
      %v2681 = vsel %vm815, %v2672, 0.0
      %v2682 = vadd.f32 %v2680, %v2681
      %v2683 = vsel %vm815, %v2673, 0.0
      %v2684 = vadd.f32 %v2682, %v2683
      %v2685 = vsel %vm815, %v2674, 0.0
      %v2686 = vadd.f32 %v2684, %v2685
      %v2687 = vsel %vm815, %v2675, 0.0
      %v2688 = vadd.f32 %v2686, %v2687
      %v2689 = vsel %vm815, %v2676, 0.0
      %v2690 = vadd.f32 %v2688, %v2689
      %v2691 = vsel %vm815, %v2677, 0.0
      %v2692 = vadd.f32 %v2690, %v2691
      %v2693 = vrot.slane %v2692, 4
      %v2694 = vadd.f32 %v2692, %v2693
      %v2695 = vrot.slane %v2694, 2
      %v2696 = vadd.f32 %v2694, %v2695
      %v2697 = vrot.slane %v2696, 1
      %v2698 = vadd.f32 %v2696, %v2697
      %v2699 = vadd.f32 %v2124, %v2698
      %v2700 = vadd.f32 %v2640, %v2130
      %v2701 = vadd.f32 %v2641, %v2130
      %v2702 = vadd.f32 %v2642, %v2130
      %v2703 = vadd.f32 %v2643, %v2130
      %v2704 = vadd.f32 %v2644, %v2130
      %v2705 = vadd.f32 %v2645, %v2130
      %v2706 = vadd.f32 %v2646, %v2130
      %v2707 = vadd.f32 %v2647, %v2130
      %2716 = vrot.lane.b32.xlu0 %v2700, 16
      %v2717 = vpop.permute.xlu0 %2716
      %2718 = vrot.lane.b32.xlu0 %v2701, 16
      %v2719 = vpop.permute.xlu0 %2718
      %2720 = vrot.lane.b32.xlu0 %v2702, 16
      %v2721 = vpop.permute.xlu0 %2720
      %2722 = vrot.lane.b32.xlu0 %v2703, 16
      %v2723 = vpop.permute.xlu0 %2722
      %2724 = vrot.lane.b32.xlu0 %v2704, 16
      %v2725 = vpop.permute.xlu0 %2724
      %2726 = vrot.lane.b32.xlu0 %v2705, 16
      %v2727 = vpop.permute.xlu0 %2726
      %2728 = vrot.lane.b32.xlu0 %v2706, 16
      %v2729 = vpop.permute.xlu0 %2728
      %2730 = vrot.lane.b32.xlu0 %v2707, 16
      %v2731 = vpop.permute.xlu0 %2730
      %v2740 = vsel %vm815, %v2132, %v2717
      %v2741 = vsel %vm815, %v2133, %v2719
      %v2742 = vsel %vm815, %v2134, %v2721
      %v2743 = vsel %vm815, %v2135, %v2723
      %v2744 = vsel %vm815, %v2136, %v2725
      %v2745 = vsel %vm815, %v2137, %v2727
      %v2746 = vsel %vm815, %v2138, %v2729
      %v2747 = vsel %vm815, %v2139, %v2731
      %s2748 = scalar_lea.vmem %s235, 8
      %2749 = vst.msk [vmem:[%s2748] sm:$0xff] %vm1491, %v2740
      %2750 = vst.msk [vmem:[%s2748 + $0x10] sm:$0xff] %vm1491, %v2741
      %2751 = vst.msk [vmem:[%s2748 + $0x20] sm:$0xff] %vm1491, %v2742
      %2752 = vst.msk [vmem:[%s2748 + $0x30] sm:$0xff] %vm1491, %v2743
      %2753 = vst.msk [vmem:[%s2748 + $0x40] sm:$0xff] %vm1491, %v2744
      %2754 = vst.msk [vmem:[%s2748 + $0x50] sm:$0xff] %vm1491, %v2745
      %2755 = vst.msk [vmem:[%s2748 + $0x60] sm:$0xff] %vm1491, %v2746
      %2756 = vst.msk [vmem:[%s2748 + $0x70] sm:$0xff] %vm1491, %v2747
      %vm2757 = vcmask 122880
      %2758 = vst.msk [vmem:[%s238] sm:$0x1] %vm2757, %v2669
      %2759 = vst.msk [vmem:[%s241] sm:$0x1] %vm2757, %v2699
      %p2760 = scmp.lt.s32.totalorder %s17, 1
      %s2761 = scalar_select %p2760, %s17, 1
      %s2762 = smul.addr %s2761, 16
      %s2763 = smul.addr %s2762, 8
      %s2764 = scalar_lea.vmem %s3, %s2763
      %p2765 = scmp.lt.s32.totalorder %s17, 1
      %s2766 = scalar_select %p2765, %s17, 1
      %s2767 = scalar_lea.vmem %s4, %s2766
      %p2768 = scmp.lt.s32.totalorder %s17, 1
      %s2769 = scalar_select %p2768, %s17, 1
      %s2770 = scalar_lea.vmem %s5, %s2769
      // Predicated region
      $region33: #{generator_block.2} parent=31 // pred_check
        %p2771 = pneg %p103
      $region34: #{generator_block.2} parent=31 // pred_check_branch
        %2773 = sbr.rel (%p2771) target = $region36
      $region35: #{generator_block.2} parent=31 // pred_region
        _
      $region36: #{generator_block.2} parent=31 // pred_fallthru
        _
      // Predicated region
      $region37: #{generator_block.2} parent=31 // pred_check
        %p2774 = pneg %p129
      $region38: #{generator_block.2} parent=31 // pred_check_branch
        %2776 = sbr.rel (%p2774) target = $region40
      $region39: #{generator_block.2} parent=31 // pred_region
        _
      $region40: #{generator_block.2} parent=31 // pred_fallthru
        _
      // Predicated region
      $region41: #{generator_block.2} parent=31 // pred_check
        %p2777 = pneg %p155
      $region42: #{generator_block.2} parent=31 // pred_check_branch
        %2779 = sbr.rel (%p2777) target = $region44
      $region43: #{generator_block.2} parent=31 // pred_region
        _
      $region44: #{generator_block.2} parent=31 // pred_fallthru
        _
    $region32: #{generator_block.2} parent=5 // pred_fallthru
      _
    %p2780 = scmp.le.s32.totalorder 2, %s12
    // Predicated region
    $region45: #{generator_block.2} parent=5 // pred_check
      %p2781 = pneg %p2780
    $region46: #{generator_block.2} parent=5 // pred_check_branch
      %2783 = sbr.rel (%p2781) target = $region48
    $region47: #{generator_block.2} parent=5 // pred_region
      %s2784 = ssub.s32 %s12, 2
      // Predicated region
      $region49: #{generator_block.2} parent=47 // pred_check
        %p2785 = pneg %p109
      $region50: #{generator_block.2} parent=47 // pred_check_branch
        %2787 = sbr.rel (%p2785) target = $region52
      $region51: #{generator_block.2} parent=47 // pred_region
        %p2788 = scmp.lt.s32.totalorder %s18, 1
        %s2789 = scalar_select %p2788, %s18, 1
        %s2790 = smul.addr %s2789, 16
        %s2791 = smul.addr %s2790, 8
        %s2792 = scalar_lea.vmem %s3, %s2791
      $region52: #{generator_block.2} parent=47 // pred_fallthru
        _
      // Predicated region
      $region53: #{generator_block.2} parent=47 // pred_check
        %p2793 = pneg %p135
      $region54: #{generator_block.2} parent=47 // pred_check_branch
        %2795 = sbr.rel (%p2793) target = $region56
      $region55: #{generator_block.2} parent=47 // pred_region
        %p2796 = scmp.lt.s32.totalorder %s18, 1
        %s2797 = scalar_select %p2796, %s18, 1
        %s2798 = scalar_lea.vmem %s4, %s2797
      $region56: #{generator_block.2} parent=47 // pred_fallthru
        _
      // Predicated region
      $region57: #{generator_block.2} parent=47 // pred_check
        %p2799 = pneg %p161
      $region58: #{generator_block.2} parent=47 // pred_check_branch
        %2801 = sbr.rel (%p2799) target = $region60
      $region59: #{generator_block.2} parent=47 // pred_region
        %p2802 = scmp.lt.s32.totalorder %s18, 1
        %s2803 = scalar_select %p2802, %s18, 1
        %s2804 = scalar_lea.vmem %s5, %s2803
      $region60: #{generator_block.2} parent=47 // pred_fallthru
        _
    $region48: #{generator_block.2} parent=5 // pred_fallthru
      _
  $region6: #{generator_block.2} parent=0 // loop_footer
    %s16 = sadd.s32 1, %s12
  $region7: #{generator_block.2} parent=0 // loop_footer_branch
    %11 = sbr.rel target = $region3
  $region8: #{generator_block.2} parent=0 // loop_exit
    _

</llo_original>
